<compile_context>
chip_gen: v7x
topology: tpu7x:2x2x1
jax: 0.10.0
libtpu: 0.0.40
codegen_flags: <defaults>
</compile_context>

<pallas_src>
import functools

import jax
import jax.numpy as jnp
import numpy as np
from jax.experimental import pallas as pl
from jax.experimental.pallas import tpu as pltpu


def bottleneck_kernel(x_ref, w1_ref, w2_ref, w3_ref, b1_ref, b2_ref, b3_ref,
                      o_ref, t1p_ref, pcol_ref, *, multi_strip):
    # x_ref:    (1, H, W, Cin)            bf16 (full image, resident across h-strips)
    # w1_ref:   (Cin, Cmid)               bf16 (BN1 scale folded in)
    # w2_ref:   (9*Cmid, Cmid)            bf16 (BN2 scale folded in, (dh, dw, ci) rows)
    # w3_ref:   (Cmid, Cout)              bf16 (BN3 scale folded in)
    # b*_ref:   (1, C)                    f32
    # o_ref:    (1, TILE_H, W, Cout)      bf16
    # t1p_ref:  (TILE_H+2, W+2, Cmid)     bf16 scratch: zero-padded conv2 input strip
    # pcol_ref: (TILE_H, W, 9*Cmid)       bf16 scratch: im2col columns
    hi = pl.program_id(1)
    nh = pl.num_programs(1)

    _, H, W, Cin = x_ref.shape
    _, TILE_H, _, Cout = o_ref.shape
    Cmid = w1_ref.shape[1]

    r0 = pl.multiple_of(hi * TILE_H, TILE_H)

    w1 = w1_ref[...]                       # (Cin, Cmid) bf16
    b1 = b1_ref[...]                       # (1, Cmid)   f32

    # ---- step-invariant zero-padding borders (written once per image) ----
    @pl.when(hi == 0)
    def _init_border():
        zc = jnp.zeros((TILE_H + 2, 1, Cmid), t1p_ref.dtype)
        t1p_ref[:, 0:1, :] = zc                         # left pad column
        t1p_ref[:, W + 1:W + 2, :] = zc                 # right pad column
        if not multi_strip:
            # Single strip: the top/bottom halo rows are always the image zero pad.
            zr = jnp.zeros((1, W + 2, Cmid), t1p_ref.dtype)
            t1p_ref[0:1, :, :] = zr
            t1p_ref[TILE_H + 1:TILE_H + 2, :, :] = zr

    # ---- conv1 (1x1) + BN1 + ReLU on the strip: ONE (TILE_H*W)-row matmul ----
    xs = x_ref[0, pl.ds(r0, TILE_H), :, :]              # (TILE_H, W, Cin) bf16
    xs2 = xs.reshape(TILE_H * W, Cin)
    t1 = jnp.dot(xs2, w1, preferred_element_type=jnp.float32)
    t1 = jnp.maximum(t1 + b1, 0.0)
    t1p_ref[1:TILE_H + 1, 1:W + 1, :] = (
        t1.reshape(TILE_H, W, Cmid).astype(t1p_ref.dtype))

    if multi_strip:
        # ---- both 1-row halos recomputed in a SINGLE 2-row matmul ----
        top_row = jnp.maximum(r0 - 1, 0)
        bot_row = jnp.minimum(r0 + TILE_H, H - 1)
        halo_in = jnp.concatenate(
            [x_ref[0, pl.ds(top_row, 1), :, :],
             x_ref[0, pl.ds(bot_row, 1), :, :]], axis=0)        # (2, W, Cin) bf16
        hm = jnp.dot(halo_in.reshape(2 * W, Cin), w1,
                     preferred_element_type=jnp.float32)
        hm = jnp.maximum(hm + b1, 0.0).reshape(2, W, Cmid)
        top_mask = jnp.where(hi > 0, 1.0, 0.0)          # zero pad at image top
        bot_mask = jnp.where(hi < nh - 1, 1.0, 0.0)     # zero pad at image bottom
        t1p_ref[0:1, 1:W + 1, :] = (hm[0:1] * top_mask).astype(t1p_ref.dtype)
        t1p_ref[TILE_H + 1:TILE_H + 2, 1:W + 1, :] = (
            hm[1:2] * bot_mask).astype(t1p_ref.dtype)

    # ---- conv2 (3x3, stride 1) as ONE im2col matmul with K = 9*Cmid + BN2 + ReLU ----
    # Taps stored directly into disjoint K-slices of a bf16 scratch (no lane concat).
    for idx in range(9):
        dh, dw = divmod(idx, 3)
        pcol_ref[:, :, idx * Cmid:(idx + 1) * Cmid] = (
            t1p_ref[dh:dh + TILE_H, dw:dw + W, :])
    patches = pcol_ref[...].reshape(TILE_H * W, 9 * Cmid)        # bf16
    t2 = jnp.dot(patches, w2_ref[...], preferred_element_type=jnp.float32)
    t2 = jnp.maximum(t2 + b2_ref[...], 0.0)

    # ---- conv3 (1x1 expand) + BN3 ----
    t3 = jnp.dot(t2.astype(jnp.bfloat16), w3_ref[...],
                 preferred_element_type=jnp.float32)
    t3 = t3 + b3_ref[...]

    # ---- residual add (f32) + ReLU, bf16 store ----
    out = jnp.maximum(t3 + xs2.astype(jnp.float32), 0.0)
    o_ref[0] = out.reshape(TILE_H, W, Cout).astype(o_ref.dtype)


def prepare_params(params):
    """Fold the BN scales into the conv weights (once) and cast matmul weights to bf16.

    params = (w1 (Cin,Cmid), w2 (3,3,Cmid,Cmid) HWIO, w3 (Cmid,Cout),
              s1,b1 (1,Cmid), s2,b2 (1,Cmid), s3,b3 (1,Cout))  -- s/b are folded BN.
    """
    w1, w2, w3, s1, b1, s2, b2, s3, b3 = params
    Cmid = w1.shape[1]
    w1f = (w1 * s1).astype(jnp.bfloat16)                                   # (Cin, Cmid)
    w2f = (w2 * s2.reshape(1, 1, 1, Cmid)).reshape(9 * Cmid, Cmid)         # (9*Cmid, Cmid)
    w2f = w2f.astype(jnp.bfloat16)
    w3f = (w3 * s3).astype(jnp.bfloat16)                                   # (Cmid, Cout)
    return (w1f, w2f, w3f,
            b1.astype(jnp.float32), b2.astype(jnp.float32), b3.astype(jnp.float32))


def _pick_tile_h(H, tile_h):
    """Per-shape strip height: whole image for H <= 32, else largest divisor <= 56."""
    if tile_h is None:
        if H <= 32:
            return H
        divs = [d for d in range(1, min(H, 56) + 1) if H % d == 0]
        best = max(divs)
        return best if best >= 8 else H
    th = max(1, min(tile_h, H))
    while H % th != 0:
        th -= 1
    return th


def _vmem_limit_bytes(H, W, Cin, Cmid, Cout, th):
    """Scoped-VMEM budget: working set * headroom, clamped to device capacity."""
    need = 0
    need += 2 * (H * W * Cin) * 2                 # x block (bf16), double-buffered
    need += 2 * (th * W * Cout) * 2               # out block (bf16), double-buffered
    need += (th + 2) * (W + 2) * Cmid * 2         # padded conv2-input scratch (bf16)
    need += th * W * 9 * Cmid * 2                 # im2col scratch (bf16)
    need += 2 * (Cin * Cmid + 9 * Cmid * Cmid + Cmid * Cout) * 2   # weights
    need += 3 * th * W * max(9 * Cmid, Cout) * 4  # in-flight f32 values
    lim = int(need * 1.25)
    cap = 128 * 1024 * 1024
    try:
        cap = int(pltpu.get_tpu_info().vmem_capacity_bytes)
    except Exception:
        pass
    return max(32 * 1024 * 1024, min(lim, 96 * 1024 * 1024, int(cap * 0.75)))


def bottleneck_nhwc(x_nhwc, prepared, *, tile_h=None):
    """Core NHWC entry point. Activations cross HBM in bf16; output is bf16 NHWC.

    In a full network, keep activations bf16 NHWC between blocks and call this
    directly to avoid per-block transposes and dtype casts.
    """
    w1f, w2f, w3f, b1, b2, b3 = prepared
    N, H, W, Cin = x_nhwc.shape
    Cmid = w1f.shape[1]
    Cout = w3f.shape[1]
    assert Cin == Cout, "identity shortcut requires Cin == Cout (downsample=None)"

    if x_nhwc.dtype != jnp.bfloat16:
        x_nhwc = x_nhwc.astype(jnp.bfloat16)      # bf16 HBM activation boundary

    th = _pick_tile_h(H, tile_h)
    nh = H // th

    kernel = functools.partial(bottleneck_kernel, multi_strip=(nh > 1))

    grid_spec = pltpu.PrefetchScalarGridSpec(
        num_scalar_prefetch=0,
        grid=(N, nh),
        in_specs=[
            # TODO(synk): for v7x, strip-block x (halo rows via overlap/manual DMA)
            # instead of keeping the full image resident per batch element.
            pl.BlockSpec((1, H, W, Cin), lambda n, h: (n, 0, 0, 0)),
            pl.BlockSpec(w1f.shape, lambda n, h: (0, 0)),
            pl.BlockSpec(w2f.shape, lambda n, h: (0, 0)),
            pl.BlockSpec(w3f.shape, lambda n, h: (0, 0)),
            pl.BlockSpec(b1.shape, lambda n, h: (0, 0)),
            pl.BlockSpec(b2.shape, lambda n, h: (0, 0)),
            pl.BlockSpec(b3.shape, lambda n, h: (0, 0)),
        ],
        out_specs=pl.BlockSpec((1, th, W, Cout), lambda n, h: (n, h, 0, 0)),
        scratch_shapes=[
            pltpu.VMEM((th + 2, W + 2, Cmid), jnp.bfloat16),   # padded conv2 input
            pltpu.VMEM((th, W, 9 * Cmid), jnp.bfloat16),       # im2col columns
        ],
    )

    flops = 2 * N * H * W * (Cin * Cmid + 9 * Cmid * Cmid + Cmid * Cout)
    bytes_accessed = (2 * N * H * W * (Cin + Cout)
                      + 2 * (Cin * Cmid + 9 * Cmid * Cmid + Cmid * Cout)
                      + 4 * (2 * Cmid + Cout))

    return pl.pallas_call(
        kernel,
        out_shape=jax.ShapeDtypeStruct((N, H, W, Cout), jnp.bfloat16),
        grid_spec=grid_spec,
        compiler_params=pltpu.CompilerParams(
            # batch axis is the megacore-sharded one; h-strips stay on one core.
            dimension_semantics=("parallel", "arbitrary"),
            vmem_limit_bytes=_vmem_limit_bytes(H, W, Cin, Cmid, Cout, th),
        ),
        cost_estimate=pl.CostEstimate(
            flops=flops, transcendentals=0, bytes_accessed=bytes_accessed),
    )(x_nhwc, w1f, w2f, w3f, b1, b2, b3)


def bottleneck(x_nchw, prepared, *, tile_h=None):
    # Thin NCHW/f32 adapter for PyTorch parity only. In a full network keep
    # activations bf16 NHWC between blocks and call bottleneck_nhwc directly.
    x = jnp.transpose(x_nchw, (0, 2, 3, 1))
    out = bottleneck_nhwc(x, prepared, tile_h=tile_h)
    return jnp.transpose(out, (0, 3, 1, 2)).astype(jnp.float32)


def reference(x_nchw, params):
    """Pure-JAX f32 reference (lax conv, unfolded BN scale/bias) for correctness."""
    w1, w2, w3, s1, b1, s2, b2, s3, b3 = params
    x = jnp.transpose(x_nchw, (0, 2, 3, 1))

    def conv(v, w, pad):
        return jax.lax.conv_general_dilated(
            v, w, (1, 1), pad, dimension_numbers=("NHWC", "HWIO", "NHWC"))

    t = conv(x, w1.reshape(1, 1, *w1.shape), "VALID")
    t = jnp.maximum(t * s1 + b1, 0.0)
    t = conv(t, w2, [(1, 1), (1, 1)])
    t = jnp.maximum(t * s2 + b2, 0.0)
    t = conv(t, w3.reshape(1, 1, *w3.shape), "VALID")
    t = t * s3 + b3
    out = jnp.maximum(t + x, 0.0)
    return jnp.transpose(out, (0, 3, 1, 2))


if __name__ == "__main__":
    key = jax.random.PRNGKey(0)
    N, H, W = 2, 16, 16
    planes = 4
    Cmid = planes
    Cout = planes * 4          # expansion = 4
    Cin = Cout                 # downsample=None => residual channels must match

    ks = jax.random.split(key, 16)
    x = jax.random.normal(ks[0], (N, Cin, H, W), jnp.float32)

    # conv weights (kernel layout; equivalent to PyTorch OIHW after transpose)
    w1 = 0.1 * jax.random.normal(ks[1], (Cin, Cmid), jnp.float32)          # conv1x1 reduce
    w2 = 0.1 * jax.random.normal(ks[2], (3, 3, Cmid, Cmid), jnp.float32)   # conv3x3 HWIO
    w3 = 0.1 * jax.random.normal(ks[3], (Cmid, Cout), jnp.float32)         # conv1x1 expand

    def bn_folded(kg, kb, km, kv, C, eps=1e-5):
        gamma = 1.0 + 0.1 * jax.random.normal(kg, (C,), jnp.float32)
        beta = 0.1 * jax.random.normal(kb, (C,), jnp.float32)
        mean = 0.1 * jax.random.normal(km, (C,), jnp.float32)
        var = jnp.abs(jax.random.normal(kv, (C,), jnp.float32)) + 0.5
        scale = gamma / jnp.sqrt(var + eps)
        bias = beta - mean * scale
        return scale.reshape(1, C), bias.reshape(1, C)

    s1, b1 = bn_folded(ks[4], ks[5], ks[6], ks[7], Cmid)
    s2, b2 = bn_folded(ks[8], ks[9], ks[10], ks[11], Cmid)
    s3, b3 = bn_folded(ks[12], ks[13], ks[14], ks[15], Cout)

    params = (w1, w2, w3, s1, b1, s2, b2, s3, b3)
    prepared = prepare_params(params)     # BN folding + bf16 cast happens once here

    # Default tiling (th = H -> single strip, halo-free path).
    out_full = bottleneck(x, prepared)
    # Forced 2-strip tiling to exercise the halo-recompute path as well.
    out_strip = bottleneck(x, prepared, tile_h=8)
    jax.block_until_ready((out_full, out_strip))

    ref = reference(x, params)
    # NOTE: bf16 activation boundary + bf16 MXU inputs vs. the f32 reference.
    np.testing.assert_allclose(np.asarray(out_full), np.asarray(ref),
                               rtol=2e-2, atol=2e-2)
    np.testing.assert_allclose(np.asarray(out_strip), np.asarray(ref),
                               rtol=2e-2, atol=2e-2)
    print("KERNEL_OK")
</pallas_src>

<mosaic_0001>
module attributes {stable_mosaic.version = 11 : i64} {
  func.func @bottleneck_kernel(%arg0: i32, %arg1: i32, %arg2: memref<1x16x16x16xbf16, #tpu.memory_space<vmem>>, %arg3: memref<16x4xbf16, #tpu.memory_space<vmem>>, %arg4: memref<36x4xbf16, #tpu.memory_space<vmem>>, %arg5: memref<4x16xbf16, #tpu.memory_space<vmem>>, %arg6: memref<1x4xf32, #tpu.memory_space<vmem>>, %arg7: memref<1x4xf32, #tpu.memory_space<vmem>>, %arg8: memref<1x16xf32, #tpu.memory_space<vmem>>, %arg9: memref<1x16x16x16xbf16, #tpu.memory_space<vmem>>, %arg10: memref<18x18x4xbf16, #tpu.memory_space<vmem>>, %arg11: memref<16x16x36xbf16, #tpu.memory_space<vmem>>) attributes {dimension_semantics = [#tpu.dimension_semantics<parallel>, #tpu.dimension_semantics<arbitrary>], iteration_bounds = array<i64: 2, 1>, scalar_prefetch = 0 : i64, scratch_operands = 2 : i64, tpu.core_type = #tpu.core_type<tc>, window_params = [{transform_indices = @transform_0, window_bounds = array<i64: 1, 16, 16, 16>}, {pipeline_mode = #tpu.pipeline_mode<synchronous>, transform_indices = @transform_1, window_bounds = array<i64: 16, 4>}, {pipeline_mode = #tpu.pipeline_mode<synchronous>, transform_indices = @transform_2, window_bounds = array<i64: 36, 4>}, {pipeline_mode = #tpu.pipeline_mode<synchronous>, transform_indices = @transform_3, window_bounds = array<i64: 4, 16>}, {pipeline_mode = #tpu.pipeline_mode<synchronous>, transform_indices = @transform_4, window_bounds = array<i64: 1, 4>}, {pipeline_mode = #tpu.pipeline_mode<synchronous>, transform_indices = @transform_5, window_bounds = array<i64: 1, 4>}, {pipeline_mode = #tpu.pipeline_mode<synchronous>, transform_indices = @transform_6, window_bounds = array<i64: 1, 16>}, {transform_indices = @transform_7, window_bounds = array<i64: 1, 16, 16, 16>}]} {
    %c16_i32 = arith.constant 16 : i32
    %0 = arith.muli %arg1, %c16_i32 : i32
    %1 = tpu.assume_multiple %0, 16 : i32
    %c0 = arith.constant 0 : index
    %c0_0 = arith.constant 0 : index
    %2 = vector.load %arg3[%c0, %c0_0] : memref<16x4xbf16, #tpu.memory_space<vmem>>, vector<16x4xbf16>
    %c0_1 = arith.constant 0 : index
    %c0_2 = arith.constant 0 : index
    %3 = vector.load %arg6[%c0_1, %c0_2] : memref<1x4xf32, #tpu.memory_space<vmem>>, vector<1x4xf32>
    %c0_i32 = arith.constant 0 : i32
    %4 = arith.cmpi eq, %arg1, %c0_i32 : i32
    %5 = arith.extui %4 : i1 to i32
    %c0_i32_3 = arith.constant 0 : i32
    %6 = arith.cmpi ne, %5, %c0_i32_3 : i32
    scf.if %6 {
      %cst_74 = arith.constant 0.000000e+00 : bf16
      %61 = vector.broadcast %cst_74 : bf16 to vector<18x1x4xbf16>
      %c0_75 = arith.constant 0 : index
      %c0_76 = arith.constant 0 : index
      %c0_77 = arith.constant 0 : index
      %62 = vector.load %arg10[%c0_75, %c0_76, %c0_77] : memref<18x18x4xbf16, #tpu.memory_space<vmem>>, vector<18x1x4xbf16>
      tpu.vector_store %arg10[%c0_75, %c0_76, %c0_77], %61 {strides = array<i32>} : memref<18x18x4xbf16, #tpu.memory_space<vmem>>, vector<18x1x4xbf16>,
      %c0_78 = arith.constant 0 : index
      %c17 = arith.constant 17 : index
      %c0_79 = arith.constant 0 : index
      %63 = vector.load %arg10[%c0_78, %c17, %c0_79] : memref<18x18x4xbf16, #tpu.memory_space<vmem>>, vector<18x1x4xbf16>
      tpu.vector_store %arg10[%c0_78, %c17, %c0_79], %61 {strides = array<i32>} : memref<18x18x4xbf16, #tpu.memory_space<vmem>>, vector<18x1x4xbf16>,
      %cst_80 = arith.constant 0.000000e+00 : bf16
      %64 = vector.broadcast %cst_80 : bf16 to vector<1x18x4xbf16>
      %c0_81 = arith.constant 0 : index
      %c0_82 = arith.constant 0 : index
      %c0_83 = arith.constant 0 : index
      %65 = vector.load %arg10[%c0_81, %c0_82, %c0_83] : memref<18x18x4xbf16, #tpu.memory_space<vmem>>, vector<1x18x4xbf16>
      tpu.vector_store %arg10[%c0_81, %c0_82, %c0_83], %64 {strides = array<i32>} : memref<18x18x4xbf16, #tpu.memory_space<vmem>>, vector<1x18x4xbf16>,
      %c17_84 = arith.constant 17 : index
      %c0_85 = arith.constant 0 : index
      %c0_86 = arith.constant 0 : index
      %66 = vector.load %arg10[%c17_84, %c0_85, %c0_86] : memref<18x18x4xbf16, #tpu.memory_space<vmem>>, vector<1x18x4xbf16>
      tpu.vector_store %arg10[%c17_84, %c0_85, %c0_86], %64 {strides = array<i32>} : memref<18x18x4xbf16, #tpu.memory_space<vmem>>, vector<1x18x4xbf16>,
    } else {
    }
    %c0_4 = arith.constant 0 : index
    %7 = arith.index_cast %1 : i32 to index
    %c0_5 = arith.constant 0 : index
    %c0_6 = arith.constant 0 : index
    %8 = vector.load %arg2[%c0_4, %7, %c0_5, %c0_6] : memref<1x16x16x16xbf16, #tpu.memory_space<vmem>>, vector<1x16x16x16xbf16>
    %9 = vector.shape_cast %8 : vector<1x16x16x16xbf16> to vector<16x16x16xbf16>
    %10 = vector.shape_cast %9 : vector<16x16x16xbf16> to vector<256x16xbf16>
    %cst = arith.constant dense<0.000000e+00> : vector<256x4xf32>
    %11 = tpu.matmul %10, %2, %cst {dimension_numbers = #tpu.dot_dimension_numbers<[1], [0], [0], [1], [0, 0, 1, 1], [], []>} : vector<256x16xbf16>, vector<16x4xbf16>, vector<256x4xf32> -> vector<256x4xf32>
    %12 = vector.broadcast %3 : vector<1x4xf32> to vector<256x4xf32>
    %13 = arith.addf %11, %12 : vector<256x4xf32>
    %cst_7 = arith.constant 0.000000e+00 : f32
    %14 = vector.broadcast %cst_7 : f32 to vector<256x4xf32>
    %15 = arith.maximumf %13, %14 : vector<256x4xf32>
    %16 = vector.shape_cast %15 : vector<256x4xf32> to vector<16x16x4xf32>
    %17 = arith.truncf %16 : vector<16x16x4xf32> to vector<16x16x4xbf16>
    %c1 = arith.constant 1 : index
    %c1_8 = arith.constant 1 : index
    %c0_9 = arith.constant 0 : index
    %18 = vector.load %arg10[%c1, %c1_8, %c0_9] : memref<18x18x4xbf16, #tpu.memory_space<vmem>>, vector<16x16x4xbf16>
    tpu.vector_store %arg10[%c1, %c1_8, %c0_9], %17 {strides = array<i32>} : memref<18x18x4xbf16, #tpu.memory_space<vmem>>, vector<16x16x4xbf16>,
    %c0_10 = arith.constant 0 : index
    %c0_11 = arith.constant 0 : index
    %c0_12 = arith.constant 0 : index
    %19 = vector.load %arg10[%c0_10, %c0_11, %c0_12] : memref<18x18x4xbf16, #tpu.memory_space<vmem>>, vector<16x16x4xbf16>
    %c0_13 = arith.constant 0 : index
    %c0_14 = arith.constant 0 : index
    %c0_15 = arith.constant 0 : index
    %20 = vector.load %arg11[%c0_13, %c0_14, %c0_15] : memref<16x16x36xbf16, #tpu.memory_space<vmem>>, vector<16x16x4xbf16>
    tpu.vector_store %arg11[%c0_13, %c0_14, %c0_15], %19 {strides = array<i32>} : memref<16x16x36xbf16, #tpu.memory_space<vmem>>, vector<16x16x4xbf16>,
    %c0_16 = arith.constant 0 : index
    %c1_17 = arith.constant 1 : index
    %c0_18 = arith.constant 0 : index
    %21 = vector.load %arg10[%c0_16, %c1_17, %c0_18] : memref<18x18x4xbf16, #tpu.memory_space<vmem>>, vector<16x16x4xbf16>
    %c0_19 = arith.constant 0 : index
    %c0_20 = arith.constant 0 : index
    %c4 = arith.constant 4 : index
    %22 = vector.load %arg11[%c0_19, %c0_20, %c4] : memref<16x16x36xbf16, #tpu.memory_space<vmem>>, vector<16x16x4xbf16>
    tpu.vector_store %arg11[%c0_19, %c0_20, %c4], %21 {strides = array<i32>} : memref<16x16x36xbf16, #tpu.memory_space<vmem>>, vector<16x16x4xbf16>,
    %c0_21 = arith.constant 0 : index
    %c2 = arith.constant 2 : index
    %c0_22 = arith.constant 0 : index
    %23 = vector.load %arg10[%c0_21, %c2, %c0_22] : memref<18x18x4xbf16, #tpu.memory_space<vmem>>, vector<16x16x4xbf16>
    %c0_23 = arith.constant 0 : index
    %c0_24 = arith.constant 0 : index
    %c8 = arith.constant 8 : index
    %24 = vector.load %arg11[%c0_23, %c0_24, %c8] : memref<16x16x36xbf16, #tpu.memory_space<vmem>>, vector<16x16x4xbf16>
    tpu.vector_store %arg11[%c0_23, %c0_24, %c8], %23 {strides = array<i32>} : memref<16x16x36xbf16, #tpu.memory_space<vmem>>, vector<16x16x4xbf16>,
    %c1_25 = arith.constant 1 : index
    %c0_26 = arith.constant 0 : index
    %c0_27 = arith.constant 0 : index
    %25 = vector.load %arg10[%c1_25, %c0_26, %c0_27] : memref<18x18x4xbf16, #tpu.memory_space<vmem>>, vector<16x16x4xbf16>
    %c0_28 = arith.constant 0 : index
    %c0_29 = arith.constant 0 : index
    %c12 = arith.constant 12 : index
    %26 = vector.load %arg11[%c0_28, %c0_29, %c12] : memref<16x16x36xbf16, #tpu.memory_space<vmem>>, vector<16x16x4xbf16>
    tpu.vector_store %arg11[%c0_28, %c0_29, %c12], %25 {strides = array<i32>} : memref<16x16x36xbf16, #tpu.memory_space<vmem>>, vector<16x16x4xbf16>,
    %c1_30 = arith.constant 1 : index
    %c1_31 = arith.constant 1 : index
    %c0_32 = arith.constant 0 : index
    %27 = vector.load %arg10[%c1_30, %c1_31, %c0_32] : memref<18x18x4xbf16, #tpu.memory_space<vmem>>, vector<16x16x4xbf16>
    %c0_33 = arith.constant 0 : index
    %c0_34 = arith.constant 0 : index
    %c16 = arith.constant 16 : index
    %28 = vector.load %arg11[%c0_33, %c0_34, %c16] : memref<16x16x36xbf16, #tpu.memory_space<vmem>>, vector<16x16x4xbf16>
    tpu.vector_store %arg11[%c0_33, %c0_34, %c16], %27 {strides = array<i32>} : memref<16x16x36xbf16, #tpu.memory_space<vmem>>, vector<16x16x4xbf16>,
    %c1_35 = arith.constant 1 : index
    %c2_36 = arith.constant 2 : index
    %c0_37 = arith.constant 0 : index
    %29 = vector.load %arg10[%c1_35, %c2_36, %c0_37] : memref<18x18x4xbf16, #tpu.memory_space<vmem>>, vector<16x16x4xbf16>
    %c0_38 = arith.constant 0 : index
    %c0_39 = arith.constant 0 : index
    %c20 = arith.constant 20 : index
    %30 = vector.load %arg11[%c0_38, %c0_39, %c20] : memref<16x16x36xbf16, #tpu.memory_space<vmem>>, vector<16x16x4xbf16>
    tpu.vector_store %arg11[%c0_38, %c0_39, %c20], %29 {strides = array<i32>} : memref<16x16x36xbf16, #tpu.memory_space<vmem>>, vector<16x16x4xbf16>,
    %c2_40 = arith.constant 2 : index
    %c0_41 = arith.constant 0 : index
    %c0_42 = arith.constant 0 : index
    %31 = vector.load %arg10[%c2_40, %c0_41, %c0_42] : memref<18x18x4xbf16, #tpu.memory_space<vmem>>, vector<16x16x4xbf16>
    %c0_43 = arith.constant 0 : index
    %c0_44 = arith.constant 0 : index
    %c24 = arith.constant 24 : index
    %32 = vector.load %arg11[%c0_43, %c0_44, %c24] : memref<16x16x36xbf16, #tpu.memory_space<vmem>>, vector<16x16x4xbf16>
    tpu.vector_store %arg11[%c0_43, %c0_44, %c24], %31 {strides = array<i32>} : memref<16x16x36xbf16, #tpu.memory_space<vmem>>, vector<16x16x4xbf16>,
    %c2_45 = arith.constant 2 : index
    %c1_46 = arith.constant 1 : index
    %c0_47 = arith.constant 0 : index
    %33 = vector.load %arg10[%c2_45, %c1_46, %c0_47] : memref<18x18x4xbf16, #tpu.memory_space<vmem>>, vector<16x16x4xbf16>
    %c0_48 = arith.constant 0 : index
    %c0_49 = arith.constant 0 : index
    %c28 = arith.constant 28 : index
    %34 = vector.load %arg11[%c0_48, %c0_49, %c28] : memref<16x16x36xbf16, #tpu.memory_space<vmem>>, vector<16x16x4xbf16>
    tpu.vector_store %arg11[%c0_48, %c0_49, %c28], %33 {strides = array<i32>} : memref<16x16x36xbf16, #tpu.memory_space<vmem>>, vector<16x16x4xbf16>,
    %c2_50 = arith.constant 2 : index
    %c2_51 = arith.constant 2 : index
    %c0_52 = arith.constant 0 : index
    %35 = vector.load %arg10[%c2_50, %c2_51, %c0_52] : memref<18x18x4xbf16, #tpu.memory_space<vmem>>, vector<16x16x4xbf16>
    %c0_53 = arith.constant 0 : index
    %c0_54 = arith.constant 0 : index
    %c32 = arith.constant 32 : index
    %36 = vector.load %arg11[%c0_53, %c0_54, %c32] : memref<16x16x36xbf16, #tpu.memory_space<vmem>>, vector<16x16x4xbf16>
    tpu.vector_store %arg11[%c0_53, %c0_54, %c32], %35 {strides = array<i32>} : memref<16x16x36xbf16, #tpu.memory_space<vmem>>, vector<16x16x4xbf16>,
    %c0_55 = arith.constant 0 : index
    %c0_56 = arith.constant 0 : index
    %c0_57 = arith.constant 0 : index
    %37 = vector.load %arg11[%c0_55, %c0_56, %c0_57] : memref<16x16x36xbf16, #tpu.memory_space<vmem>>, vector<16x16x36xbf16>
    %38 = vector.shape_cast %37 : vector<16x16x36xbf16> to vector<256x36xbf16>
    %c0_58 = arith.constant 0 : index
    %c0_59 = arith.constant 0 : index
    %39 = vector.load %arg4[%c0_58, %c0_59] : memref<36x4xbf16, #tpu.memory_space<vmem>>, vector<36x4xbf16>
    %cst_60 = arith.constant dense<0.000000e+00> : vector<256x4xf32>
    %40 = tpu.matmul %38, %39, %cst_60 {dimension_numbers = #tpu.dot_dimension_numbers<[1], [0], [0], [1], [0, 0, 1, 1], [], []>} : vector<256x36xbf16>, vector<36x4xbf16>, vector<256x4xf32> -> vector<256x4xf32>
    %c0_61 = arith.constant 0 : index
    %c0_62 = arith.constant 0 : index
    %41 = vector.load %arg7[%c0_61, %c0_62] : memref<1x4xf32, #tpu.memory_space<vmem>>, vector<1x4xf32>
    %42 = vector.broadcast %41 : vector<1x4xf32> to vector<256x4xf32>
    %43 = arith.addf %40, %42 : vector<256x4xf32>
    %cst_63 = arith.constant 0.000000e+00 : f32
    %44 = vector.broadcast %cst_63 : f32 to vector<256x4xf32>
    %45 = arith.maximumf %43, %44 : vector<256x4xf32>
    %46 = arith.truncf %45 : vector<256x4xf32> to vector<256x4xbf16>
    %c0_64 = arith.constant 0 : index
    %c0_65 = arith.constant 0 : index
    %47 = vector.load %arg5[%c0_64, %c0_65] : memref<4x16xbf16, #tpu.memory_space<vmem>>, vector<4x16xbf16>
    %cst_66 = arith.constant dense<0.000000e+00> : vector<256x16xf32>
    %48 = tpu.matmul %46, %47, %cst_66 {dimension_numbers = #tpu.dot_dimension_numbers<[1], [0], [0], [1], [0, 0, 1, 1], [], []>} : vector<256x4xbf16>, vector<4x16xbf16>, vector<256x16xf32> -> vector<256x16xf32>
    %c0_67 = arith.constant 0 : index
    %c0_68 = arith.constant 0 : index
    %49 = vector.load %arg8[%c0_67, %c0_68] : memref<1x16xf32, #tpu.memory_space<vmem>>, vector<1x16xf32>
    %50 = vector.broadcast %49 : vector<1x16xf32> to vector<256x16xf32>
    %51 = arith.addf %48, %50 : vector<256x16xf32>
    %52 = arith.extf %10 : vector<256x16xbf16> to vector<256x16xf32>
    %53 = arith.addf %51, %52 : vector<256x16xf32>
    %cst_69 = arith.constant 0.000000e+00 : f32
    %54 = vector.broadcast %cst_69 : f32 to vector<256x16xf32>
    %55 = arith.maximumf %53, %54 : vector<256x16xf32>
    %56 = vector.shape_cast %55 : vector<256x16xf32> to vector<16x16x16xf32>
    %57 = arith.truncf %56 : vector<16x16x16xf32> to vector<16x16x16xbf16>
    %c0_70 = arith.constant 0 : index
    %c0_71 = arith.constant 0 : index
    %c0_72 = arith.constant 0 : index
    %c0_73 = arith.constant 0 : index
    %58 = vector.load %arg9[%c0_70, %c0_71, %c0_72, %c0_73] : memref<1x16x16x16xbf16, #tpu.memory_space<vmem>>, vector<1x16x16x16xbf16>
    %59 = vector.shape_cast %58 : vector<1x16x16x16xbf16> to vector<16x16x16xbf16>
    %60 = vector.shape_cast %57 : vector<16x16x16xbf16> to vector<1x16x16x16xbf16>
    tpu.vector_store %arg9[%c0_70, %c0_71, %c0_72, %c0_73], %60 {strides = array<i32>} : memref<1x16x16x16xbf16, #tpu.memory_space<vmem>>, vector<1x16x16x16xbf16>,
    return
  }
  func.func @transform_0(%arg0: i32, %arg1: i32) -> (i32, i32, i32, i32) {
    %c0_i32 = arith.constant 0 : i32
    %c0_i32_0 = arith.constant 0 : i32
    %c0_i32_1 = arith.constant 0 : i32
    %c0_i32_2 = arith.constant 0 : i32
    return %arg0, %c0_i32, %c0_i32_0, %c0_i32_1 : i32, i32, i32, i32
  }
  func.func @transform_1(%arg0: i32, %arg1: i32) -> (i32, i32) {
    %c0_i32 = arith.constant 0 : i32
    %c0_i32_0 = arith.constant 0 : i32
    %c0_i32_1 = arith.constant 0 : i32
    return %c0_i32, %c0_i32_0 : i32, i32
  }
  func.func @transform_2(%arg0: i32, %arg1: i32) -> (i32, i32) {
    %c0_i32 = arith.constant 0 : i32
    %c0_i32_0 = arith.constant 0 : i32
    %c0_i32_1 = arith.constant 0 : i32
    return %c0_i32, %c0_i32_0 : i32, i32
  }
  func.func @transform_3(%arg0: i32, %arg1: i32) -> (i32, i32) {
    %c0_i32 = arith.constant 0 : i32
    %c0_i32_0 = arith.constant 0 : i32
    %c0_i32_1 = arith.constant 0 : i32
    return %c0_i32, %c0_i32_0 : i32, i32
  }
  func.func @transform_4(%arg0: i32, %arg1: i32) -> (i32, i32) {
    %c0_i32 = arith.constant 0 : i32
    %c0_i32_0 = arith.constant 0 : i32
    %c0_i32_1 = arith.constant 0 : i32
    return %c0_i32, %c0_i32_0 : i32, i32
  }
  func.func @transform_5(%arg0: i32, %arg1: i32) -> (i32, i32) {
    %c0_i32 = arith.constant 0 : i32
    %c0_i32_0 = arith.constant 0 : i32
    %c0_i32_1 = arith.constant 0 : i32
    return %c0_i32, %c0_i32_0 : i32, i32
  }
  func.func @transform_6(%arg0: i32, %arg1: i32) -> (i32, i32) {
    %c0_i32 = arith.constant 0 : i32
    %c0_i32_0 = arith.constant 0 : i32
    %c0_i32_1 = arith.constant 0 : i32
    return %c0_i32, %c0_i32_0 : i32, i32
  }
  func.func @transform_7(%arg0: i32, %arg1: i32) -> (i32, i32, i32, i32) {
    %c0_i32 = arith.constant 0 : i32
    %c0_i32_0 = arith.constant 0 : i32
    %c0_i32_1 = arith.constant 0 : i32
    return %arg0, %arg1, %c0_i32, %c0_i32_0 : i32, i32, i32, i32
  }
}

</mosaic_0001>

<llo_original>
// kernel: tpu_custom_call.1
$region0: #{tpu_custom_call.1}
  #allocation0 [shape = 'u32[]', space=smem, size = 0x4, offset = 0x4, fixed_abs, tag = 'smem constant byte address 0x4 - core index']
  #allocation1 [shape = 'u32[144,128]{1,0:T(1,128)}', space=vmem, size = 0x12000, scoped, tag = 'internal scratch']
  #allocation2 [shape = 'bf16[18,18,4]{2,1,0:T(8,128)(2,1)}', space=vmem, size = 0x1b000, scoped, tag = 'scratch operand']
  #allocation3 [shape = 'bf16[16,16,36]{2,1,0:T(16,128)(2,1)}', space=vmem, size = 0x10000, scoped, tag = 'scratch operand']
  %s0 = inlined_call_operand.hbm [shape: bf16[2,16,16,16], index: 0, kind: input, shape index: {}]
  %s1 = inlined_call_operand.vmem [shape: bf16[16,4], index: 1, kind: input, shape index: {}]
  %s2 = inlined_call_operand.vmem [shape: bf16[36,4], index: 2, kind: input, shape index: {}]
  %s3 = inlined_call_operand.vmem [shape: bf16[4,16], index: 3, kind: input, shape index: {}]
  %s4 = inlined_call_operand.vmem [shape: f32[1,4], index: 4, kind: input, shape index: {}]
  %s5 = inlined_call_operand.vmem [shape: f32[1,4], index: 5, kind: input, shape index: {}]
  %s6 = inlined_call_operand.vmem [shape: f32[1,16], index: 6, kind: input, shape index: {}]
  %s7 = inlined_call_operand.hbm [shape: bf16[2,16,16,16], index: 7, kind: output, shape index: {}]
  %s8 = sld [smem:[#allocation0]]
  $region69: #{tpu_custom_call.1} parent=0
    _
  %s10 = ssub.s32 1, %s8
  %s11 = scalar_select 0, %s10, %s8
  $region1: #{tpu_custom_call.1} parent=0
    #allocation4 [shape = 'u8[131072]{0}', space=vmem, size = 0x20000, scoped, tag = 'input window, operand 0']
    #allocation5 [shape = 's32[2]{0}', space=sflag, size = 0x8, scoped, tag = 'scoped memory for tpu_custom_call.1']
    #allocation6 [shape = 's32[2]{0}', space=sflag, size = 0x8, scoped, tag = 'scoped memory for tpu_custom_call.1']
    #allocation7 [shape = 'u8[131072]{0}', space=vmem, size = 0x20000, scoped, tag = 'output window, operand 0']
    %12 = vsyncpa [#allocation5], 0
    %s13 = scalar_lea.sflag [#allocation5], 1
    %14 = vsyncpa %s13, 0
    %15 = vsyncpa [#allocation6], 0
    %s16 = scalar_lea.sflag [#allocation6], 1
    %17 = vsyncpa %s16, 0
    loop: start=0, step=1, limit=4
    $region2: #{tpu_custom_call.1} parent=1 // loop_pre_header
      _
    $region3: #{tpu_custom_call.1} parent=1 // loop_header
      %s19 = sphi 0, %s23
      %p20 = scmp.ge.s32.totalorder %s19, 4
      %s26 = sphi 0, %s38
      %s27 = sphi 0, %s34
      %s28 = sphi 0, %s26
      %s29 = sphi 0, %s27
      %s30 = sphi 0, %s28
      %s31 = sphi 0, %s29
      %s41 = sphi 0, %s43
      %s44 = sphi 0, %s41
      %s45 = sphi 0, %s44
      %s61 = sphi 0, %s45
      %s65 = sphi 0, %s65
      %s67 = sphi 0, %s65
      %s68 = sphi 0, %s67
      %s82 = sphi 0, %s68
      %s86 = sphi 0, %s86
      %s88 = sphi 0, %s86
      %s89 = sphi 0, %s88
      %s103 = sphi 0, %s89
      %s107 = sphi 0, %s107
      %s109 = sphi 0, %s107
      %s110 = sphi 0, %s109
      %s124 = sphi 0, %s110
      %s128 = sphi 0, %s128
      %s130 = sphi 0, %s128
      %s131 = sphi 0, %s130
      %s145 = sphi 0, %s131
      %s149 = sphi 0, %s149
      %s151 = sphi 0, %s149
      %s152 = sphi 0, %s151
      %s166 = sphi 0, %s152
      %s170 = sphi 0, %s170
      %s172 = sphi 0, %s170
      %s173 = sphi 0, %s172
      %s187 = sphi 0, %s173
      %s195 = sphi 0, %s197
      %s198 = sphi 0, %s195
      %s199 = sphi 0, %s198
      %s215 = sphi 0, %s199
    $region4: #{tpu_custom_call.1} parent=1 // loop_header_branch
      %22 = sbr.rel (%p20) target = $region8
    $region5: #{tpu_custom_call.1} parent=1 // loop_body
      %s24 = ssub.s32 %s19, 1
      %s25 = ssub.s32 %s19, 2
      %s32 = sadd.s32 1, %s27
      %p33 = scmp.ge.s32.totalorder %s32, 1
      %s34 = scalar_select %p33, 0, %s32
      %s35 = sadd.s32 1, %s26
      %s36 = scalar_select %p33, %s35, %s26
      %p37 = scmp.ge.s32.totalorder %s36, 2
      %s38 = scalar_select %p37, 0, %s36
      %s39 = ssub.s32 %s26, %s38
      %p40 = scmp.eq.s32.totalorder %s39, 0
      %s42 = sadd.s32 %s41, 1
      %s43 = scalar_select %p40, %s41, %s42
      %p46 = pneg %p40
      %p47 = scmp.eq.s32.totalorder %s19, 1
      %p48 = por %p46, %p47
      %p49 = scmp.ne.s32.totalorder %s41, %s44
      %p50 = scmp.eq.s32.totalorder %s19, 0
      %p51 = por %p49, %p50
      %p52 = scmp.ne.s32.totalorder %s41, %s44
      %p53 = scmp.eq.s32.totalorder %s24, 1
      %p54 = por %p52, %p53
      %p55 = scmp.ne.s32.totalorder %s44, %s45
      %p56 = scmp.eq.s32.totalorder %s24, 0
      %p57 = por %p55, %p56
      %p58 = scmp.ne.s32.totalorder %s44, %s45
      %p59 = scmp.eq.s32.totalorder %s25, 1
      %p60 = por %p58, %p59
      %p62 = scmp.ne.s32.totalorder %s45, %s61
      %p63 = scmp.eq.s32.totalorder %s25, 0
      %p64 = por %p62, %p63
      %s66 = sadd.s32 %s65, 1
      %p69 = scmp.eq.s32.totalorder %s19, 1
      %p70 = scmp.ne.s32.totalorder %s65, %s67
      %p71 = scmp.eq.s32.totalorder %s19, 0
      %p72 = por %p70, %p71
      %p73 = scmp.ne.s32.totalorder %s65, %s67
      %p74 = scmp.eq.s32.totalorder %s24, 1
      %p75 = por %p73, %p74
      %p76 = scmp.ne.s32.totalorder %s67, %s68
      %p77 = scmp.eq.s32.totalorder %s24, 0
      %p78 = por %p76, %p77
      %p79 = scmp.ne.s32.totalorder %s67, %s68
      %p80 = scmp.eq.s32.totalorder %s25, 1
      %p81 = por %p79, %p80
      %p83 = scmp.ne.s32.totalorder %s68, %s82
      %p84 = scmp.eq.s32.totalorder %s25, 0
      %p85 = por %p83, %p84
      %s87 = sadd.s32 %s86, 1
      %p90 = scmp.eq.s32.totalorder %s19, 1
      %p91 = scmp.ne.s32.totalorder %s86, %s88
      %p92 = scmp.eq.s32.totalorder %s19, 0
      %p93 = por %p91, %p92
      %p94 = scmp.ne.s32.totalorder %s86, %s88
      %p95 = scmp.eq.s32.totalorder %s24, 1
      %p96 = por %p94, %p95
      %p97 = scmp.ne.s32.totalorder %s88, %s89
      %p98 = scmp.eq.s32.totalorder %s24, 0
      %p99 = por %p97, %p98
      %p100 = scmp.ne.s32.totalorder %s88, %s89
      %p101 = scmp.eq.s32.totalorder %s25, 1
      %p102 = por %p100, %p101
      %p104 = scmp.ne.s32.totalorder %s89, %s103
      %p105 = scmp.eq.s32.totalorder %s25, 0
      %p106 = por %p104, %p105
      %s108 = sadd.s32 %s107, 1
      %p111 = scmp.eq.s32.totalorder %s19, 1
      %p112 = scmp.ne.s32.totalorder %s107, %s109
      %p113 = scmp.eq.s32.totalorder %s19, 0
      %p114 = por %p112, %p113
      %p115 = scmp.ne.s32.totalorder %s107, %s109
      %p116 = scmp.eq.s32.totalorder %s24, 1
      %p117 = por %p115, %p116
      %p118 = scmp.ne.s32.totalorder %s109, %s110
      %p119 = scmp.eq.s32.totalorder %s24, 0
      %p120 = por %p118, %p119
      %p121 = scmp.ne.s32.totalorder %s109, %s110
      %p122 = scmp.eq.s32.totalorder %s25, 1
      %p123 = por %p121, %p122
      %p125 = scmp.ne.s32.totalorder %s110, %s124
      %p126 = scmp.eq.s32.totalorder %s25, 0
      %p127 = por %p125, %p126
      %s129 = sadd.s32 %s128, 1
      %p132 = scmp.eq.s32.totalorder %s19, 1
      %p133 = scmp.ne.s32.totalorder %s128, %s130
      %p134 = scmp.eq.s32.totalorder %s19, 0
      %p135 = por %p133, %p134
      %p136 = scmp.ne.s32.totalorder %s128, %s130
      %p137 = scmp.eq.s32.totalorder %s24, 1
      %p138 = por %p136, %p137
      %p139 = scmp.ne.s32.totalorder %s130, %s131
      %p140 = scmp.eq.s32.totalorder %s24, 0
      %p141 = por %p139, %p140
      %p142 = scmp.ne.s32.totalorder %s130, %s131
      %p143 = scmp.eq.s32.totalorder %s25, 1
      %p144 = por %p142, %p143
      %p146 = scmp.ne.s32.totalorder %s131, %s145
      %p147 = scmp.eq.s32.totalorder %s25, 0
      %p148 = por %p146, %p147
      %s150 = sadd.s32 %s149, 1
      %p153 = scmp.eq.s32.totalorder %s19, 1
      %p154 = scmp.ne.s32.totalorder %s149, %s151
      %p155 = scmp.eq.s32.totalorder %s19, 0
      %p156 = por %p154, %p155
      %p157 = scmp.ne.s32.totalorder %s149, %s151
      %p158 = scmp.eq.s32.totalorder %s24, 1
      %p159 = por %p157, %p158
      %p160 = scmp.ne.s32.totalorder %s151, %s152
      %p161 = scmp.eq.s32.totalorder %s24, 0
      %p162 = por %p160, %p161
      %p163 = scmp.ne.s32.totalorder %s151, %s152
      %p164 = scmp.eq.s32.totalorder %s25, 1
      %p165 = por %p163, %p164
      %p167 = scmp.ne.s32.totalorder %s152, %s166
      %p168 = scmp.eq.s32.totalorder %s25, 0
      %p169 = por %p167, %p168
      %s171 = sadd.s32 %s170, 1
      %p174 = scmp.eq.s32.totalorder %s19, 1
      %p175 = scmp.ne.s32.totalorder %s170, %s172
      %p176 = scmp.eq.s32.totalorder %s19, 0
      %p177 = por %p175, %p176
      %p178 = scmp.ne.s32.totalorder %s170, %s172
      %p179 = scmp.eq.s32.totalorder %s24, 1
      %p180 = por %p178, %p179
      %p181 = scmp.ne.s32.totalorder %s172, %s173
      %p182 = scmp.eq.s32.totalorder %s24, 0
      %p183 = por %p181, %p182
      %p184 = scmp.ne.s32.totalorder %s172, %s173
      %p185 = scmp.eq.s32.totalorder %s25, 1
      %p186 = por %p184, %p185
      %p188 = scmp.ne.s32.totalorder %s173, %s187
      %p189 = scmp.eq.s32.totalorder %s25, 0
      %p190 = por %p188, %p189
      %s191 = ssub.s32 %s26, %s38
      %s192 = ssub.s32 %s27, %s34
      %s193 = sor.u32 %s191, %s192
      %p194 = scmp.eq.s32.totalorder %s193, 0
      %s196 = sadd.s32 %s195, 1
      %s197 = scalar_select %p194, %s195, %s196
      %p200 = pneg %p194
      %p201 = scmp.eq.s32.totalorder %s19, 1
      %p202 = por %p200, %p201
      %p203 = scmp.ne.s32.totalorder %s195, %s198
      %p204 = scmp.eq.s32.totalorder %s19, 0
      %p205 = por %p203, %p204
      %p206 = scmp.ne.s32.totalorder %s195, %s198
      %p207 = scmp.eq.s32.totalorder %s24, 1
      %p208 = por %p206, %p207
      %p209 = scmp.ne.s32.totalorder %s198, %s199
      %p210 = scmp.eq.s32.totalorder %s24, 0
      %p211 = por %p209, %p210
      %p212 = scmp.ne.s32.totalorder %s198, %s199
      %p213 = scmp.eq.s32.totalorder %s25, 1
      %p214 = por %p212, %p213
      %p216 = scmp.ne.s32.totalorder %s199, %s215
      %p217 = scmp.eq.s32.totalorder %s25, 0
      %p218 = por %p216, %p217
      %p219 = scmp.le.s32.totalorder 1, %s19
      %p220 = scmp.lt.s32.totalorder %s19, 3
      %p221 = pnand %p219, %p220
      %p222 = pneg %p221
      // Predicated region
      $region9: #{tpu_custom_call.1} parent=5 // pred_check
        _
      $region10: #{tpu_custom_call.1} parent=5 // pred_check_branch
        %224 = sbr.rel (%p221) target = $region12
      $region11: #{tpu_custom_call.1} parent=5 // pred_region
        %s225 = ssub.s32 %s19, 1
        // Predicated region
        $region13: #{tpu_custom_call.1} parent=11 // pred_check
          %p226 = pneg %p78
        $region14: #{tpu_custom_call.1} parent=11 // pred_check_branch
          %228 = sbr.rel (%p226) target = $region16
        $region15: #{tpu_custom_call.1} parent=11 // pred_region
          _
        $region16: #{tpu_custom_call.1} parent=11 // pred_fallthru
          _
        // Predicated region
        $region17: #{tpu_custom_call.1} parent=11 // pred_check
          %p229 = pneg %p99
        $region18: #{tpu_custom_call.1} parent=11 // pred_check_branch
          %231 = sbr.rel (%p229) target = $region20
        $region19: #{tpu_custom_call.1} parent=11 // pred_region
          _
        $region20: #{tpu_custom_call.1} parent=11 // pred_fallthru
          _
        // Predicated region
        $region21: #{tpu_custom_call.1} parent=11 // pred_check
          %p232 = pneg %p120
        $region22: #{tpu_custom_call.1} parent=11 // pred_check_branch
          %234 = sbr.rel (%p232) target = $region24
        $region23: #{tpu_custom_call.1} parent=11 // pred_region
          _
        $region24: #{tpu_custom_call.1} parent=11 // pred_fallthru
          _
        // Predicated region
        $region25: #{tpu_custom_call.1} parent=11 // pred_check
          %p235 = pneg %p141
        $region26: #{tpu_custom_call.1} parent=11 // pred_check_branch
          %237 = sbr.rel (%p235) target = $region28
        $region27: #{tpu_custom_call.1} parent=11 // pred_region
          _
        $region28: #{tpu_custom_call.1} parent=11 // pred_fallthru
          _
        // Predicated region
        $region29: #{tpu_custom_call.1} parent=11 // pred_check
          %p238 = pneg %p162
        $region30: #{tpu_custom_call.1} parent=11 // pred_check_branch
          %240 = sbr.rel (%p238) target = $region32
        $region31: #{tpu_custom_call.1} parent=11 // pred_region
          _
        $region32: #{tpu_custom_call.1} parent=11 // pred_fallthru
          _
        // Predicated region
        $region33: #{tpu_custom_call.1} parent=11 // pred_check
          %p241 = pneg %p183
        $region34: #{tpu_custom_call.1} parent=11 // pred_check_branch
          %243 = sbr.rel (%p241) target = $region36
        $region35: #{tpu_custom_call.1} parent=11 // pred_region
          _
        $region36: #{tpu_custom_call.1} parent=11 // pred_fallthru
          _
      $region12: #{tpu_custom_call.1} parent=5 // pred_fallthru
        _
      %p244 = scmp.lt.s32.totalorder %s19, 2
      // Predicated region
      $region37: #{tpu_custom_call.1} parent=5 // pred_check
        %p245 = pneg %p244
      $region38: #{tpu_custom_call.1} parent=5 // pred_check_branch
        %247 = sbr.rel (%p245) target = $region40
      $region39: #{tpu_custom_call.1} parent=5 // pred_region
        // Predicated region
        $region41: #{tpu_custom_call.1} parent=39 // pred_check
          %p248 = pneg %p51
        $region42: #{tpu_custom_call.1} parent=39 // pred_check_branch
          %250 = sbr.rel (%p248) target = $region44
        $region43: #{tpu_custom_call.1} parent=39 // pred_region
          %s251 = sand.u32 %s41, 1
          %s252 = scalar_lea.sflag [#allocation5], %s251
          %s253 = sand.u32 %s41, 1
          %s254 = smul.addr %s253, 128
          %s255 = scalar_lea.vmem [#allocation4], %s254
          %s257 = ssub.s32 2048, 2048
          %258 = vsyncadd %s252, %s257
          %s259 = smul.addr %s26, 32
          %s260 = smul.addr %s259, 64
          %s261 = scalar_lea.hbm %s0, %s260
          %s262 = sshll.u32 %s255, 4
          %s263 = int_to_ptr.vmem [resolvable:$true] %s262
          %268 = dma.hbm_to_vmem [thread:$0]  %s261, 2048, %s263, %s252, 64, 64, 4
        $region44: #{tpu_custom_call.1} parent=39 // pred_fallthru
          _
      $region40: #{tpu_custom_call.1} parent=5 // pred_fallthru
        _
      %p269 = scmp.le.s32.totalorder 1, %s19
      %p270 = scmp.lt.s32.totalorder %s19, 3
      %p271 = pnand %p269, %p270
      %p272 = pneg %p271
      // Predicated region
      $region45: #{tpu_custom_call.1} parent=5 // pred_check
        _
      $region46: #{tpu_custom_call.1} parent=5 // pred_check_branch
        %274 = sbr.rel (%p271) target = $region48
      $region47: #{tpu_custom_call.1} parent=5 // pred_region
        %s275 = ssub.s32 %s19, 1
        %s276 = sand.u32 %s44, 1
        %s277 = scalar_lea.sflag [#allocation5], %s276
        %s278 = sand.u32 %s44, 1
        %s279 = smul.addr %s278, 128
        %s280 = scalar_lea.vmem [#allocation4], %s279
        // Predicated region
        $region49: #{tpu_custom_call.1} parent=47 // pred_check
          %p281 = pneg %p57
        $region50: #{tpu_custom_call.1} parent=47 // pred_check_branch
          %283 = sbr.rel (%p281) target = $region52
        $region51: #{tpu_custom_call.1} parent=47 // pred_region
          %284 = dma.done %s277, 2048
        $region52: #{tpu_custom_call.1} parent=47 // pred_fallthru
          _
        %s285 = sand.u32 %s44, 1
        %s286 = scalar_lea.sflag [#allocation5], %s285
        %s287 = sand.u32 %s44, 1
        %s288 = smul.addr %s287, 128
        %s289 = scalar_lea.vmem [#allocation4], %s288
        %p290 = pneg %p57
        %p291 = pneg %p54
        %p292 = pneg %p78
        %p293 = pneg %p75
        %p294 = pneg %p99
        %p295 = pneg %p96
        %p296 = pneg %p120
        %p297 = pneg %p117
        %p298 = pneg %p141
        %p299 = pneg %p138
        %p300 = pneg %p162
        %p301 = pneg %p159
        %p302 = pneg %p183
        %p303 = pneg %p180
        %p304 = pneg %p211
        %p305 = pneg %p208
        %s306 = sand.u32 %s198, 1
        %s307 = scalar_lea.sflag [#allocation6], %s306
        %s308 = sand.u32 %s198, 1
        %s309 = smul.addr %s308, 128
        %s310 = scalar_lea.vmem [#allocation7], %s309
        %s311 = smul.u32 16, %s29
        %s313 = smul.u32 %s29, 16
        %v314 = vld [vmem:[%s1] sm:$0xf]
        %v315 = vld [vmem:[%s1 + $0x4] sm:$0xf]
        %v316 = vld [vmem:[%s4] sm:$0x1]
        %p317 = scmp.eq.s32.totalorder %s29, 0
        // Predicated region
        $region53: #{tpu_custom_call.1} parent=47 // pred_check
          %p318 = pneg %p317
        $region54: #{tpu_custom_call.1} parent=47 // pred_check_branch
          %320 = sbr.rel (%p318) target = $region56
        $region55: #{tpu_custom_call.1} parent=47 // pred_region
          %vm321 = vcmask 24576
          %vm322 = vsmask.f32 256
          %vm323 = vmand %vm321, %vm322
          %v324 = vld [vmem:[#allocation2] sm:$0x1]
          %v325 = vsel %vm323, 0, %v324
          %326 = vst [vmem:[#allocation2] sm:$0x1] %v325
          %v327 = vld [vmem:[#allocation2 + $0xc] sm:$0x1]
          %v328 = vsel %vm323, 0, %v327
          %329 = vst [vmem:[#allocation2 + $0xc] sm:$0x1] %v328
          %v330 = vld [vmem:[#allocation2 + $0x18] sm:$0x1]
          %v331 = vsel %vm323, 0, %v330
          %332 = vst [vmem:[#allocation2 + $0x18] sm:$0x1] %v331
          %v333 = vld [vmem:[#allocation2 + $0x24] sm:$0x1]
          %v334 = vsel %vm323, 0, %v333
          %335 = vst [vmem:[#allocation2 + $0x24] sm:$0x1] %v334
          %v336 = vld [vmem:[#allocation2 + $0x30] sm:$0x1]
          %v337 = vsel %vm323, 0, %v336
          %338 = vst [vmem:[#allocation2 + $0x30] sm:$0x1] %v337
          %v339 = vld [vmem:[#allocation2 + $0x3c] sm:$0x1]
          %v340 = vsel %vm323, 0, %v339
          %341 = vst [vmem:[#allocation2 + $0x3c] sm:$0x1] %v340
          %v342 = vld [vmem:[#allocation2 + $0x48] sm:$0x1]
          %v343 = vsel %vm323, 0, %v342
          %344 = vst [vmem:[#allocation2 + $0x48] sm:$0x1] %v343
          %v345 = vld [vmem:[#allocation2 + $0x54] sm:$0x1]
          %v346 = vsel %vm323, 0, %v345
          %347 = vst [vmem:[#allocation2 + $0x54] sm:$0x1] %v346
          %v348 = vld [vmem:[#allocation2 + $0x60] sm:$0x1]
          %v349 = vsel %vm323, 0, %v348
          %350 = vst [vmem:[#allocation2 + $0x60] sm:$0x1] %v349
          %v351 = vld [vmem:[#allocation2 + $0x6c] sm:$0x1]
          %v352 = vsel %vm323, 0, %v351
          %353 = vst [vmem:[#allocation2 + $0x6c] sm:$0x1] %v352
          %v354 = vld [vmem:[#allocation2 + $0x78] sm:$0x1]
          %v355 = vsel %vm323, 0, %v354
          %356 = vst [vmem:[#allocation2 + $0x78] sm:$0x1] %v355
          %v357 = vld [vmem:[#allocation2 + $0x84] sm:$0x1]
          %v358 = vsel %vm323, 0, %v357
          %359 = vst [vmem:[#allocation2 + $0x84] sm:$0x1] %v358
          %v360 = vld [vmem:[#allocation2 + $0x90] sm:$0x1]
          %v361 = vsel %vm323, 0, %v360
          %362 = vst [vmem:[#allocation2 + $0x90] sm:$0x1] %v361
          %v363 = vld [vmem:[#allocation2 + $0x9c] sm:$0x1]
          %v364 = vsel %vm323, 0, %v363
          %365 = vst [vmem:[#allocation2 + $0x9c] sm:$0x1] %v364
          %v366 = vld [vmem:[#allocation2 + $0xa8] sm:$0x1]
          %v367 = vsel %vm323, 0, %v366
          %368 = vst [vmem:[#allocation2 + $0xa8] sm:$0x1] %v367
          %v369 = vld [vmem:[#allocation2 + $0xb4] sm:$0x1]
          %v370 = vsel %vm323, 0, %v369
          %371 = vst [vmem:[#allocation2 + $0xb4] sm:$0x1] %v370
          %v372 = vld [vmem:[#allocation2 + $0xc0] sm:$0x1]
          %v373 = vsel %vm323, 0, %v372
          %374 = vst [vmem:[#allocation2 + $0xc0] sm:$0x1] %v373
          %v375 = vld [vmem:[#allocation2 + $0xcc] sm:$0x1]
          %v376 = vsel %vm323, 0, %v375
          %377 = vst [vmem:[#allocation2 + $0xcc] sm:$0x1] %v376
          %vm378 = vsmask.f32 7938
          %vm379 = vmand %vm321, %vm378
          %v380 = vld [vmem:[#allocation2 + $0x8] sm:$0x1]
          %v381 = vsel %vm379, 0, %v380
          %382 = vst [vmem:[#allocation2 + $0x8] sm:$0x1] %v381
          %v383 = vld [vmem:[#allocation2 + $0x14] sm:$0x1]
          %v384 = vsel %vm379, 0, %v383
          %385 = vst [vmem:[#allocation2 + $0x14] sm:$0x1] %v384
          %v386 = vld [vmem:[#allocation2 + $0x20] sm:$0x1]
          %v387 = vsel %vm379, 0, %v386
          %388 = vst [vmem:[#allocation2 + $0x20] sm:$0x1] %v387
          %v389 = vld [vmem:[#allocation2 + $0x2c] sm:$0x1]
          %v390 = vsel %vm379, 0, %v389
          %391 = vst [vmem:[#allocation2 + $0x2c] sm:$0x1] %v390
          %v392 = vld [vmem:[#allocation2 + $0x38] sm:$0x1]
          %v393 = vsel %vm379, 0, %v392
          %394 = vst [vmem:[#allocation2 + $0x38] sm:$0x1] %v393
          %v395 = vld [vmem:[#allocation2 + $0x44] sm:$0x1]
          %v396 = vsel %vm379, 0, %v395
          %397 = vst [vmem:[#allocation2 + $0x44] sm:$0x1] %v396
          %v398 = vld [vmem:[#allocation2 + $0x50] sm:$0x1]
          %v399 = vsel %vm379, 0, %v398
          %400 = vst [vmem:[#allocation2 + $0x50] sm:$0x1] %v399
          %v401 = vld [vmem:[#allocation2 + $0x5c] sm:$0x1]
          %v402 = vsel %vm379, 0, %v401
          %403 = vst [vmem:[#allocation2 + $0x5c] sm:$0x1] %v402
          %v404 = vld [vmem:[#allocation2 + $0x68] sm:$0x1]
          %v405 = vsel %vm379, 0, %v404
          %406 = vst [vmem:[#allocation2 + $0x68] sm:$0x1] %v405
          %v407 = vld [vmem:[#allocation2 + $0x74] sm:$0x1]
          %v408 = vsel %vm379, 0, %v407
          %409 = vst [vmem:[#allocation2 + $0x74] sm:$0x1] %v408
          %v410 = vld [vmem:[#allocation2 + $0x80] sm:$0x1]
          %v411 = vsel %vm379, 0, %v410
          %412 = vst [vmem:[#allocation2 + $0x80] sm:$0x1] %v411
          %v413 = vld [vmem:[#allocation2 + $0x8c] sm:$0x1]
          %v414 = vsel %vm379, 0, %v413
          %415 = vst [vmem:[#allocation2 + $0x8c] sm:$0x1] %v414
          %v416 = vld [vmem:[#allocation2 + $0x98] sm:$0x1]
          %v417 = vsel %vm379, 0, %v416
          %418 = vst [vmem:[#allocation2 + $0x98] sm:$0x1] %v417
          %v419 = vld [vmem:[#allocation2 + $0xa4] sm:$0x1]
          %v420 = vsel %vm379, 0, %v419
          %421 = vst [vmem:[#allocation2 + $0xa4] sm:$0x1] %v420
          %v422 = vld [vmem:[#allocation2 + $0xb0] sm:$0x1]
          %v423 = vsel %vm379, 0, %v422
          %424 = vst [vmem:[#allocation2 + $0xb0] sm:$0x1] %v423
          %v425 = vld [vmem:[#allocation2 + $0xbc] sm:$0x1]
          %v426 = vsel %vm379, 0, %v425
          %427 = vst [vmem:[#allocation2 + $0xbc] sm:$0x1] %v426
          %v428 = vld [vmem:[#allocation2 + $0xc8] sm:$0x1]
          %v429 = vsel %vm379, 0, %v428
          %430 = vst [vmem:[#allocation2 + $0xc8] sm:$0x1] %v429
          %v431 = vld [vmem:[#allocation2 + $0xd4] sm:$0x1]
          %v432 = vsel %vm379, 0, %v431
          %433 = vst [vmem:[#allocation2 + $0xd4] sm:$0x1] %v432
          %vm434 = vcmask 27648
          %435 = vst.msk [vmem:[#allocation2] sm:$0xf] %vm434, 0
          %436 = vst.msk [vmem:[#allocation2 + $0x4] sm:$0xf] %vm434, 0
          %vm437 = vcmask 24576
          %438 = vst.msk [vmem:[#allocation2 + $0x8] sm:$0x1] %vm437, 0
          %s439 = scalar_lea.vmem [#allocation2], 204
          %440 = vst.msk [vmem:[%s439] sm:$0xf] %vm434, 0
          %441 = vst.msk [vmem:[%s439 + $0x4] sm:$0xf] %vm434, 0
          %442 = vst.msk [vmem:[%s439 + $0x8] sm:$0x1] %vm437, 0
        $region56: #{tpu_custom_call.1} parent=47 // pred_fallthru
          _
        %s443 = smul.u32 %s313, 2
        %s444 = smul.addr %s443, 4
        %s445 = scalar_lea.vmem %s280, %s444 [#allocation4]
        %v446 = vld [vmem:[%s445] sm:$0xf]
        %v447 = vld [vmem:[%s445 + $0x4] sm:$0xf]
        %v448 = vld [vmem:[%s445 + $0x8] sm:$0xf]
        %v449 = vld [vmem:[%s445 + $0xc] sm:$0xf]
        %v450 = vld [vmem:[%s445 + $0x10] sm:$0xf]
        %v451 = vld [vmem:[%s445 + $0x14] sm:$0xf]
        %v452 = vld [vmem:[%s445 + $0x18] sm:$0xf]
        %v453 = vld [vmem:[%s445 + $0x1c] sm:$0xf]
        %v454 = vld [vmem:[%s445 + $0x20] sm:$0xf]
        %v455 = vld [vmem:[%s445 + $0x24] sm:$0xf]
        %v456 = vld [vmem:[%s445 + $0x28] sm:$0xf]
        %v457 = vld [vmem:[%s445 + $0x2c] sm:$0xf]
        %v458 = vld [vmem:[%s445 + $0x30] sm:$0xf]
        %v459 = vld [vmem:[%s445 + $0x34] sm:$0xf]
        %v460 = vld [vmem:[%s445 + $0x38] sm:$0xf]
        %v461 = vld [vmem:[%s445 + $0x3c] sm:$0xf]
        %v462 = vld [vmem:[%s445 + $0x40] sm:$0xf]
        %v463 = vld [vmem:[%s445 + $0x44] sm:$0xf]
        %v464 = vld [vmem:[%s445 + $0x48] sm:$0xf]
        %v465 = vld [vmem:[%s445 + $0x4c] sm:$0xf]
        %v466 = vld [vmem:[%s445 + $0x50] sm:$0xf]
        %v467 = vld [vmem:[%s445 + $0x54] sm:$0xf]
        %v468 = vld [vmem:[%s445 + $0x58] sm:$0xf]
        %v469 = vld [vmem:[%s445 + $0x5c] sm:$0xf]
        %v470 = vld [vmem:[%s445 + $0x60] sm:$0xf]
        %v471 = vld [vmem:[%s445 + $0x64] sm:$0xf]
        %v472 = vld [vmem:[%s445 + $0x68] sm:$0xf]
        %v473 = vld [vmem:[%s445 + $0x6c] sm:$0xf]
        %v474 = vld [vmem:[%s445 + $0x70] sm:$0xf]
        %v475 = vld [vmem:[%s445 + $0x74] sm:$0xf]
        %v476 = vld [vmem:[%s445 + $0x78] sm:$0xf]
        %v477 = vld [vmem:[%s445 + $0x7c] sm:$0xf]
        %v479 = vlaneseq
        %v480 = vshrl.u32 %v479, 7
        %v481 = vsub.s32 0, %v480
        %v482 = vrot.slane %v316, %v481
        %v516 = vunpack.c.l.b16 %v446
        %v517 = vunpack.c.l.b16 %v447
        %v518 = vunpack.c.l.b16 %v448
        %v519 = vunpack.c.l.b16 %v449
        %v520 = vunpack.c.l.b16 %v450
        %v521 = vunpack.c.l.b16 %v451
        %v522 = vunpack.c.l.b16 %v452
        %v523 = vunpack.c.l.b16 %v453
        %v524 = vunpack.c.l.b16 %v454
        %v525 = vunpack.c.l.b16 %v455
        %v526 = vunpack.c.l.b16 %v456
        %v527 = vunpack.c.l.b16 %v457
        %v528 = vunpack.c.l.b16 %v458
        %v529 = vunpack.c.l.b16 %v459
        %v530 = vunpack.c.l.b16 %v460
        %v531 = vunpack.c.l.b16 %v461
        %v532 = vunpack.c.l.b16 %v462
        %v533 = vunpack.c.l.b16 %v463
        %v534 = vunpack.c.l.b16 %v464
        %v535 = vunpack.c.l.b16 %v465
        %v536 = vunpack.c.l.b16 %v466
        %v537 = vunpack.c.l.b16 %v467
        %v538 = vunpack.c.l.b16 %v468
        %v539 = vunpack.c.l.b16 %v469
        %v540 = vunpack.c.l.b16 %v470
        %v541 = vunpack.c.l.b16 %v471
        %v542 = vunpack.c.l.b16 %v472
        %v543 = vunpack.c.l.b16 %v473
        %v544 = vunpack.c.l.b16 %v474
        %v545 = vunpack.c.l.b16 %v475
        %v546 = vunpack.c.l.b16 %v476
        %v547 = vunpack.c.l.b16 %v477
        %v548 = vpack.c.b16 %v517, %v516
        %v549 = vpack.c.b16 %v519, %v518
        %v550 = vpack.c.b16 %v521, %v520
        %v551 = vpack.c.b16 %v523, %v522
        %v552 = vpack.c.b16 %v525, %v524
        %v553 = vpack.c.b16 %v527, %v526
        %v554 = vpack.c.b16 %v529, %v528
        %v555 = vpack.c.b16 %v531, %v530
        %v556 = vpack.c.b16 %v533, %v532
        %v557 = vpack.c.b16 %v535, %v534
        %v558 = vpack.c.b16 %v537, %v536
        %v559 = vpack.c.b16 %v539, %v538
        %v560 = vpack.c.b16 %v541, %v540
        %v561 = vpack.c.b16 %v543, %v542
        %v562 = vpack.c.b16 %v545, %v544
        %v563 = vpack.c.b16 %v547, %v546
        %v566 = vunpack.c.l.b16 %v314
        %v567 = vunpack.c.l.b16 %v315
        %v568 = vpack.c.b16 %v567, %v566
        %vm570 = vcmask 130048
        %v572 = vsel %vm570, %v548, 0
        %v575 = vsel %vm570, %v549, 0
        %v578 = vsel %vm570, %v550, 0
        %v581 = vsel %vm570, %v551, 0
        %v584 = vsel %vm570, %v552, 0
        %v587 = vsel %vm570, %v553, 0
        %v590 = vsel %vm570, %v554, 0
        %v593 = vsel %vm570, %v555, 0
        %v596 = vsel %vm570, %v556, 0
        %v599 = vsel %vm570, %v557, 0
        %v602 = vsel %vm570, %v558, 0
        %v605 = vsel %vm570, %v559, 0
        %v608 = vsel %vm570, %v560, 0
        %v611 = vsel %vm570, %v561, 0
        %v614 = vsel %vm570, %v562, 0
        %v617 = vsel %vm570, %v563, 0
        %619 = vmatprep.subr.bf16.mxu0 0
        %620 = vmatpush1.bf16.msra.mxu0 %v568
        %621 = vmatprep.subr.bf16.mxu0 0
        %622 = vmatpush1.bf16.msra.mxu0 0
        %623 = vmatprep.subr.bf16.mxu0 0
        %624 = vmatpush1.bf16.msra.mxu0 0
        %625 = vmatprep.subr.bf16.mxu0 0
        %626 = vmatpush1.bf16.msra.mxu0 0
        %627 = vmatprep.subr.bf16.mxu0 0
        %628 = vmatpush1.bf16.msra.mxu0 0
        %629 = vmatprep.subr.bf16.mxu0 0
        %630 = vmatpush1.bf16.msra.mxu0 0
        %631 = vmatprep.subr.bf16.mxu0 0
        %632 = vmatpush1.bf16.msra.mxu0 0
        %633 = vmatprep.subr.bf16.mxu0 0
        %634 = vmatpush1.bf16.msra.mxu0 0
        %635 = vmatprep.subr.bf16.mxu0 0
        %636 = vmatpush1.bf16.msra.mxu0 0
        %637 = vmatprep.subr.bf16.mxu0 0
        %638 = vmatpush1.bf16.msra.mxu0 0
        %639 = vmatprep.subr.bf16.mxu0 0
        %640 = vmatpush1.bf16.msra.mxu0 0
        %641 = vmatprep.subr.bf16.mxu0 0
        %642 = vmatpush1.bf16.msra.mxu0 0
        %643 = vmatprep.subr.bf16.mxu0 0
        %644 = vmatpush1.bf16.msra.mxu0 0
        %645 = vmatprep.subr.bf16.mxu0 0
        %646 = vmatpush1.bf16.msra.mxu0 0
        %647 = vmatprep.subr.bf16.mxu0 0
        %648 = vmatpush1.bf16.msra.mxu0 0
        %649 = vmatprep.subr.bf16.mxu0 0
        %650 = vmatpush1.bf16.msra.mxu0 0
        %651 = vmatprep.mubr.bf16.mxu0 0
        %652 = vmatmul.mubr.bf16.gmra.mrb[0].mxu0 %v572
        %v653 = vpop.f32.mrb[0].mxu0
        %v654 = vadd.f32 %v482, %v653
        %v655 = vpop.f32.mrb[0].mxu0
        %v656 = vpop.f32.mrb[0].mxu0
        %v657 = vadd.f32 %v482, %v656
        %v658 = vpop.f32.mrb[0].mxu0
        %659 = vmatprep.mubr.bf16.mxu0 0
        %660 = vmatmul.mubr.bf16.gmra.mrb[0].mxu0 %v575
        %v661 = vpop.f32.mrb[0].mxu0
        %v662 = vadd.f32 %v482, %v661
        %v663 = vpop.f32.mrb[0].mxu0
        %v664 = vpop.f32.mrb[0].mxu0
        %v665 = vadd.f32 %v482, %v664
        %v666 = vpop.f32.mrb[0].mxu0
        %667 = vmatprep.mubr.bf16.mxu0 0
        %668 = vmatmul.mubr.bf16.gmra.mrb[0].mxu0 %v578
        %v669 = vpop.f32.mrb[0].mxu0
        %v670 = vadd.f32 %v482, %v669
        %v671 = vpop.f32.mrb[0].mxu0
        %v672 = vpop.f32.mrb[0].mxu0
        %v673 = vadd.f32 %v482, %v672
        %v674 = vpop.f32.mrb[0].mxu0
        %675 = vmatprep.mubr.bf16.mxu0 0
        %676 = vmatmul.mubr.bf16.gmra.mrb[0].mxu0 %v581
        %v677 = vpop.f32.mrb[0].mxu0
        %v678 = vadd.f32 %v482, %v677
        %v679 = vpop.f32.mrb[0].mxu0
        %v680 = vpop.f32.mrb[0].mxu0
        %v681 = vadd.f32 %v482, %v680
        %v682 = vpop.f32.mrb[0].mxu0
        %683 = vmatprep.mubr.bf16.mxu0 0
        %684 = vmatmul.mubr.bf16.gmra.mrb[0].mxu0 %v584
        %v685 = vpop.f32.mrb[0].mxu0
        %v686 = vadd.f32 %v482, %v685
        %v687 = vpop.f32.mrb[0].mxu0
        %v688 = vpop.f32.mrb[0].mxu0
        %v689 = vadd.f32 %v482, %v688
        %v690 = vpop.f32.mrb[0].mxu0
        %691 = vmatprep.mubr.bf16.mxu0 0
        %692 = vmatmul.mubr.bf16.gmra.mrb[0].mxu0 %v587
        %v693 = vpop.f32.mrb[0].mxu0
        %v694 = vadd.f32 %v482, %v693
        %v695 = vpop.f32.mrb[0].mxu0
        %v696 = vpop.f32.mrb[0].mxu0
        %v697 = vadd.f32 %v482, %v696
        %v698 = vpop.f32.mrb[0].mxu0
        %699 = vmatprep.mubr.bf16.mxu0 0
        %700 = vmatmul.mubr.bf16.gmra.mrb[0].mxu0 %v590
        %v701 = vpop.f32.mrb[0].mxu0
        %v702 = vadd.f32 %v482, %v701
        %v703 = vpop.f32.mrb[0].mxu0
        %v704 = vpop.f32.mrb[0].mxu0
        %v705 = vadd.f32 %v482, %v704
        %v706 = vpop.f32.mrb[0].mxu0
        %707 = vmatprep.mubr.bf16.mxu0 0
        %708 = vmatmul.mubr.bf16.gmra.mrb[0].mxu0 %v593
        %v709 = vpop.f32.mrb[0].mxu0
        %v710 = vadd.f32 %v482, %v709
        %v711 = vpop.f32.mrb[0].mxu0
        %v712 = vpop.f32.mrb[0].mxu0
        %v713 = vadd.f32 %v482, %v712
        %v714 = vpop.f32.mrb[0].mxu0
        %715 = vmatprep.mubr.bf16.mxu0 0
        %716 = vmatmul.mubr.bf16.gmra.mrb[0].mxu0 %v596
        %v717 = vpop.f32.mrb[0].mxu0
        %v718 = vadd.f32 %v482, %v717
        %v719 = vpop.f32.mrb[0].mxu0
        %v720 = vpop.f32.mrb[0].mxu0
        %v721 = vadd.f32 %v482, %v720
        %v722 = vpop.f32.mrb[0].mxu0
        %723 = vmatprep.mubr.bf16.mxu0 0
        %724 = vmatmul.mubr.bf16.gmra.mrb[0].mxu0 %v599
        %v725 = vpop.f32.mrb[0].mxu0
        %v726 = vadd.f32 %v482, %v725
        %v727 = vpop.f32.mrb[0].mxu0
        %v728 = vpop.f32.mrb[0].mxu0
        %v729 = vadd.f32 %v482, %v728
        %v730 = vpop.f32.mrb[0].mxu0
        %731 = vmatprep.mubr.bf16.mxu0 0
        %732 = vmatmul.mubr.bf16.gmra.mrb[0].mxu0 %v602
        %v733 = vpop.f32.mrb[0].mxu0
        %v734 = vadd.f32 %v482, %v733
        %v735 = vpop.f32.mrb[0].mxu0
        %v736 = vpop.f32.mrb[0].mxu0
        %v737 = vadd.f32 %v482, %v736
        %v738 = vpop.f32.mrb[0].mxu0
        %739 = vmatprep.mubr.bf16.mxu0 0
        %740 = vmatmul.mubr.bf16.gmra.mrb[0].mxu0 %v605
        %v741 = vpop.f32.mrb[0].mxu0
        %v742 = vadd.f32 %v482, %v741
        %v743 = vpop.f32.mrb[0].mxu0
        %v744 = vpop.f32.mrb[0].mxu0
        %v745 = vadd.f32 %v482, %v744
        %v746 = vpop.f32.mrb[0].mxu0
        %747 = vmatprep.mubr.bf16.mxu0 0
        %748 = vmatmul.mubr.bf16.gmra.mrb[0].mxu0 %v608
        %v749 = vpop.f32.mrb[0].mxu0
        %v750 = vadd.f32 %v482, %v749
        %v751 = vpop.f32.mrb[0].mxu0
        %v752 = vpop.f32.mrb[0].mxu0
        %v753 = vadd.f32 %v482, %v752
        %v754 = vpop.f32.mrb[0].mxu0
        %755 = vmatprep.mubr.bf16.mxu0 0
        %756 = vmatmul.mubr.bf16.gmra.mrb[0].mxu0 %v611
        %v757 = vpop.f32.mrb[0].mxu0
        %v758 = vadd.f32 %v482, %v757
        %v759 = vpop.f32.mrb[0].mxu0
        %v760 = vpop.f32.mrb[0].mxu0
        %v761 = vadd.f32 %v482, %v760
        %v762 = vpop.f32.mrb[0].mxu0
        %763 = vmatprep.mubr.bf16.mxu0 0
        %764 = vmatmul.mubr.bf16.gmra.mrb[0].mxu0 %v614
        %v765 = vpop.f32.mrb[0].mxu0
        %v766 = vadd.f32 %v482, %v765
        %v767 = vpop.f32.mrb[0].mxu0
        %v768 = vpop.f32.mrb[0].mxu0
        %v769 = vadd.f32 %v482, %v768
        %v770 = vpop.f32.mrb[0].mxu0
        %771 = vmatprep.mubr.bf16.mxu0 0
        %772 = vmatmul.mubr.bf16.gmra.mrb[0].mxu0 %v617
        %v773 = vpop.f32.mrb[0].mxu0
        %v774 = vadd.f32 %v482, %v773
        %v775 = vpop.f32.mrb[0].mxu0
        %v776 = vpop.f32.mrb[0].mxu0
        %v777 = vadd.f32 %v482, %v776
        %v778 = vpop.f32.mrb[0].mxu0
        %779 = vdwg.mxu0
        %v780 = vmax.f32 %v654, 0.0
        %v781 = vmax.f32 %v657, 0.0
        %v782 = vmax.f32 %v662, 0.0
        %v783 = vmax.f32 %v665, 0.0
        %v784 = vmax.f32 %v670, 0.0
        %v785 = vmax.f32 %v673, 0.0
        %v786 = vmax.f32 %v678, 0.0
        %v787 = vmax.f32 %v681, 0.0
        %v788 = vmax.f32 %v686, 0.0
        %v789 = vmax.f32 %v689, 0.0
        %v790 = vmax.f32 %v694, 0.0
        %v791 = vmax.f32 %v697, 0.0
        %v792 = vmax.f32 %v702, 0.0
        %v793 = vmax.f32 %v705, 0.0
        %v794 = vmax.f32 %v710, 0.0
        %v795 = vmax.f32 %v713, 0.0
        %v796 = vmax.f32 %v718, 0.0
        %v797 = vmax.f32 %v721, 0.0
        %v798 = vmax.f32 %v726, 0.0
        %v799 = vmax.f32 %v729, 0.0
        %v800 = vmax.f32 %v734, 0.0
        %v801 = vmax.f32 %v737, 0.0
        %v802 = vmax.f32 %v742, 0.0
        %v803 = vmax.f32 %v745, 0.0
        %v804 = vmax.f32 %v750, 0.0
        %v805 = vmax.f32 %v753, 0.0
        %v806 = vmax.f32 %v758, 0.0
        %v807 = vmax.f32 %v761, 0.0
        %v808 = vmax.f32 %v766, 0.0
        %v809 = vmax.f32 %v769, 0.0
        %v810 = vmax.f32 %v774, 0.0
        %v811 = vmax.f32 %v777, 0.0
        %v812 = vpack.c.bf16 %v781, %v780
        %v813 = vpack.c.bf16 %v783, %v782
        %v814 = vpack.c.bf16 %v785, %v784
        %v815 = vpack.c.bf16 %v787, %v786
        %v816 = vpack.c.bf16 %v789, %v788
        %v817 = vpack.c.bf16 %v791, %v790
        %v818 = vpack.c.bf16 %v793, %v792
        %v819 = vpack.c.bf16 %v795, %v794
        %v820 = vpack.c.bf16 %v797, %v796
        %v821 = vpack.c.bf16 %v799, %v798
        %v822 = vpack.c.bf16 %v801, %v800
        %v823 = vpack.c.bf16 %v803, %v802
        %v824 = vpack.c.bf16 %v805, %v804
        %v825 = vpack.c.bf16 %v807, %v806
        %v826 = vpack.c.bf16 %v809, %v808
        %v827 = vpack.c.bf16 %v811, %v810
        %v844 = vunpack.c.l.b16 %v812
        %v845 = vunpack.c.h.b16 %v812
        %v846 = vunpack.c.l.b16 %v813
        %v847 = vunpack.c.h.b16 %v813
        %v848 = vunpack.c.l.b16 %v814
        %v849 = vunpack.c.h.b16 %v814
        %v850 = vunpack.c.l.b16 %v815
        %v851 = vunpack.c.h.b16 %v815
        %v852 = vunpack.c.l.b16 %v816
        %v853 = vunpack.c.h.b16 %v816
        %v854 = vunpack.c.l.b16 %v817
        %v855 = vunpack.c.h.b16 %v817
        %v856 = vunpack.c.l.b16 %v818
        %v857 = vunpack.c.h.b16 %v818
        %v858 = vunpack.c.l.b16 %v819
        %v859 = vunpack.c.h.b16 %v819
        %v860 = vunpack.c.l.b16 %v820
        %v861 = vunpack.c.h.b16 %v820
        %v862 = vunpack.c.l.b16 %v821
        %v863 = vunpack.c.h.b16 %v821
        %v864 = vunpack.c.l.b16 %v822
        %v865 = vunpack.c.h.b16 %v822
        %v866 = vunpack.c.l.b16 %v823
        %v867 = vunpack.c.h.b16 %v823
        %v868 = vunpack.c.l.b16 %v824
        %v869 = vunpack.c.h.b16 %v824
        %v870 = vunpack.c.l.b16 %v825
        %v871 = vunpack.c.h.b16 %v825
        %v872 = vunpack.c.l.b16 %v826
        %v873 = vunpack.c.h.b16 %v826
        %v874 = vunpack.c.l.b16 %v827
        %v875 = vunpack.c.h.b16 %v827
        %v876 = vpack.c.b16 %v844, %v844
        %v877 = vpack.c.b16 %v845, %v845
        %v878 = vpack.c.b16 %v846, %v846
        %v879 = vpack.c.b16 %v847, %v847
        %v880 = vpack.c.b16 %v848, %v848
        %v881 = vpack.c.b16 %v849, %v849
        %v882 = vpack.c.b16 %v850, %v850
        %v883 = vpack.c.b16 %v851, %v851
        %v884 = vpack.c.b16 %v852, %v852
        %v885 = vpack.c.b16 %v853, %v853
        %v886 = vpack.c.b16 %v854, %v854
        %v887 = vpack.c.b16 %v855, %v855
        %v888 = vpack.c.b16 %v856, %v856
        %v889 = vpack.c.b16 %v857, %v857
        %v890 = vpack.c.b16 %v858, %v858
        %v891 = vpack.c.b16 %v859, %v859
        %v892 = vpack.c.b16 %v860, %v860
        %v893 = vpack.c.b16 %v861, %v861
        %v894 = vpack.c.b16 %v862, %v862
        %v895 = vpack.c.b16 %v863, %v863
        %v896 = vpack.c.b16 %v864, %v864
        %v897 = vpack.c.b16 %v865, %v865
        %v898 = vpack.c.b16 %v866, %v866
        %v899 = vpack.c.b16 %v867, %v867
        %v900 = vpack.c.b16 %v868, %v868
        %v901 = vpack.c.b16 %v869, %v869
        %v902 = vpack.c.b16 %v870, %v870
        %v903 = vpack.c.b16 %v871, %v871
        %v904 = vpack.c.b16 %v872, %v872
        %v905 = vpack.c.b16 %v873, %v873
        %v906 = vpack.c.b16 %v874, %v874
        %v907 = vpack.c.b16 %v875, %v875
        %vm908 = vsmask.f32 256
        %vm909 = vsmask.f32 4368
        %vm910 = vmor %vm908, %vm909
        %v912 = vshrl.u32 %v876, 16
        %v914 = vrot.slane %v912, 7
        %v915 = vshll.u32 %v876, 16
        %v917 = vor.u32 %v914, %v915
        %v918 = vrot.slane %v914, 4
        %v920 = vshrl.u32 %v877, 16
        %v922 = vrot.slane %v920, 7
        %v923 = vshll.u32 %v877, 16
        %v925 = vor.u32 %v922, %v923
        %v926 = vsel %vm910, %v918, %v925
        %v927 = vrot.slane %v922, 4
        %v929 = vshrl.u32 %v878, 16
        %v931 = vrot.slane %v929, 7
        %v932 = vshll.u32 %v878, 16
        %v934 = vor.u32 %v931, %v932
        %v935 = vrot.slane %v931, 4
        %v937 = vshrl.u32 %v879, 16
        %v939 = vrot.slane %v937, 7
        %v940 = vshll.u32 %v879, 16
        %v942 = vor.u32 %v939, %v940
        %v943 = vsel %vm910, %v935, %v942
        %v944 = vrot.slane %v939, 4
        %v946 = vshrl.u32 %v880, 16
        %v948 = vrot.slane %v946, 7
        %v949 = vshll.u32 %v880, 16
        %v951 = vor.u32 %v948, %v949
        %v952 = vrot.slane %v948, 4
        %v954 = vshrl.u32 %v881, 16
        %v956 = vrot.slane %v954, 7
        %v957 = vshll.u32 %v881, 16
        %v959 = vor.u32 %v956, %v957
        %v960 = vsel %vm910, %v952, %v959
        %v961 = vrot.slane %v956, 4
        %v963 = vshrl.u32 %v882, 16
        %v965 = vrot.slane %v963, 7
        %v966 = vshll.u32 %v882, 16
        %v968 = vor.u32 %v965, %v966
        %v969 = vrot.slane %v965, 4
        %v971 = vshrl.u32 %v883, 16
        %v973 = vrot.slane %v971, 7
        %v974 = vshll.u32 %v883, 16
        %v976 = vor.u32 %v973, %v974
        %v977 = vsel %vm910, %v969, %v976
        %v978 = vrot.slane %v973, 4
        %v980 = vshrl.u32 %v884, 16
        %v982 = vrot.slane %v980, 7
        %v983 = vshll.u32 %v884, 16
        %v985 = vor.u32 %v982, %v983
        %v986 = vrot.slane %v982, 4
        %v988 = vshrl.u32 %v885, 16
        %v990 = vrot.slane %v988, 7
        %v991 = vshll.u32 %v885, 16
        %v993 = vor.u32 %v990, %v991
        %v994 = vsel %vm910, %v986, %v993
        %v995 = vrot.slane %v990, 4
        %v997 = vshrl.u32 %v886, 16
        %v999 = vrot.slane %v997, 7
        %v1000 = vshll.u32 %v886, 16
        %v1002 = vor.u32 %v999, %v1000
        %v1003 = vrot.slane %v999, 4
        %v1005 = vshrl.u32 %v887, 16
        %v1007 = vrot.slane %v1005, 7
        %v1008 = vshll.u32 %v887, 16
        %v1010 = vor.u32 %v1007, %v1008
        %v1011 = vsel %vm910, %v1003, %v1010
        %v1012 = vrot.slane %v1007, 4
        %v1014 = vshrl.u32 %v888, 16
        %v1016 = vrot.slane %v1014, 7
        %v1017 = vshll.u32 %v888, 16
        %v1019 = vor.u32 %v1016, %v1017
        %v1020 = vrot.slane %v1016, 4
        %v1022 = vshrl.u32 %v889, 16
        %v1024 = vrot.slane %v1022, 7
        %v1025 = vshll.u32 %v889, 16
        %v1027 = vor.u32 %v1024, %v1025
        %v1028 = vsel %vm910, %v1020, %v1027
        %v1029 = vrot.slane %v1024, 4
        %v1031 = vshrl.u32 %v890, 16
        %v1033 = vrot.slane %v1031, 7
        %v1034 = vshll.u32 %v890, 16
        %v1036 = vor.u32 %v1033, %v1034
        %v1037 = vrot.slane %v1033, 4
        %v1039 = vshrl.u32 %v891, 16
        %v1041 = vrot.slane %v1039, 7
        %v1042 = vshll.u32 %v891, 16
        %v1044 = vor.u32 %v1041, %v1042
        %v1045 = vsel %vm910, %v1037, %v1044
        %v1046 = vrot.slane %v1041, 4
        %v1048 = vshrl.u32 %v892, 16
        %v1050 = vrot.slane %v1048, 7
        %v1051 = vshll.u32 %v892, 16
        %v1053 = vor.u32 %v1050, %v1051
        %v1054 = vrot.slane %v1050, 4
        %v1056 = vshrl.u32 %v893, 16
        %v1058 = vrot.slane %v1056, 7
        %v1059 = vshll.u32 %v893, 16
        %v1061 = vor.u32 %v1058, %v1059
        %v1062 = vsel %vm910, %v1054, %v1061
        %v1063 = vrot.slane %v1058, 4
        %v1065 = vshrl.u32 %v894, 16
        %v1067 = vrot.slane %v1065, 7
        %v1068 = vshll.u32 %v894, 16
        %v1070 = vor.u32 %v1067, %v1068
        %v1071 = vrot.slane %v1067, 4
        %v1073 = vshrl.u32 %v895, 16
        %v1075 = vrot.slane %v1073, 7
        %v1076 = vshll.u32 %v895, 16
        %v1078 = vor.u32 %v1075, %v1076
        %v1079 = vsel %vm910, %v1071, %v1078
        %v1080 = vrot.slane %v1075, 4
        %v1082 = vshrl.u32 %v896, 16
        %v1084 = vrot.slane %v1082, 7
        %v1085 = vshll.u32 %v896, 16
        %v1087 = vor.u32 %v1084, %v1085
        %v1088 = vrot.slane %v1084, 4
        %v1090 = vshrl.u32 %v897, 16
        %v1092 = vrot.slane %v1090, 7
        %v1093 = vshll.u32 %v897, 16
        %v1095 = vor.u32 %v1092, %v1093
        %v1096 = vsel %vm910, %v1088, %v1095
        %v1097 = vrot.slane %v1092, 4
        %v1099 = vshrl.u32 %v898, 16
        %v1101 = vrot.slane %v1099, 7
        %v1102 = vshll.u32 %v898, 16
        %v1104 = vor.u32 %v1101, %v1102
        %v1105 = vrot.slane %v1101, 4
        %v1107 = vshrl.u32 %v899, 16
        %v1109 = vrot.slane %v1107, 7
        %v1110 = vshll.u32 %v899, 16
        %v1112 = vor.u32 %v1109, %v1110
        %v1113 = vsel %vm910, %v1105, %v1112
        %v1114 = vrot.slane %v1109, 4
        %v1116 = vshrl.u32 %v900, 16
        %v1118 = vrot.slane %v1116, 7
        %v1119 = vshll.u32 %v900, 16
        %v1121 = vor.u32 %v1118, %v1119
        %v1122 = vrot.slane %v1118, 4
        %v1124 = vshrl.u32 %v901, 16
        %v1126 = vrot.slane %v1124, 7
        %v1127 = vshll.u32 %v901, 16
        %v1129 = vor.u32 %v1126, %v1127
        %v1130 = vsel %vm910, %v1122, %v1129
        %v1131 = vrot.slane %v1126, 4
        %v1133 = vshrl.u32 %v902, 16
        %v1135 = vrot.slane %v1133, 7
        %v1136 = vshll.u32 %v902, 16
        %v1138 = vor.u32 %v1135, %v1136
        %v1139 = vrot.slane %v1135, 4
        %v1141 = vshrl.u32 %v903, 16
        %v1143 = vrot.slane %v1141, 7
        %v1144 = vshll.u32 %v903, 16
        %v1146 = vor.u32 %v1143, %v1144
        %v1147 = vsel %vm910, %v1139, %v1146
        %v1148 = vrot.slane %v1143, 4
        %v1150 = vshrl.u32 %v904, 16
        %v1152 = vrot.slane %v1150, 7
        %v1153 = vshll.u32 %v904, 16
        %v1155 = vor.u32 %v1152, %v1153
        %v1156 = vrot.slane %v1152, 4
        %v1158 = vshrl.u32 %v905, 16
        %v1160 = vrot.slane %v1158, 7
        %v1161 = vshll.u32 %v905, 16
        %v1163 = vor.u32 %v1160, %v1161
        %v1164 = vsel %vm910, %v1156, %v1163
        %v1165 = vrot.slane %v1160, 4
        %v1167 = vshrl.u32 %v906, 16
        %v1169 = vrot.slane %v1167, 7
        %v1170 = vshll.u32 %v906, 16
        %v1172 = vor.u32 %v1169, %v1170
        %v1173 = vrot.slane %v1169, 4
        %v1175 = vshrl.u32 %v907, 16
        %v1177 = vrot.slane %v1175, 7
        %v1178 = vshll.u32 %v907, 16
        %v1180 = vor.u32 %v1177, %v1178
        %v1181 = vsel %vm910, %v1173, %v1180
        %v1182 = vrot.slane %v1177, 4
        %s1231 = scalar_lea.vmem [#allocation2], 12
        %vm1232 = vcmask 27648
        %vm1233 = vsmask.f32 7938
        %vm1234 = vmand %vm1232, %vm1233
        %v1235 = vld [vmem:[%s1231] sm:$0xf]
        %v1236 = vsel %vm1234, %v917, %v1235
        %1237 = vst [vmem:[%s1231] sm:$0xf] %v1236
        %vm1238 = vcmask 27648
        %1239 = vst.msk [vmem:[%s1231 + $0x4] sm:$0xf] %vm1238, %v926
        %vm1240 = vcmask 24576
        %vm1241 = vmand %vm1240, %vm908
        %v1242 = vld [vmem:[%s1231 + $0x8] sm:$0x1]
        %v1243 = vsel %vm1241, %v927, %v1242
        %1244 = vst [vmem:[%s1231 + $0x8] sm:$0x1] %v1243
        %v1245 = vld [vmem:[%s1231 + $0xc] sm:$0xf]
        %v1246 = vsel %vm1234, %v934, %v1245
        %1247 = vst [vmem:[%s1231 + $0xc] sm:$0xf] %v1246
        %1248 = vst.msk [vmem:[%s1231 + $0x10] sm:$0xf] %vm1238, %v943
        %v1249 = vld [vmem:[%s1231 + $0x14] sm:$0x1]
        %v1250 = vsel %vm1241, %v944, %v1249
        %1251 = vst [vmem:[%s1231 + $0x14] sm:$0x1] %v1250
        %v1252 = vld [vmem:[%s1231 + $0x18] sm:$0xf]
        %v1253 = vsel %vm1234, %v951, %v1252
        %1254 = vst [vmem:[%s1231 + $0x18] sm:$0xf] %v1253
        %1255 = vst.msk [vmem:[%s1231 + $0x1c] sm:$0xf] %vm1238, %v960
        %v1256 = vld [vmem:[%s1231 + $0x20] sm:$0x1]
        %v1257 = vsel %vm1241, %v961, %v1256
        %1258 = vst [vmem:[%s1231 + $0x20] sm:$0x1] %v1257
        %v1259 = vld [vmem:[%s1231 + $0x24] sm:$0xf]
        %v1260 = vsel %vm1234, %v968, %v1259
        %1261 = vst [vmem:[%s1231 + $0x24] sm:$0xf] %v1260
        %1262 = vst.msk [vmem:[%s1231 + $0x28] sm:$0xf] %vm1238, %v977
        %v1263 = vld [vmem:[%s1231 + $0x2c] sm:$0x1]
        %v1264 = vsel %vm1241, %v978, %v1263
        %1265 = vst [vmem:[%s1231 + $0x2c] sm:$0x1] %v1264
        %v1266 = vld [vmem:[%s1231 + $0x30] sm:$0xf]
        %v1267 = vsel %vm1234, %v985, %v1266
        %1268 = vst [vmem:[%s1231 + $0x30] sm:$0xf] %v1267
        %1269 = vst.msk [vmem:[%s1231 + $0x34] sm:$0xf] %vm1238, %v994
        %v1270 = vld [vmem:[%s1231 + $0x38] sm:$0x1]
        %v1271 = vsel %vm1241, %v995, %v1270
        %1272 = vst [vmem:[%s1231 + $0x38] sm:$0x1] %v1271
        %v1273 = vld [vmem:[%s1231 + $0x3c] sm:$0xf]
        %v1274 = vsel %vm1234, %v1002, %v1273
        %1275 = vst [vmem:[%s1231 + $0x3c] sm:$0xf] %v1274
        %1276 = vst.msk [vmem:[%s1231 + $0x40] sm:$0xf] %vm1238, %v1011
        %v1277 = vld [vmem:[%s1231 + $0x44] sm:$0x1]
        %v1278 = vsel %vm1241, %v1012, %v1277
        %1279 = vst [vmem:[%s1231 + $0x44] sm:$0x1] %v1278
        %v1280 = vld [vmem:[%s1231 + $0x48] sm:$0xf]
        %v1281 = vsel %vm1234, %v1019, %v1280
        %1282 = vst [vmem:[%s1231 + $0x48] sm:$0xf] %v1281
        %1283 = vst.msk [vmem:[%s1231 + $0x4c] sm:$0xf] %vm1238, %v1028
        %v1284 = vld [vmem:[%s1231 + $0x50] sm:$0x1]
        %v1285 = vsel %vm1241, %v1029, %v1284
        %1286 = vst [vmem:[%s1231 + $0x50] sm:$0x1] %v1285
        %v1287 = vld [vmem:[%s1231 + $0x54] sm:$0xf]
        %v1288 = vsel %vm1234, %v1036, %v1287
        %1289 = vst [vmem:[%s1231 + $0x54] sm:$0xf] %v1288
        %1290 = vst.msk [vmem:[%s1231 + $0x58] sm:$0xf] %vm1238, %v1045
        %v1291 = vld [vmem:[%s1231 + $0x5c] sm:$0x1]
        %v1292 = vsel %vm1241, %v1046, %v1291
        %1293 = vst [vmem:[%s1231 + $0x5c] sm:$0x1] %v1292
        %v1294 = vld [vmem:[%s1231 + $0x60] sm:$0xf]
        %v1295 = vsel %vm1234, %v1053, %v1294
        %1296 = vst [vmem:[%s1231 + $0x60] sm:$0xf] %v1295
        %1297 = vst.msk [vmem:[%s1231 + $0x64] sm:$0xf] %vm1238, %v1062
        %v1298 = vld [vmem:[%s1231 + $0x68] sm:$0x1]
        %v1299 = vsel %vm1241, %v1063, %v1298
        %1300 = vst [vmem:[%s1231 + $0x68] sm:$0x1] %v1299
        %v1301 = vld [vmem:[%s1231 + $0x6c] sm:$0xf]
        %v1302 = vsel %vm1234, %v1070, %v1301
        %1303 = vst [vmem:[%s1231 + $0x6c] sm:$0xf] %v1302
        %1304 = vst.msk [vmem:[%s1231 + $0x70] sm:$0xf] %vm1238, %v1079
        %v1305 = vld [vmem:[%s1231 + $0x74] sm:$0x1]
        %v1306 = vsel %vm1241, %v1080, %v1305
        %1307 = vst [vmem:[%s1231 + $0x74] sm:$0x1] %v1306
        %v1308 = vld [vmem:[%s1231 + $0x78] sm:$0xf]
        %v1309 = vsel %vm1234, %v1087, %v1308
        %1310 = vst [vmem:[%s1231 + $0x78] sm:$0xf] %v1309
        %1311 = vst.msk [vmem:[%s1231 + $0x7c] sm:$0xf] %vm1238, %v1096
        %v1312 = vld [vmem:[%s1231 + $0x80] sm:$0x1]
        %v1313 = vsel %vm1241, %v1097, %v1312
        %1314 = vst [vmem:[%s1231 + $0x80] sm:$0x1] %v1313
        %v1315 = vld [vmem:[%s1231 + $0x84] sm:$0xf]
        %v1316 = vsel %vm1234, %v1104, %v1315
        %1317 = vst [vmem:[%s1231 + $0x84] sm:$0xf] %v1316
        %1318 = vst.msk [vmem:[%s1231 + $0x88] sm:$0xf] %vm1238, %v1113
        %v1319 = vld [vmem:[%s1231 + $0x8c] sm:$0x1]
        %v1320 = vsel %vm1241, %v1114, %v1319
        %1321 = vst [vmem:[%s1231 + $0x8c] sm:$0x1] %v1320
        %v1322 = vld [vmem:[%s1231 + $0x90] sm:$0xf]
        %v1323 = vsel %vm1234, %v1121, %v1322
        %1324 = vst [vmem:[%s1231 + $0x90] sm:$0xf] %v1323
        %1325 = vst.msk [vmem:[%s1231 + $0x94] sm:$0xf] %vm1238, %v1130
        %v1326 = vld [vmem:[%s1231 + $0x98] sm:$0x1]
        %v1327 = vsel %vm1241, %v1131, %v1326
        %1328 = vst [vmem:[%s1231 + $0x98] sm:$0x1] %v1327
        %v1329 = vld [vmem:[%s1231 + $0x9c] sm:$0xf]
        %v1330 = vsel %vm1234, %v1138, %v1329
        %1331 = vst [vmem:[%s1231 + $0x9c] sm:$0xf] %v1330
        %1332 = vst.msk [vmem:[%s1231 + $0xa0] sm:$0xf] %vm1238, %v1147
        %v1333 = vld [vmem:[%s1231 + $0xa4] sm:$0x1]
        %v1334 = vsel %vm1241, %v1148, %v1333
        %1335 = vst [vmem:[%s1231 + $0xa4] sm:$0x1] %v1334
        %v1336 = vld [vmem:[%s1231 + $0xa8] sm:$0xf]
        %v1337 = vsel %vm1234, %v1155, %v1336
        %1338 = vst [vmem:[%s1231 + $0xa8] sm:$0xf] %v1337
        %1339 = vst.msk [vmem:[%s1231 + $0xac] sm:$0xf] %vm1238, %v1164
        %v1340 = vld [vmem:[%s1231 + $0xb0] sm:$0x1]
        %v1341 = vsel %vm1241, %v1165, %v1340
        %1342 = vst [vmem:[%s1231 + $0xb0] sm:$0x1] %v1341
        %v1343 = vld [vmem:[%s1231 + $0xb4] sm:$0xf]
        %v1344 = vsel %vm1234, %v1172, %v1343
        %1345 = vst [vmem:[%s1231 + $0xb4] sm:$0xf] %v1344
        %1346 = vst.msk [vmem:[%s1231 + $0xb8] sm:$0xf] %vm1238, %v1181
        %v1347 = vld [vmem:[%s1231 + $0xbc] sm:$0x1]
        %v1348 = vsel %vm1241, %v1182, %v1347
        %1349 = vst [vmem:[%s1231 + $0xbc] sm:$0x1] %v1348
        %v1350 = vld [vmem:[#allocation2] sm:$0xf]
        %v1351 = vld [vmem:[#allocation2 + $0x4] sm:$0xf]
        %v1352 = vld [vmem:[#allocation2 + $0xc] sm:$0xf]
        %v1353 = vld [vmem:[#allocation2 + $0x10] sm:$0xf]
        %v1354 = vld [vmem:[#allocation2 + $0x18] sm:$0xf]
        %v1355 = vld [vmem:[#allocation2 + $0x1c] sm:$0xf]
        %v1356 = vld [vmem:[#allocation2 + $0x24] sm:$0xf]
        %v1357 = vld [vmem:[#allocation2 + $0x28] sm:$0xf]
        %v1358 = vld [vmem:[#allocation2 + $0x30] sm:$0xf]
        %v1359 = vld [vmem:[#allocation2 + $0x34] sm:$0xf]
        %v1360 = vld [vmem:[#allocation2 + $0x3c] sm:$0xf]
        %v1361 = vld [vmem:[#allocation2 + $0x40] sm:$0xf]
        %v1362 = vld [vmem:[#allocation2 + $0x48] sm:$0xf]
        %v1363 = vld [vmem:[#allocation2 + $0x4c] sm:$0xf]
        %v1364 = vld [vmem:[#allocation2 + $0x54] sm:$0xf]
        %v1365 = vld [vmem:[#allocation2 + $0x58] sm:$0xf]
        %v1366 = vld [vmem:[#allocation2 + $0x60] sm:$0xf]
        %v1367 = vld [vmem:[#allocation2 + $0x64] sm:$0xf]
        %v1368 = vld [vmem:[#allocation2 + $0x6c] sm:$0xf]
        %v1369 = vld [vmem:[#allocation2 + $0x70] sm:$0xf]
        %v1370 = vld [vmem:[#allocation2 + $0x78] sm:$0xf]
        %v1371 = vld [vmem:[#allocation2 + $0x7c] sm:$0xf]
        %v1372 = vld [vmem:[#allocation2 + $0x84] sm:$0xf]
        %v1373 = vld [vmem:[#allocation2 + $0x88] sm:$0xf]
        %v1374 = vld [vmem:[#allocation2 + $0x90] sm:$0xf]
        %v1375 = vld [vmem:[#allocation2 + $0x94] sm:$0xf]
        %v1376 = vld [vmem:[#allocation2 + $0x9c] sm:$0xf]
        %v1377 = vld [vmem:[#allocation2 + $0xa0] sm:$0xf]
        %v1378 = vld [vmem:[#allocation2 + $0xa8] sm:$0xf]
        %v1379 = vld [vmem:[#allocation2 + $0xac] sm:$0xf]
        %v1380 = vld [vmem:[#allocation2 + $0xb4] sm:$0xf]
        %v1381 = vld [vmem:[#allocation2 + $0xb8] sm:$0xf]
        %v1414 = vunpack.c.l.b16 %v1350
        %v1415 = vunpack.c.l.b16 %v1351
        %v1416 = vunpack.c.l.b16 %v1352
        %v1417 = vunpack.c.l.b16 %v1353
        %v1418 = vunpack.c.l.b16 %v1354
        %v1419 = vunpack.c.l.b16 %v1355
        %v1420 = vunpack.c.l.b16 %v1356
        %v1421 = vunpack.c.l.b16 %v1357
        %v1422 = vunpack.c.l.b16 %v1358
        %v1423 = vunpack.c.l.b16 %v1359
        %v1424 = vunpack.c.l.b16 %v1360
        %v1425 = vunpack.c.l.b16 %v1361
        %v1426 = vunpack.c.l.b16 %v1362
        %v1427 = vunpack.c.l.b16 %v1363
        %v1428 = vunpack.c.l.b16 %v1364
        %v1429 = vunpack.c.l.b16 %v1365
        %v1430 = vunpack.c.l.b16 %v1366
        %v1431 = vunpack.c.l.b16 %v1367
        %v1432 = vunpack.c.l.b16 %v1368
        %v1433 = vunpack.c.l.b16 %v1369
        %v1434 = vunpack.c.l.b16 %v1370
        %v1435 = vunpack.c.l.b16 %v1371
        %v1436 = vunpack.c.l.b16 %v1372
        %v1437 = vunpack.c.l.b16 %v1373
        %v1438 = vunpack.c.l.b16 %v1374
        %v1439 = vunpack.c.l.b16 %v1375
        %v1440 = vunpack.c.l.b16 %v1376
        %v1441 = vunpack.c.l.b16 %v1377
        %v1442 = vunpack.c.l.b16 %v1378
        %v1443 = vunpack.c.l.b16 %v1379
        %v1444 = vunpack.c.l.b16 %v1380
        %v1445 = vunpack.c.l.b16 %v1381
        %v1446 = vpack.c.b16 %v1415, %v1414
        %v1447 = vpack.c.b16 %v1417, %v1416
        %v1448 = vpack.c.b16 %v1419, %v1418
        %v1449 = vpack.c.b16 %v1421, %v1420
        %v1450 = vpack.c.b16 %v1423, %v1422
        %v1451 = vpack.c.b16 %v1425, %v1424
        %v1452 = vpack.c.b16 %v1427, %v1426
        %v1453 = vpack.c.b16 %v1429, %v1428
        %v1454 = vpack.c.b16 %v1431, %v1430
        %v1455 = vpack.c.b16 %v1433, %v1432
        %v1456 = vpack.c.b16 %v1435, %v1434
        %v1457 = vpack.c.b16 %v1437, %v1436
        %v1458 = vpack.c.b16 %v1439, %v1438
        %v1459 = vpack.c.b16 %v1441, %v1440
        %v1460 = vpack.c.b16 %v1443, %v1442
        %v1461 = vpack.c.b16 %v1445, %v1444
        %vm1478 = vcmask 31744
        %1479 = vst.msk [vmem:[#allocation3] sm:$0xff] %vm1478, %v1446
        %1480 = vst.msk [vmem:[#allocation3 + $0x8] sm:$0xff] %vm1478, %v1447
        %1481 = vst.msk [vmem:[#allocation3 + $0x10] sm:$0xff] %vm1478, %v1448
        %1482 = vst.msk [vmem:[#allocation3 + $0x18] sm:$0xff] %vm1478, %v1449
        %1483 = vst.msk [vmem:[#allocation3 + $0x20] sm:$0xff] %vm1478, %v1450
        %1484 = vst.msk [vmem:[#allocation3 + $0x28] sm:$0xff] %vm1478, %v1451
        %1485 = vst.msk [vmem:[#allocation3 + $0x30] sm:$0xff] %vm1478, %v1452
        %1486 = vst.msk [vmem:[#allocation3 + $0x38] sm:$0xff] %vm1478, %v1453
        %1487 = vst.msk [vmem:[#allocation3 + $0x40] sm:$0xff] %vm1478, %v1454
        %1488 = vst.msk [vmem:[#allocation3 + $0x48] sm:$0xff] %vm1478, %v1455
        %1489 = vst.msk [vmem:[#allocation3 + $0x50] sm:$0xff] %vm1478, %v1456
        %1490 = vst.msk [vmem:[#allocation3 + $0x58] sm:$0xff] %vm1478, %v1457
        %1491 = vst.msk [vmem:[#allocation3 + $0x60] sm:$0xff] %vm1478, %v1458
        %1492 = vst.msk [vmem:[#allocation3 + $0x68] sm:$0xff] %vm1478, %v1459
        %1493 = vst.msk [vmem:[#allocation3 + $0x70] sm:$0xff] %vm1478, %v1460
        %1494 = vst.msk [vmem:[#allocation3 + $0x78] sm:$0xff] %vm1478, %v1461
        %v1495 = vld [vmem:[#allocation2] sm:$0xf]
        %v1496 = vld [vmem:[#allocation2 + $0x4] sm:$0xf]
        %v1497 = vld [vmem:[#allocation2 + $0x8] sm:$0x1]
        %v1498 = vld [vmem:[#allocation2 + $0xc] sm:$0xf]
        %v1499 = vld [vmem:[#allocation2 + $0x10] sm:$0xf]
        %v1500 = vld [vmem:[#allocation2 + $0x14] sm:$0x1]
        %v1501 = vld [vmem:[#allocation2 + $0x18] sm:$0xf]
        %v1502 = vld [vmem:[#allocation2 + $0x1c] sm:$0xf]
        %v1503 = vld [vmem:[#allocation2 + $0x20] sm:$0x1]
        %v1504 = vld [vmem:[#allocation2 + $0x24] sm:$0xf]
        %v1505 = vld [vmem:[#allocation2 + $0x28] sm:$0xf]
        %v1506 = vld [vmem:[#allocation2 + $0x2c] sm:$0x1]
        %v1507 = vld [vmem:[#allocation2 + $0x30] sm:$0xf]
        %v1508 = vld [vmem:[#allocation2 + $0x34] sm:$0xf]
        %v1509 = vld [vmem:[#allocation2 + $0x38] sm:$0x1]
        %v1510 = vld [vmem:[#allocation2 + $0x3c] sm:$0xf]
        %v1511 = vld [vmem:[#allocation2 + $0x40] sm:$0xf]
        %v1512 = vld [vmem:[#allocation2 + $0x44] sm:$0x1]
        %v1513 = vld [vmem:[#allocation2 + $0x48] sm:$0xf]
        %v1514 = vld [vmem:[#allocation2 + $0x4c] sm:$0xf]
        %v1515 = vld [vmem:[#allocation2 + $0x50] sm:$0x1]
        %v1516 = vld [vmem:[#allocation2 + $0x54] sm:$0xf]
        %v1517 = vld [vmem:[#allocation2 + $0x58] sm:$0xf]
        %v1518 = vld [vmem:[#allocation2 + $0x5c] sm:$0x1]
        %v1519 = vld [vmem:[#allocation2 + $0x60] sm:$0xf]
        %v1520 = vld [vmem:[#allocation2 + $0x64] sm:$0xf]
        %v1521 = vld [vmem:[#allocation2 + $0x68] sm:$0x1]
        %v1522 = vld [vmem:[#allocation2 + $0x6c] sm:$0xf]
        %v1523 = vld [vmem:[#allocation2 + $0x70] sm:$0xf]
        %v1524 = vld [vmem:[#allocation2 + $0x74] sm:$0x1]
        %v1525 = vld [vmem:[#allocation2 + $0x78] sm:$0xf]
        %v1526 = vld [vmem:[#allocation2 + $0x7c] sm:$0xf]
        %v1527 = vld [vmem:[#allocation2 + $0x80] sm:$0x1]
        %v1528 = vld [vmem:[#allocation2 + $0x84] sm:$0xf]
        %v1529 = vld [vmem:[#allocation2 + $0x88] sm:$0xf]
        %v1530 = vld [vmem:[#allocation2 + $0x8c] sm:$0x1]
        %v1531 = vld [vmem:[#allocation2 + $0x90] sm:$0xf]
        %v1532 = vld [vmem:[#allocation2 + $0x94] sm:$0xf]
        %v1533 = vld [vmem:[#allocation2 + $0x98] sm:$0x1]
        %v1534 = vld [vmem:[#allocation2 + $0x9c] sm:$0xf]
        %v1535 = vld [vmem:[#allocation2 + $0xa0] sm:$0xf]
        %v1536 = vld [vmem:[#allocation2 + $0xa4] sm:$0x1]
        %v1537 = vld [vmem:[#allocation2 + $0xa8] sm:$0xf]
        %v1538 = vld [vmem:[#allocation2 + $0xac] sm:$0xf]
        %v1539 = vld [vmem:[#allocation2 + $0xb0] sm:$0x1]
        %v1540 = vld [vmem:[#allocation2 + $0xb4] sm:$0xf]
        %v1541 = vld [vmem:[#allocation2 + $0xb8] sm:$0xf]
        %v1542 = vld [vmem:[#allocation2 + $0xbc] sm:$0x1]
        %v1591 = vunpack.c.l.b16 %v1495
        %v1592 = vunpack.c.l.b16 %v1496
        %v1593 = vunpack.c.l.b16 %v1497
        %v1594 = vunpack.c.l.b16 %v1498
        %v1595 = vunpack.c.l.b16 %v1499
        %v1596 = vunpack.c.l.b16 %v1500
        %v1597 = vunpack.c.l.b16 %v1501
        %v1598 = vunpack.c.l.b16 %v1502
        %v1599 = vunpack.c.l.b16 %v1503
        %v1600 = vunpack.c.l.b16 %v1504
        %v1601 = vunpack.c.l.b16 %v1505
        %v1602 = vunpack.c.l.b16 %v1506
        %v1603 = vunpack.c.l.b16 %v1507
        %v1604 = vunpack.c.l.b16 %v1508
        %v1605 = vunpack.c.l.b16 %v1509
        %v1606 = vunpack.c.l.b16 %v1510
        %v1607 = vunpack.c.l.b16 %v1511
        %v1608 = vunpack.c.l.b16 %v1512
        %v1609 = vunpack.c.l.b16 %v1513
        %v1610 = vunpack.c.l.b16 %v1514
        %v1611 = vunpack.c.l.b16 %v1515
        %v1612 = vunpack.c.l.b16 %v1516
        %v1613 = vunpack.c.l.b16 %v1517
        %v1614 = vunpack.c.l.b16 %v1518
        %v1615 = vunpack.c.l.b16 %v1519
        %v1616 = vunpack.c.l.b16 %v1520
        %v1617 = vunpack.c.l.b16 %v1521
        %v1618 = vunpack.c.l.b16 %v1522
        %v1619 = vunpack.c.l.b16 %v1523
        %v1620 = vunpack.c.l.b16 %v1524
        %v1621 = vunpack.c.l.b16 %v1525
        %v1622 = vunpack.c.l.b16 %v1526
        %v1623 = vunpack.c.l.b16 %v1527
        %v1624 = vunpack.c.l.b16 %v1528
        %v1625 = vunpack.c.l.b16 %v1529
        %v1626 = vunpack.c.l.b16 %v1530
        %v1627 = vunpack.c.l.b16 %v1531
        %v1628 = vunpack.c.l.b16 %v1532
        %v1629 = vunpack.c.l.b16 %v1533
        %v1630 = vunpack.c.l.b16 %v1534
        %v1631 = vunpack.c.l.b16 %v1535
        %v1632 = vunpack.c.l.b16 %v1536
        %v1633 = vunpack.c.l.b16 %v1537
        %v1634 = vunpack.c.l.b16 %v1538
        %v1635 = vunpack.c.l.b16 %v1539
        %v1636 = vunpack.c.l.b16 %v1540
        %v1637 = vunpack.c.l.b16 %v1541
        %v1638 = vunpack.c.l.b16 %v1542
        %v1639 = vpack.c.b16 %v1592, %v1591
        %v1640 = vpack.c.b16 %v1593, %v1593
        %v1641 = vpack.c.b16 %v1595, %v1594
        %v1642 = vpack.c.b16 %v1596, %v1596
        %v1643 = vpack.c.b16 %v1598, %v1597
        %v1644 = vpack.c.b16 %v1599, %v1599
        %v1645 = vpack.c.b16 %v1601, %v1600
        %v1646 = vpack.c.b16 %v1602, %v1602
        %v1647 = vpack.c.b16 %v1604, %v1603
        %v1648 = vpack.c.b16 %v1605, %v1605
        %v1649 = vpack.c.b16 %v1607, %v1606
        %v1650 = vpack.c.b16 %v1608, %v1608
        %v1651 = vpack.c.b16 %v1610, %v1609
        %v1652 = vpack.c.b16 %v1611, %v1611
        %v1653 = vpack.c.b16 %v1613, %v1612
        %v1654 = vpack.c.b16 %v1614, %v1614
        %v1655 = vpack.c.b16 %v1616, %v1615
        %v1656 = vpack.c.b16 %v1617, %v1617
        %v1657 = vpack.c.b16 %v1619, %v1618
        %v1658 = vpack.c.b16 %v1620, %v1620
        %v1659 = vpack.c.b16 %v1622, %v1621
        %v1660 = vpack.c.b16 %v1623, %v1623
        %v1661 = vpack.c.b16 %v1625, %v1624
        %v1662 = vpack.c.b16 %v1626, %v1626
        %v1663 = vpack.c.b16 %v1628, %v1627
        %v1664 = vpack.c.b16 %v1629, %v1629
        %v1665 = vpack.c.b16 %v1631, %v1630
        %v1666 = vpack.c.b16 %v1632, %v1632
        %v1667 = vpack.c.b16 %v1634, %v1633
        %v1668 = vpack.c.b16 %v1635, %v1635
        %v1669 = vpack.c.b16 %v1637, %v1636
        %v1670 = vpack.c.b16 %v1638, %v1638
        %vm1671 = vsmask.f32 7424
        %v1673 = vshrl.u32 %v1639, 16
        %v1675 = vshll.u32 %v1639, 16
        %v1677 = vrot.slane %v1675, 1
        %v1678 = vor.u32 %v1673, %v1677
        %v1680 = vshll.u32 %v1640, 16
        %v1682 = vrot.slane %v1680, 1
        %v1683 = vsel %vm1671, %v1678, %v1682
        %v1685 = vshrl.u32 %v1641, 16
        %v1687 = vshll.u32 %v1641, 16
        %v1689 = vrot.slane %v1687, 1
        %v1690 = vor.u32 %v1685, %v1689
        %v1692 = vshll.u32 %v1642, 16
        %v1694 = vrot.slane %v1692, 1
        %v1695 = vsel %vm1671, %v1690, %v1694
        %v1697 = vshrl.u32 %v1643, 16
        %v1699 = vshll.u32 %v1643, 16
        %v1701 = vrot.slane %v1699, 1
        %v1702 = vor.u32 %v1697, %v1701
        %v1704 = vshll.u32 %v1644, 16
        %v1706 = vrot.slane %v1704, 1
        %v1707 = vsel %vm1671, %v1702, %v1706
        %v1709 = vshrl.u32 %v1645, 16
        %v1711 = vshll.u32 %v1645, 16
        %v1713 = vrot.slane %v1711, 1
        %v1714 = vor.u32 %v1709, %v1713
        %v1716 = vshll.u32 %v1646, 16
        %v1718 = vrot.slane %v1716, 1
        %v1719 = vsel %vm1671, %v1714, %v1718
        %v1721 = vshrl.u32 %v1647, 16
        %v1723 = vshll.u32 %v1647, 16
        %v1725 = vrot.slane %v1723, 1
        %v1726 = vor.u32 %v1721, %v1725
        %v1728 = vshll.u32 %v1648, 16
        %v1730 = vrot.slane %v1728, 1
        %v1731 = vsel %vm1671, %v1726, %v1730
        %v1733 = vshrl.u32 %v1649, 16
        %v1735 = vshll.u32 %v1649, 16
        %v1737 = vrot.slane %v1735, 1
        %v1738 = vor.u32 %v1733, %v1737
        %v1740 = vshll.u32 %v1650, 16
        %v1742 = vrot.slane %v1740, 1
        %v1743 = vsel %vm1671, %v1738, %v1742
        %v1745 = vshrl.u32 %v1651, 16
        %v1747 = vshll.u32 %v1651, 16
        %v1749 = vrot.slane %v1747, 1
        %v1750 = vor.u32 %v1745, %v1749
        %v1752 = vshll.u32 %v1652, 16
        %v1754 = vrot.slane %v1752, 1
        %v1755 = vsel %vm1671, %v1750, %v1754
        %v1757 = vshrl.u32 %v1653, 16
        %v1759 = vshll.u32 %v1653, 16
        %v1761 = vrot.slane %v1759, 1
        %v1762 = vor.u32 %v1757, %v1761
        %v1764 = vshll.u32 %v1654, 16
        %v1766 = vrot.slane %v1764, 1
        %v1767 = vsel %vm1671, %v1762, %v1766
        %v1769 = vshrl.u32 %v1655, 16
        %v1771 = vshll.u32 %v1655, 16
        %v1773 = vrot.slane %v1771, 1
        %v1774 = vor.u32 %v1769, %v1773
        %v1776 = vshll.u32 %v1656, 16
        %v1778 = vrot.slane %v1776, 1
        %v1779 = vsel %vm1671, %v1774, %v1778
        %v1781 = vshrl.u32 %v1657, 16
        %v1783 = vshll.u32 %v1657, 16
        %v1785 = vrot.slane %v1783, 1
        %v1786 = vor.u32 %v1781, %v1785
        %v1788 = vshll.u32 %v1658, 16
        %v1790 = vrot.slane %v1788, 1
        %v1791 = vsel %vm1671, %v1786, %v1790
        %v1793 = vshrl.u32 %v1659, 16
        %v1795 = vshll.u32 %v1659, 16
        %v1797 = vrot.slane %v1795, 1
        %v1798 = vor.u32 %v1793, %v1797
        %v1800 = vshll.u32 %v1660, 16
        %v1802 = vrot.slane %v1800, 1
        %v1803 = vsel %vm1671, %v1798, %v1802
        %v1805 = vshrl.u32 %v1661, 16
        %v1807 = vshll.u32 %v1661, 16
        %v1809 = vrot.slane %v1807, 1
        %v1810 = vor.u32 %v1805, %v1809
        %v1812 = vshll.u32 %v1662, 16
        %v1814 = vrot.slane %v1812, 1
        %v1815 = vsel %vm1671, %v1810, %v1814
        %v1817 = vshrl.u32 %v1663, 16
        %v1819 = vshll.u32 %v1663, 16
        %v1821 = vrot.slane %v1819, 1
        %v1822 = vor.u32 %v1817, %v1821
        %v1824 = vshll.u32 %v1664, 16
        %v1826 = vrot.slane %v1824, 1
        %v1827 = vsel %vm1671, %v1822, %v1826
        %v1829 = vshrl.u32 %v1665, 16
        %v1831 = vshll.u32 %v1665, 16
        %v1833 = vrot.slane %v1831, 1
        %v1834 = vor.u32 %v1829, %v1833
        %v1836 = vshll.u32 %v1666, 16
        %v1838 = vrot.slane %v1836, 1
        %v1839 = vsel %vm1671, %v1834, %v1838
        %v1841 = vshrl.u32 %v1667, 16
        %v1843 = vshll.u32 %v1667, 16
        %v1845 = vrot.slane %v1843, 1
        %v1846 = vor.u32 %v1841, %v1845
        %v1848 = vshll.u32 %v1668, 16
        %v1850 = vrot.slane %v1848, 1
        %v1851 = vsel %vm1671, %v1846, %v1850
        %v1853 = vshrl.u32 %v1669, 16
        %v1855 = vshll.u32 %v1669, 16
        %v1857 = vrot.slane %v1855, 1
        %v1858 = vor.u32 %v1853, %v1857
        %v1860 = vshll.u32 %v1670, 16
        %v1862 = vrot.slane %v1860, 1
        %v1863 = vsel %vm1671, %v1858, %v1862
        %1864 = vrot.lane.b32.xlu0 %v1683, 4
        %v1865 = vpop.permute.xlu0 %1864
        %1866 = vrot.lane.b32.xlu0 %v1695, 4
        %v1867 = vpop.permute.xlu0 %1866
        %1868 = vrot.lane.b32.xlu0 %v1707, 4
        %v1869 = vpop.permute.xlu0 %1868
        %1870 = vrot.lane.b32.xlu0 %v1719, 4
        %v1871 = vpop.permute.xlu0 %1870
        %1872 = vrot.lane.b32.xlu0 %v1731, 4
        %v1873 = vpop.permute.xlu0 %1872
        %1874 = vrot.lane.b32.xlu0 %v1743, 4
        %v1875 = vpop.permute.xlu0 %1874
        %1876 = vrot.lane.b32.xlu0 %v1755, 4
        %v1877 = vpop.permute.xlu0 %1876
        %1878 = vrot.lane.b32.xlu0 %v1767, 4
        %v1879 = vpop.permute.xlu0 %1878
        %1880 = vrot.lane.b32.xlu0 %v1779, 4
        %v1881 = vpop.permute.xlu0 %1880
        %1882 = vrot.lane.b32.xlu0 %v1791, 4
        %v1883 = vpop.permute.xlu0 %1882
        %1884 = vrot.lane.b32.xlu0 %v1803, 4
        %v1885 = vpop.permute.xlu0 %1884
        %1886 = vrot.lane.b32.xlu0 %v1815, 4
        %v1887 = vpop.permute.xlu0 %1886
        %1888 = vrot.lane.b32.xlu0 %v1827, 4
        %v1889 = vpop.permute.xlu0 %1888
        %1890 = vrot.lane.b32.xlu0 %v1839, 4
        %v1891 = vpop.permute.xlu0 %1890
        %1892 = vrot.lane.b32.xlu0 %v1851, 4
        %v1893 = vpop.permute.xlu0 %1892
        %1894 = vrot.lane.b32.xlu0 %v1863, 4
        %v1895 = vpop.permute.xlu0 %1894
        %vm1912 = vcmask 64544
        %1913 = vst.msk [vmem:[#allocation3] sm:$0xff] %vm1912, %v1865
        %1914 = vst.msk [vmem:[#allocation3 + $0x8] sm:$0xff] %vm1912, %v1867
        %1915 = vst.msk [vmem:[#allocation3 + $0x10] sm:$0xff] %vm1912, %v1869
        %1916 = vst.msk [vmem:[#allocation3 + $0x18] sm:$0xff] %vm1912, %v1871
        %1917 = vst.msk [vmem:[#allocation3 + $0x20] sm:$0xff] %vm1912, %v1873
        %1918 = vst.msk [vmem:[#allocation3 + $0x28] sm:$0xff] %vm1912, %v1875
        %1919 = vst.msk [vmem:[#allocation3 + $0x30] sm:$0xff] %vm1912, %v1877
        %1920 = vst.msk [vmem:[#allocation3 + $0x38] sm:$0xff] %vm1912, %v1879
        %1921 = vst.msk [vmem:[#allocation3 + $0x40] sm:$0xff] %vm1912, %v1881
        %1922 = vst.msk [vmem:[#allocation3 + $0x48] sm:$0xff] %vm1912, %v1883
        %1923 = vst.msk [vmem:[#allocation3 + $0x50] sm:$0xff] %vm1912, %v1885
        %1924 = vst.msk [vmem:[#allocation3 + $0x58] sm:$0xff] %vm1912, %v1887
        %1925 = vst.msk [vmem:[#allocation3 + $0x60] sm:$0xff] %vm1912, %v1889
        %1926 = vst.msk [vmem:[#allocation3 + $0x68] sm:$0xff] %vm1912, %v1891
        %1927 = vst.msk [vmem:[#allocation3 + $0x70] sm:$0xff] %vm1912, %v1893
        %1928 = vst.msk [vmem:[#allocation3 + $0x78] sm:$0xff] %vm1912, %v1895
        %v1929 = vld [vmem:[#allocation2] sm:$0xe]
        %v1930 = vld [vmem:[#allocation2 + $0x4] sm:$0xf]
        %v1931 = vld [vmem:[#allocation2 + $0x8] sm:$0x1]
        %v1932 = vld [vmem:[#allocation2 + $0xc] sm:$0xe]
        %v1933 = vld [vmem:[#allocation2 + $0x10] sm:$0xf]
        %v1934 = vld [vmem:[#allocation2 + $0x14] sm:$0x1]
        %v1935 = vld [vmem:[#allocation2 + $0x18] sm:$0xe]
        %v1936 = vld [vmem:[#allocation2 + $0x1c] sm:$0xf]
        %v1937 = vld [vmem:[#allocation2 + $0x20] sm:$0x1]
        %v1938 = vld [vmem:[#allocation2 + $0x24] sm:$0xe]
        %v1939 = vld [vmem:[#allocation2 + $0x28] sm:$0xf]
        %v1940 = vld [vmem:[#allocation2 + $0x2c] sm:$0x1]
        %v1941 = vld [vmem:[#allocation2 + $0x30] sm:$0xe]
        %v1942 = vld [vmem:[#allocation2 + $0x34] sm:$0xf]
        %v1943 = vld [vmem:[#allocation2 + $0x38] sm:$0x1]
        %v1944 = vld [vmem:[#allocation2 + $0x3c] sm:$0xe]
        %v1945 = vld [vmem:[#allocation2 + $0x40] sm:$0xf]
        %v1946 = vld [vmem:[#allocation2 + $0x44] sm:$0x1]
        %v1947 = vld [vmem:[#allocation2 + $0x48] sm:$0xe]
        %v1948 = vld [vmem:[#allocation2 + $0x4c] sm:$0xf]
        %v1949 = vld [vmem:[#allocation2 + $0x50] sm:$0x1]
        %v1950 = vld [vmem:[#allocation2 + $0x54] sm:$0xe]
        %v1951 = vld [vmem:[#allocation2 + $0x58] sm:$0xf]
        %v1952 = vld [vmem:[#allocation2 + $0x5c] sm:$0x1]
        %v1953 = vld [vmem:[#allocation2 + $0x60] sm:$0xe]
        %v1954 = vld [vmem:[#allocation2 + $0x64] sm:$0xf]
        %v1955 = vld [vmem:[#allocation2 + $0x68] sm:$0x1]
        %v1956 = vld [vmem:[#allocation2 + $0x6c] sm:$0xe]
        %v1957 = vld [vmem:[#allocation2 + $0x70] sm:$0xf]
        %v1958 = vld [vmem:[#allocation2 + $0x74] sm:$0x1]
        %v1959 = vld [vmem:[#allocation2 + $0x78] sm:$0xe]
        %v1960 = vld [vmem:[#allocation2 + $0x7c] sm:$0xf]
        %v1961 = vld [vmem:[#allocation2 + $0x80] sm:$0x1]
        %v1962 = vld [vmem:[#allocation2 + $0x84] sm:$0xe]
        %v1963 = vld [vmem:[#allocation2 + $0x88] sm:$0xf]
        %v1964 = vld [vmem:[#allocation2 + $0x8c] sm:$0x1]
        %v1965 = vld [vmem:[#allocation2 + $0x90] sm:$0xe]
        %v1966 = vld [vmem:[#allocation2 + $0x94] sm:$0xf]
        %v1967 = vld [vmem:[#allocation2 + $0x98] sm:$0x1]
        %v1968 = vld [vmem:[#allocation2 + $0x9c] sm:$0xe]
        %v1969 = vld [vmem:[#allocation2 + $0xa0] sm:$0xf]
        %v1970 = vld [vmem:[#allocation2 + $0xa4] sm:$0x1]
        %v1971 = vld [vmem:[#allocation2 + $0xa8] sm:$0xe]
        %v1972 = vld [vmem:[#allocation2 + $0xac] sm:$0xf]
        %v1973 = vld [vmem:[#allocation2 + $0xb0] sm:$0x1]
        %v1974 = vld [vmem:[#allocation2 + $0xb4] sm:$0xe]
        %v1975 = vld [vmem:[#allocation2 + $0xb8] sm:$0xf]
        %v1976 = vld [vmem:[#allocation2 + $0xbc] sm:$0x1]
        %v2025 = vunpack.c.l.b16 %v1929
        %v2026 = vunpack.c.l.b16 %v1930
        %v2027 = vunpack.c.l.b16 %v1931
        %v2028 = vunpack.c.l.b16 %v1932
        %v2029 = vunpack.c.l.b16 %v1933
        %v2030 = vunpack.c.l.b16 %v1934
        %v2031 = vunpack.c.l.b16 %v1935
        %v2032 = vunpack.c.l.b16 %v1936
        %v2033 = vunpack.c.l.b16 %v1937
        %v2034 = vunpack.c.l.b16 %v1938
        %v2035 = vunpack.c.l.b16 %v1939
        %v2036 = vunpack.c.l.b16 %v1940
        %v2037 = vunpack.c.l.b16 %v1941
        %v2038 = vunpack.c.l.b16 %v1942
        %v2039 = vunpack.c.l.b16 %v1943
        %v2040 = vunpack.c.l.b16 %v1944
        %v2041 = vunpack.c.l.b16 %v1945
        %v2042 = vunpack.c.l.b16 %v1946
        %v2043 = vunpack.c.l.b16 %v1947
        %v2044 = vunpack.c.l.b16 %v1948
        %v2045 = vunpack.c.l.b16 %v1949
        %v2046 = vunpack.c.l.b16 %v1950
        %v2047 = vunpack.c.l.b16 %v1951
        %v2048 = vunpack.c.l.b16 %v1952
        %v2049 = vunpack.c.l.b16 %v1953
        %v2050 = vunpack.c.l.b16 %v1954
        %v2051 = vunpack.c.l.b16 %v1955
        %v2052 = vunpack.c.l.b16 %v1956
        %v2053 = vunpack.c.l.b16 %v1957
        %v2054 = vunpack.c.l.b16 %v1958
        %v2055 = vunpack.c.l.b16 %v1959
        %v2056 = vunpack.c.l.b16 %v1960
        %v2057 = vunpack.c.l.b16 %v1961
        %v2058 = vunpack.c.l.b16 %v1962
        %v2059 = vunpack.c.l.b16 %v1963
        %v2060 = vunpack.c.l.b16 %v1964
        %v2061 = vunpack.c.l.b16 %v1965
        %v2062 = vunpack.c.l.b16 %v1966
        %v2063 = vunpack.c.l.b16 %v1967
        %v2064 = vunpack.c.l.b16 %v1968
        %v2065 = vunpack.c.l.b16 %v1969
        %v2066 = vunpack.c.l.b16 %v1970
        %v2067 = vunpack.c.l.b16 %v1971
        %v2068 = vunpack.c.l.b16 %v1972
        %v2069 = vunpack.c.l.b16 %v1973
        %v2070 = vunpack.c.l.b16 %v1974
        %v2071 = vunpack.c.l.b16 %v1975
        %v2072 = vunpack.c.l.b16 %v1976
        %v2073 = vpack.c.b16 %v2026, %v2025
        %v2074 = vpack.c.b16 %v2027, %v2027
        %v2075 = vpack.c.b16 %v2029, %v2028
        %v2076 = vpack.c.b16 %v2030, %v2030
        %v2077 = vpack.c.b16 %v2032, %v2031
        %v2078 = vpack.c.b16 %v2033, %v2033
        %v2079 = vpack.c.b16 %v2035, %v2034
        %v2080 = vpack.c.b16 %v2036, %v2036
        %v2081 = vpack.c.b16 %v2038, %v2037
        %v2082 = vpack.c.b16 %v2039, %v2039
        %v2083 = vpack.c.b16 %v2041, %v2040
        %v2084 = vpack.c.b16 %v2042, %v2042
        %v2085 = vpack.c.b16 %v2044, %v2043
        %v2086 = vpack.c.b16 %v2045, %v2045
        %v2087 = vpack.c.b16 %v2047, %v2046
        %v2088 = vpack.c.b16 %v2048, %v2048
        %v2089 = vpack.c.b16 %v2050, %v2049
        %v2090 = vpack.c.b16 %v2051, %v2051
        %v2091 = vpack.c.b16 %v2053, %v2052
        %v2092 = vpack.c.b16 %v2054, %v2054
        %v2093 = vpack.c.b16 %v2056, %v2055
        %v2094 = vpack.c.b16 %v2057, %v2057
        %v2095 = vpack.c.b16 %v2059, %v2058
        %v2096 = vpack.c.b16 %v2060, %v2060
        %v2097 = vpack.c.b16 %v2062, %v2061
        %v2098 = vpack.c.b16 %v2063, %v2063
        %v2099 = vpack.c.b16 %v2065, %v2064
        %v2100 = vpack.c.b16 %v2066, %v2066
        %v2101 = vpack.c.b16 %v2068, %v2067
        %v2102 = vpack.c.b16 %v2069, %v2069
        %v2103 = vpack.c.b16 %v2071, %v2070
        %v2104 = vpack.c.b16 %v2072, %v2072
        %vm2105 = vcmask 1046528
        %v2106 = vrot.slane %v2073, 1
        %v2107 = vrot.slane %v2074, 1
        %v2108 = vsel %vm2105, %v2106, %v2107
        %v2109 = vrot.slane %v2075, 1
        %v2110 = vrot.slane %v2076, 1
        %v2111 = vsel %vm2105, %v2109, %v2110
        %v2112 = vrot.slane %v2077, 1
        %v2113 = vrot.slane %v2078, 1
        %v2114 = vsel %vm2105, %v2112, %v2113
        %v2115 = vrot.slane %v2079, 1
        %v2116 = vrot.slane %v2080, 1
        %v2117 = vsel %vm2105, %v2115, %v2116
        %v2118 = vrot.slane %v2081, 1
        %v2119 = vrot.slane %v2082, 1
        %v2120 = vsel %vm2105, %v2118, %v2119
        %v2121 = vrot.slane %v2083, 1
        %v2122 = vrot.slane %v2084, 1
        %v2123 = vsel %vm2105, %v2121, %v2122
        %v2124 = vrot.slane %v2085, 1
        %v2125 = vrot.slane %v2086, 1
        %v2126 = vsel %vm2105, %v2124, %v2125
        %v2127 = vrot.slane %v2087, 1
        %v2128 = vrot.slane %v2088, 1
        %v2129 = vsel %vm2105, %v2127, %v2128
        %v2130 = vrot.slane %v2089, 1
        %v2131 = vrot.slane %v2090, 1
        %v2132 = vsel %vm2105, %v2130, %v2131
        %v2133 = vrot.slane %v2091, 1
        %v2134 = vrot.slane %v2092, 1
        %v2135 = vsel %vm2105, %v2133, %v2134
        %v2136 = vrot.slane %v2093, 1
        %v2137 = vrot.slane %v2094, 1
        %v2138 = vsel %vm2105, %v2136, %v2137
        %v2139 = vrot.slane %v2095, 1
        %v2140 = vrot.slane %v2096, 1
        %v2141 = vsel %vm2105, %v2139, %v2140
        %v2142 = vrot.slane %v2097, 1
        %v2143 = vrot.slane %v2098, 1
        %v2144 = vsel %vm2105, %v2142, %v2143
        %v2145 = vrot.slane %v2099, 1
        %v2146 = vrot.slane %v2100, 1
        %v2147 = vsel %vm2105, %v2145, %v2146
        %v2148 = vrot.slane %v2101, 1
        %v2149 = vrot.slane %v2102, 1
        %v2150 = vsel %vm2105, %v2148, %v2149
        %v2151 = vrot.slane %v2103, 1
        %v2152 = vrot.slane %v2104, 1
        %v2153 = vsel %vm2105, %v2151, %v2152
        %2154 = vrot.lane.b32.xlu0 %v2108, 8
        %v2155 = vpop.permute.xlu0 %2154
        %2156 = vrot.lane.b32.xlu0 %v2111, 8
        %v2157 = vpop.permute.xlu0 %2156
        %2158 = vrot.lane.b32.xlu0 %v2114, 8
        %v2159 = vpop.permute.xlu0 %2158
        %2160 = vrot.lane.b32.xlu0 %v2117, 8
        %v2161 = vpop.permute.xlu0 %2160
        %2162 = vrot.lane.b32.xlu0 %v2120, 8
        %v2163 = vpop.permute.xlu0 %2162
        %2164 = vrot.lane.b32.xlu0 %v2123, 8
        %v2165 = vpop.permute.xlu0 %2164
        %2166 = vrot.lane.b32.xlu0 %v2126, 8
        %v2167 = vpop.permute.xlu0 %2166
        %2168 = vrot.lane.b32.xlu0 %v2129, 8
        %v2169 = vpop.permute.xlu0 %2168
        %2170 = vrot.lane.b32.xlu0 %v2132, 8
        %v2171 = vpop.permute.xlu0 %2170
        %2172 = vrot.lane.b32.xlu0 %v2135, 8
        %v2173 = vpop.permute.xlu0 %2172
        %2174 = vrot.lane.b32.xlu0 %v2138, 8
        %v2175 = vpop.permute.xlu0 %2174
        %2176 = vrot.lane.b32.xlu0 %v2141, 8
        %v2177 = vpop.permute.xlu0 %2176
        %2178 = vrot.lane.b32.xlu0 %v2144, 8
        %v2179 = vpop.permute.xlu0 %2178
        %2180 = vrot.lane.b32.xlu0 %v2147, 8
        %v2181 = vpop.permute.xlu0 %2180
        %2182 = vrot.lane.b32.xlu0 %v2150, 8
        %v2183 = vpop.permute.xlu0 %2182
        %2184 = vrot.lane.b32.xlu0 %v2153, 8
        %v2185 = vpop.permute.xlu0 %2184
        %vm2202 = vcmask 97344
        %2203 = vst.msk [vmem:[#allocation3] sm:$0xff] %vm2202, %v2155
        %2204 = vst.msk [vmem:[#allocation3 + $0x8] sm:$0xff] %vm2202, %v2157
        %2205 = vst.msk [vmem:[#allocation3 + $0x10] sm:$0xff] %vm2202, %v2159
        %2206 = vst.msk [vmem:[#allocation3 + $0x18] sm:$0xff] %vm2202, %v2161
        %2207 = vst.msk [vmem:[#allocation3 + $0x20] sm:$0xff] %vm2202, %v2163
        %2208 = vst.msk [vmem:[#allocation3 + $0x28] sm:$0xff] %vm2202, %v2165
        %2209 = vst.msk [vmem:[#allocation3 + $0x30] sm:$0xff] %vm2202, %v2167
        %2210 = vst.msk [vmem:[#allocation3 + $0x38] sm:$0xff] %vm2202, %v2169
        %2211 = vst.msk [vmem:[#allocation3 + $0x40] sm:$0xff] %vm2202, %v2171
        %2212 = vst.msk [vmem:[#allocation3 + $0x48] sm:$0xff] %vm2202, %v2173
        %2213 = vst.msk [vmem:[#allocation3 + $0x50] sm:$0xff] %vm2202, %v2175
        %2214 = vst.msk [vmem:[#allocation3 + $0x58] sm:$0xff] %vm2202, %v2177
        %2215 = vst.msk [vmem:[#allocation3 + $0x60] sm:$0xff] %vm2202, %v2179
        %2216 = vst.msk [vmem:[#allocation3 + $0x68] sm:$0xff] %vm2202, %v2181
        %2217 = vst.msk [vmem:[#allocation3 + $0x70] sm:$0xff] %vm2202, %v2183
        %2218 = vst.msk [vmem:[#allocation3 + $0x78] sm:$0xff] %vm2202, %v2185
        %v2219 = vld [vmem:[%s1231] sm:$0xf]
        %v2220 = vld [vmem:[%s1231 + $0x4] sm:$0xf]
        %v2221 = vld [vmem:[%s1231 + $0xc] sm:$0xf]
        %v2222 = vld [vmem:[%s1231 + $0x10] sm:$0xf]
        %v2223 = vld [vmem:[%s1231 + $0x18] sm:$0xf]
        %v2224 = vld [vmem:[%s1231 + $0x1c] sm:$0xf]
        %v2225 = vld [vmem:[%s1231 + $0x24] sm:$0xf]
        %v2226 = vld [vmem:[%s1231 + $0x28] sm:$0xf]
        %v2227 = vld [vmem:[%s1231 + $0x30] sm:$0xf]
        %v2228 = vld [vmem:[%s1231 + $0x34] sm:$0xf]
        %v2229 = vld [vmem:[%s1231 + $0x3c] sm:$0xf]
        %v2230 = vld [vmem:[%s1231 + $0x40] sm:$0xf]
        %v2231 = vld [vmem:[%s1231 + $0x48] sm:$0xf]
        %v2232 = vld [vmem:[%s1231 + $0x4c] sm:$0xf]
        %v2233 = vld [vmem:[%s1231 + $0x54] sm:$0xf]
        %v2234 = vld [vmem:[%s1231 + $0x58] sm:$0xf]
        %v2235 = vld [vmem:[%s1231 + $0x60] sm:$0xf]
        %v2236 = vld [vmem:[%s1231 + $0x64] sm:$0xf]
        %v2237 = vld [vmem:[%s1231 + $0x6c] sm:$0xf]
        %v2238 = vld [vmem:[%s1231 + $0x70] sm:$0xf]
        %v2239 = vld [vmem:[%s1231 + $0x78] sm:$0xf]
        %v2240 = vld [vmem:[%s1231 + $0x7c] sm:$0xf]
        %v2241 = vld [vmem:[%s1231 + $0x84] sm:$0xf]
        %v2242 = vld [vmem:[%s1231 + $0x88] sm:$0xf]
        %v2243 = vld [vmem:[%s1231 + $0x90] sm:$0xf]
        %v2244 = vld [vmem:[%s1231 + $0x94] sm:$0xf]
        %v2245 = vld [vmem:[%s1231 + $0x9c] sm:$0xf]
        %v2246 = vld [vmem:[%s1231 + $0xa0] sm:$0xf]
        %v2247 = vld [vmem:[%s1231 + $0xa8] sm:$0xf]
        %v2248 = vld [vmem:[%s1231 + $0xac] sm:$0xf]
        %v2249 = vld [vmem:[%s1231 + $0xb4] sm:$0xf]
        %v2250 = vld [vmem:[%s1231 + $0xb8] sm:$0xf]
        %v2283 = vunpack.c.l.b16 %v2219
        %v2284 = vunpack.c.l.b16 %v2220
        %v2285 = vunpack.c.l.b16 %v2221
        %v2286 = vunpack.c.l.b16 %v2222
        %v2287 = vunpack.c.l.b16 %v2223
        %v2288 = vunpack.c.l.b16 %v2224
        %v2289 = vunpack.c.l.b16 %v2225
        %v2290 = vunpack.c.l.b16 %v2226
        %v2291 = vunpack.c.l.b16 %v2227
        %v2292 = vunpack.c.l.b16 %v2228
        %v2293 = vunpack.c.l.b16 %v2229
        %v2294 = vunpack.c.l.b16 %v2230
        %v2295 = vunpack.c.l.b16 %v2231
        %v2296 = vunpack.c.l.b16 %v2232
        %v2297 = vunpack.c.l.b16 %v2233
        %v2298 = vunpack.c.l.b16 %v2234
        %v2299 = vunpack.c.l.b16 %v2235
        %v2300 = vunpack.c.l.b16 %v2236
        %v2301 = vunpack.c.l.b16 %v2237
        %v2302 = vunpack.c.l.b16 %v2238
        %v2303 = vunpack.c.l.b16 %v2239
        %v2304 = vunpack.c.l.b16 %v2240
        %v2305 = vunpack.c.l.b16 %v2241
        %v2306 = vunpack.c.l.b16 %v2242
        %v2307 = vunpack.c.l.b16 %v2243
        %v2308 = vunpack.c.l.b16 %v2244
        %v2309 = vunpack.c.l.b16 %v2245
        %v2310 = vunpack.c.l.b16 %v2246
        %v2311 = vunpack.c.l.b16 %v2247
        %v2312 = vunpack.c.l.b16 %v2248
        %v2313 = vunpack.c.l.b16 %v2249
        %v2314 = vunpack.c.l.b16 %v2250
        %v2315 = vpack.c.b16 %v2284, %v2283
        %v2316 = vpack.c.b16 %v2286, %v2285
        %v2317 = vpack.c.b16 %v2288, %v2287
        %v2318 = vpack.c.b16 %v2290, %v2289
        %v2319 = vpack.c.b16 %v2292, %v2291
        %v2320 = vpack.c.b16 %v2294, %v2293
        %v2321 = vpack.c.b16 %v2296, %v2295
        %v2322 = vpack.c.b16 %v2298, %v2297
        %v2323 = vpack.c.b16 %v2300, %v2299
        %v2324 = vpack.c.b16 %v2302, %v2301
        %v2325 = vpack.c.b16 %v2304, %v2303
        %v2326 = vpack.c.b16 %v2306, %v2305
        %v2327 = vpack.c.b16 %v2308, %v2307
        %v2328 = vpack.c.b16 %v2310, %v2309
        %v2329 = vpack.c.b16 %v2312, %v2311
        %v2330 = vpack.c.b16 %v2314, %v2313
        %2331 = vrot.lane.b32.xlu0 %v2315, 12
        %v2332 = vpop.permute.xlu0 %2331
        %2333 = vrot.lane.b32.xlu0 %v2316, 12
        %v2334 = vpop.permute.xlu0 %2333
        %2335 = vrot.lane.b32.xlu0 %v2317, 12
        %v2336 = vpop.permute.xlu0 %2335
        %2337 = vrot.lane.b32.xlu0 %v2318, 12
        %v2338 = vpop.permute.xlu0 %2337
        %2339 = vrot.lane.b32.xlu0 %v2319, 12
        %v2340 = vpop.permute.xlu0 %2339
        %2341 = vrot.lane.b32.xlu0 %v2320, 12
        %v2342 = vpop.permute.xlu0 %2341
        %2343 = vrot.lane.b32.xlu0 %v2321, 12
        %v2344 = vpop.permute.xlu0 %2343
        %2345 = vrot.lane.b32.xlu0 %v2322, 12
        %v2346 = vpop.permute.xlu0 %2345
        %2347 = vrot.lane.b32.xlu0 %v2323, 12
        %v2348 = vpop.permute.xlu0 %2347
        %2349 = vrot.lane.b32.xlu0 %v2324, 12
        %v2350 = vpop.permute.xlu0 %2349
        %2351 = vrot.lane.b32.xlu0 %v2325, 12
        %v2352 = vpop.permute.xlu0 %2351
        %2353 = vrot.lane.b32.xlu0 %v2326, 12
        %v2354 = vpop.permute.xlu0 %2353
        %2355 = vrot.lane.b32.xlu0 %v2327, 12
        %v2356 = vpop.permute.xlu0 %2355
        %2357 = vrot.lane.b32.xlu0 %v2328, 12
        %v2358 = vpop.permute.xlu0 %2357
        %2359 = vrot.lane.b32.xlu0 %v2329, 12
        %v2360 = vpop.permute.xlu0 %2359
        %2361 = vrot.lane.b32.xlu0 %v2330, 12
        %v2362 = vpop.permute.xlu0 %2361
        %vm2379 = vcmask 130144
        %2380 = vst.msk [vmem:[#allocation3] sm:$0xff] %vm2379, %v2332
        %2381 = vst.msk [vmem:[#allocation3 + $0x8] sm:$0xff] %vm2379, %v2334
        %2382 = vst.msk [vmem:[#allocation3 + $0x10] sm:$0xff] %vm2379, %v2336
        %2383 = vst.msk [vmem:[#allocation3 + $0x18] sm:$0xff] %vm2379, %v2338
        %2384 = vst.msk [vmem:[#allocation3 + $0x20] sm:$0xff] %vm2379, %v2340
        %2385 = vst.msk [vmem:[#allocation3 + $0x28] sm:$0xff] %vm2379, %v2342
        %2386 = vst.msk [vmem:[#allocation3 + $0x30] sm:$0xff] %vm2379, %v2344
        %2387 = vst.msk [vmem:[#allocation3 + $0x38] sm:$0xff] %vm2379, %v2346
        %2388 = vst.msk [vmem:[#allocation3 + $0x40] sm:$0xff] %vm2379, %v2348
        %2389 = vst.msk [vmem:[#allocation3 + $0x48] sm:$0xff] %vm2379, %v2350
        %2390 = vst.msk [vmem:[#allocation3 + $0x50] sm:$0xff] %vm2379, %v2352
        %2391 = vst.msk [vmem:[#allocation3 + $0x58] sm:$0xff] %vm2379, %v2354
        %2392 = vst.msk [vmem:[#allocation3 + $0x60] sm:$0xff] %vm2379, %v2356
        %2393 = vst.msk [vmem:[#allocation3 + $0x68] sm:$0xff] %vm2379, %v2358
        %2394 = vst.msk [vmem:[#allocation3 + $0x70] sm:$0xff] %vm2379, %v2360
        %2395 = vst.msk [vmem:[#allocation3 + $0x78] sm:$0xff] %vm2379, %v2362
        %v2396 = vld [vmem:[%s1231] sm:$0xf]
        %v2397 = vld [vmem:[%s1231 + $0x4] sm:$0xf]
        %v2398 = vld [vmem:[%s1231 + $0x8] sm:$0x1]
        %v2399 = vld [vmem:[%s1231 + $0xc] sm:$0xf]
        %v2400 = vld [vmem:[%s1231 + $0x10] sm:$0xf]
        %v2401 = vld [vmem:[%s1231 + $0x14] sm:$0x1]
        %v2402 = vld [vmem:[%s1231 + $0x18] sm:$0xf]
        %v2403 = vld [vmem:[%s1231 + $0x1c] sm:$0xf]
        %v2404 = vld [vmem:[%s1231 + $0x20] sm:$0x1]
        %v2405 = vld [vmem:[%s1231 + $0x24] sm:$0xf]
        %v2406 = vld [vmem:[%s1231 + $0x28] sm:$0xf]
        %v2407 = vld [vmem:[%s1231 + $0x2c] sm:$0x1]
        %v2408 = vld [vmem:[%s1231 + $0x30] sm:$0xf]
        %v2409 = vld [vmem:[%s1231 + $0x34] sm:$0xf]
        %v2410 = vld [vmem:[%s1231 + $0x38] sm:$0x1]
        %v2411 = vld [vmem:[%s1231 + $0x3c] sm:$0xf]
        %v2412 = vld [vmem:[%s1231 + $0x40] sm:$0xf]
        %v2413 = vld [vmem:[%s1231 + $0x44] sm:$0x1]
        %v2414 = vld [vmem:[%s1231 + $0x48] sm:$0xf]
        %v2415 = vld [vmem:[%s1231 + $0x4c] sm:$0xf]
        %v2416 = vld [vmem:[%s1231 + $0x50] sm:$0x1]
        %v2417 = vld [vmem:[%s1231 + $0x54] sm:$0xf]
        %v2418 = vld [vmem:[%s1231 + $0x58] sm:$0xf]
        %v2419 = vld [vmem:[%s1231 + $0x5c] sm:$0x1]
        %v2420 = vld [vmem:[%s1231 + $0x60] sm:$0xf]
        %v2421 = vld [vmem:[%s1231 + $0x64] sm:$0xf]
        %v2422 = vld [vmem:[%s1231 + $0x68] sm:$0x1]
        %v2423 = vld [vmem:[%s1231 + $0x6c] sm:$0xf]
        %v2424 = vld [vmem:[%s1231 + $0x70] sm:$0xf]
        %v2425 = vld [vmem:[%s1231 + $0x74] sm:$0x1]
        %v2426 = vld [vmem:[%s1231 + $0x78] sm:$0xf]
        %v2427 = vld [vmem:[%s1231 + $0x7c] sm:$0xf]
        %v2428 = vld [vmem:[%s1231 + $0x80] sm:$0x1]
        %v2429 = vld [vmem:[%s1231 + $0x84] sm:$0xf]
        %v2430 = vld [vmem:[%s1231 + $0x88] sm:$0xf]
        %v2431 = vld [vmem:[%s1231 + $0x8c] sm:$0x1]
        %v2432 = vld [vmem:[%s1231 + $0x90] sm:$0xf]
        %v2433 = vld [vmem:[%s1231 + $0x94] sm:$0xf]
        %v2434 = vld [vmem:[%s1231 + $0x98] sm:$0x1]
        %v2435 = vld [vmem:[%s1231 + $0x9c] sm:$0xf]
        %v2436 = vld [vmem:[%s1231 + $0xa0] sm:$0xf]
        %v2437 = vld [vmem:[%s1231 + $0xa4] sm:$0x1]
        %v2438 = vld [vmem:[%s1231 + $0xa8] sm:$0xf]
        %v2439 = vld [vmem:[%s1231 + $0xac] sm:$0xf]
        %v2440 = vld [vmem:[%s1231 + $0xb0] sm:$0x1]
        %v2441 = vld [vmem:[%s1231 + $0xb4] sm:$0xf]
        %v2442 = vld [vmem:[%s1231 + $0xb8] sm:$0xf]
        %v2443 = vld [vmem:[%s1231 + $0xbc] sm:$0x1]
        %v2492 = vunpack.c.l.b16 %v2396
        %v2493 = vunpack.c.l.b16 %v2397
        %v2494 = vunpack.c.l.b16 %v2398
        %v2495 = vunpack.c.l.b16 %v2399
        %v2496 = vunpack.c.l.b16 %v2400
        %v2497 = vunpack.c.l.b16 %v2401
        %v2498 = vunpack.c.l.b16 %v2402
        %v2499 = vunpack.c.l.b16 %v2403
        %v2500 = vunpack.c.l.b16 %v2404
        %v2501 = vunpack.c.l.b16 %v2405
        %v2502 = vunpack.c.l.b16 %v2406
        %v2503 = vunpack.c.l.b16 %v2407
        %v2504 = vunpack.c.l.b16 %v2408
        %v2505 = vunpack.c.l.b16 %v2409
        %v2506 = vunpack.c.l.b16 %v2410
        %v2507 = vunpack.c.l.b16 %v2411
        %v2508 = vunpack.c.l.b16 %v2412
        %v2509 = vunpack.c.l.b16 %v2413
        %v2510 = vunpack.c.l.b16 %v2414
        %v2511 = vunpack.c.l.b16 %v2415
        %v2512 = vunpack.c.l.b16 %v2416
        %v2513 = vunpack.c.l.b16 %v2417
        %v2514 = vunpack.c.l.b16 %v2418
        %v2515 = vunpack.c.l.b16 %v2419
        %v2516 = vunpack.c.l.b16 %v2420
        %v2517 = vunpack.c.l.b16 %v2421
        %v2518 = vunpack.c.l.b16 %v2422
        %v2519 = vunpack.c.l.b16 %v2423
        %v2520 = vunpack.c.l.b16 %v2424
        %v2521 = vunpack.c.l.b16 %v2425
        %v2522 = vunpack.c.l.b16 %v2426
        %v2523 = vunpack.c.l.b16 %v2427
        %v2524 = vunpack.c.l.b16 %v2428
        %v2525 = vunpack.c.l.b16 %v2429
        %v2526 = vunpack.c.l.b16 %v2430
        %v2527 = vunpack.c.l.b16 %v2431
        %v2528 = vunpack.c.l.b16 %v2432
        %v2529 = vunpack.c.l.b16 %v2433
        %v2530 = vunpack.c.l.b16 %v2434
        %v2531 = vunpack.c.l.b16 %v2435
        %v2532 = vunpack.c.l.b16 %v2436
        %v2533 = vunpack.c.l.b16 %v2437
        %v2534 = vunpack.c.l.b16 %v2438
        %v2535 = vunpack.c.l.b16 %v2439
        %v2536 = vunpack.c.l.b16 %v2440
        %v2537 = vunpack.c.l.b16 %v2441
        %v2538 = vunpack.c.l.b16 %v2442
        %v2539 = vunpack.c.l.b16 %v2443
        %v2540 = vpack.c.b16 %v2493, %v2492
        %v2541 = vpack.c.b16 %v2494, %v2494
        %v2542 = vpack.c.b16 %v2496, %v2495
        %v2543 = vpack.c.b16 %v2497, %v2497
        %v2544 = vpack.c.b16 %v2499, %v2498
        %v2545 = vpack.c.b16 %v2500, %v2500
        %v2546 = vpack.c.b16 %v2502, %v2501
        %v2547 = vpack.c.b16 %v2503, %v2503
        %v2548 = vpack.c.b16 %v2505, %v2504
        %v2549 = vpack.c.b16 %v2506, %v2506
        %v2550 = vpack.c.b16 %v2508, %v2507
        %v2551 = vpack.c.b16 %v2509, %v2509
        %v2552 = vpack.c.b16 %v2511, %v2510
        %v2553 = vpack.c.b16 %v2512, %v2512
        %v2554 = vpack.c.b16 %v2514, %v2513
        %v2555 = vpack.c.b16 %v2515, %v2515
        %v2556 = vpack.c.b16 %v2517, %v2516
        %v2557 = vpack.c.b16 %v2518, %v2518
        %v2558 = vpack.c.b16 %v2520, %v2519
        %v2559 = vpack.c.b16 %v2521, %v2521
        %v2560 = vpack.c.b16 %v2523, %v2522
        %v2561 = vpack.c.b16 %v2524, %v2524
        %v2562 = vpack.c.b16 %v2526, %v2525
        %v2563 = vpack.c.b16 %v2527, %v2527
        %v2564 = vpack.c.b16 %v2529, %v2528
        %v2565 = vpack.c.b16 %v2530, %v2530
        %v2566 = vpack.c.b16 %v2532, %v2531
        %v2567 = vpack.c.b16 %v2533, %v2533
        %v2568 = vpack.c.b16 %v2535, %v2534
        %v2569 = vpack.c.b16 %v2536, %v2536
        %v2570 = vpack.c.b16 %v2538, %v2537
        %v2571 = vpack.c.b16 %v2539, %v2539
        %v2573 = vshrl.u32 %v2540, 16
        %v2575 = vshll.u32 %v2540, 16
        %v2577 = vrot.slane %v2575, 1
        %v2578 = vor.u32 %v2573, %v2577
        %v2580 = vshll.u32 %v2541, 16
        %v2582 = vrot.slane %v2580, 1
        %v2583 = vsel %vm1671, %v2578, %v2582
        %v2585 = vshrl.u32 %v2542, 16
        %v2587 = vshll.u32 %v2542, 16
        %v2589 = vrot.slane %v2587, 1
        %v2590 = vor.u32 %v2585, %v2589
        %v2592 = vshll.u32 %v2543, 16
        %v2594 = vrot.slane %v2592, 1
        %v2595 = vsel %vm1671, %v2590, %v2594
        %v2597 = vshrl.u32 %v2544, 16
        %v2599 = vshll.u32 %v2544, 16
        %v2601 = vrot.slane %v2599, 1
        %v2602 = vor.u32 %v2597, %v2601
        %v2604 = vshll.u32 %v2545, 16
        %v2606 = vrot.slane %v2604, 1
        %v2607 = vsel %vm1671, %v2602, %v2606
        %v2609 = vshrl.u32 %v2546, 16
        %v2611 = vshll.u32 %v2546, 16
        %v2613 = vrot.slane %v2611, 1
        %v2614 = vor.u32 %v2609, %v2613
        %v2616 = vshll.u32 %v2547, 16
        %v2618 = vrot.slane %v2616, 1
        %v2619 = vsel %vm1671, %v2614, %v2618
        %v2621 = vshrl.u32 %v2548, 16
        %v2623 = vshll.u32 %v2548, 16
        %v2625 = vrot.slane %v2623, 1
        %v2626 = vor.u32 %v2621, %v2625
        %v2628 = vshll.u32 %v2549, 16
        %v2630 = vrot.slane %v2628, 1
        %v2631 = vsel %vm1671, %v2626, %v2630
        %v2633 = vshrl.u32 %v2550, 16
        %v2635 = vshll.u32 %v2550, 16
        %v2637 = vrot.slane %v2635, 1
        %v2638 = vor.u32 %v2633, %v2637
        %v2640 = vshll.u32 %v2551, 16
        %v2642 = vrot.slane %v2640, 1
        %v2643 = vsel %vm1671, %v2638, %v2642
        %v2645 = vshrl.u32 %v2552, 16
        %v2647 = vshll.u32 %v2552, 16
        %v2649 = vrot.slane %v2647, 1
        %v2650 = vor.u32 %v2645, %v2649
        %v2652 = vshll.u32 %v2553, 16
        %v2654 = vrot.slane %v2652, 1
        %v2655 = vsel %vm1671, %v2650, %v2654
        %v2657 = vshrl.u32 %v2554, 16
        %v2659 = vshll.u32 %v2554, 16
        %v2661 = vrot.slane %v2659, 1
        %v2662 = vor.u32 %v2657, %v2661
        %v2664 = vshll.u32 %v2555, 16
        %v2666 = vrot.slane %v2664, 1
        %v2667 = vsel %vm1671, %v2662, %v2666
        %v2669 = vshrl.u32 %v2556, 16
        %v2671 = vshll.u32 %v2556, 16
        %v2673 = vrot.slane %v2671, 1
        %v2674 = vor.u32 %v2669, %v2673
        %v2676 = vshll.u32 %v2557, 16
        %v2678 = vrot.slane %v2676, 1
        %v2679 = vsel %vm1671, %v2674, %v2678
        %v2681 = vshrl.u32 %v2558, 16
        %v2683 = vshll.u32 %v2558, 16
        %v2685 = vrot.slane %v2683, 1
        %v2686 = vor.u32 %v2681, %v2685
        %v2688 = vshll.u32 %v2559, 16
        %v2690 = vrot.slane %v2688, 1
        %v2691 = vsel %vm1671, %v2686, %v2690
        %v2693 = vshrl.u32 %v2560, 16
        %v2695 = vshll.u32 %v2560, 16
        %v2697 = vrot.slane %v2695, 1
        %v2698 = vor.u32 %v2693, %v2697
        %v2700 = vshll.u32 %v2561, 16
        %v2702 = vrot.slane %v2700, 1
        %v2703 = vsel %vm1671, %v2698, %v2702
        %v2705 = vshrl.u32 %v2562, 16
        %v2707 = vshll.u32 %v2562, 16
        %v2709 = vrot.slane %v2707, 1
        %v2710 = vor.u32 %v2705, %v2709
        %v2712 = vshll.u32 %v2563, 16
        %v2714 = vrot.slane %v2712, 1
        %v2715 = vsel %vm1671, %v2710, %v2714
        %v2717 = vshrl.u32 %v2564, 16
        %v2719 = vshll.u32 %v2564, 16
        %v2721 = vrot.slane %v2719, 1
        %v2722 = vor.u32 %v2717, %v2721
        %v2724 = vshll.u32 %v2565, 16
        %v2726 = vrot.slane %v2724, 1
        %v2727 = vsel %vm1671, %v2722, %v2726
        %v2729 = vshrl.u32 %v2566, 16
        %v2731 = vshll.u32 %v2566, 16
        %v2733 = vrot.slane %v2731, 1
        %v2734 = vor.u32 %v2729, %v2733
        %v2736 = vshll.u32 %v2567, 16
        %v2738 = vrot.slane %v2736, 1
        %v2739 = vsel %vm1671, %v2734, %v2738
        %v2741 = vshrl.u32 %v2568, 16
        %v2743 = vshll.u32 %v2568, 16
        %v2745 = vrot.slane %v2743, 1
        %v2746 = vor.u32 %v2741, %v2745
        %v2748 = vshll.u32 %v2569, 16
        %v2750 = vrot.slane %v2748, 1
        %v2751 = vsel %vm1671, %v2746, %v2750
        %v2753 = vshrl.u32 %v2570, 16
        %v2755 = vshll.u32 %v2570, 16
        %v2757 = vrot.slane %v2755, 1
        %v2758 = vor.u32 %v2753, %v2757
        %v2760 = vshll.u32 %v2571, 16
        %v2762 = vrot.slane %v2760, 1
        %v2763 = vsel %vm1671, %v2758, %v2762
        %2764 = vrot.lane.b32.xlu0 %v2583, 16
        %v2765 = vpop.permute.xlu0 %2764
        %2766 = vrot.lane.b32.xlu0 %v2595, 16
        %v2767 = vpop.permute.xlu0 %2766
        %2768 = vrot.lane.b32.xlu0 %v2607, 16
        %v2769 = vpop.permute.xlu0 %2768
        %2770 = vrot.lane.b32.xlu0 %v2619, 16
        %v2771 = vpop.permute.xlu0 %2770
        %2772 = vrot.lane.b32.xlu0 %v2631, 16
        %v2773 = vpop.permute.xlu0 %2772
        %2774 = vrot.lane.b32.xlu0 %v2643, 16
        %v2775 = vpop.permute.xlu0 %2774
        %2776 = vrot.lane.b32.xlu0 %v2655, 16
        %v2777 = vpop.permute.xlu0 %2776
        %2778 = vrot.lane.b32.xlu0 %v2667, 16
        %v2779 = vpop.permute.xlu0 %2778
        %2780 = vrot.lane.b32.xlu0 %v2679, 16
        %v2781 = vpop.permute.xlu0 %2780
        %2782 = vrot.lane.b32.xlu0 %v2691, 16
        %v2783 = vpop.permute.xlu0 %2782
        %2784 = vrot.lane.b32.xlu0 %v2703, 16
        %v2785 = vpop.permute.xlu0 %2784
        %2786 = vrot.lane.b32.xlu0 %v2715, 16
        %v2787 = vpop.permute.xlu0 %2786
        %2788 = vrot.lane.b32.xlu0 %v2727, 16
        %v2789 = vpop.permute.xlu0 %2788
        %2790 = vrot.lane.b32.xlu0 %v2739, 16
        %v2791 = vpop.permute.xlu0 %2790
        %2792 = vrot.lane.b32.xlu0 %v2751, 16
        %v2793 = vpop.permute.xlu0 %2792
        %2794 = vrot.lane.b32.xlu0 %v2763, 16
        %v2795 = vpop.permute.xlu0 %2794
        %vm2812 = vcmask 162944
        %2813 = vst.msk [vmem:[#allocation3] sm:$0xff] %vm2812, %v2765
        %2814 = vst.msk [vmem:[#allocation3 + $0x8] sm:$0xff] %vm2812, %v2767
        %2815 = vst.msk [vmem:[#allocation3 + $0x10] sm:$0xff] %vm2812, %v2769
        %2816 = vst.msk [vmem:[#allocation3 + $0x18] sm:$0xff] %vm2812, %v2771
        %2817 = vst.msk [vmem:[#allocation3 + $0x20] sm:$0xff] %vm2812, %v2773
        %2818 = vst.msk [vmem:[#allocation3 + $0x28] sm:$0xff] %vm2812, %v2775
        %2819 = vst.msk [vmem:[#allocation3 + $0x30] sm:$0xff] %vm2812, %v2777
        %2820 = vst.msk [vmem:[#allocation3 + $0x38] sm:$0xff] %vm2812, %v2779
        %2821 = vst.msk [vmem:[#allocation3 + $0x40] sm:$0xff] %vm2812, %v2781
        %2822 = vst.msk [vmem:[#allocation3 + $0x48] sm:$0xff] %vm2812, %v2783
        %2823 = vst.msk [vmem:[#allocation3 + $0x50] sm:$0xff] %vm2812, %v2785
        %2824 = vst.msk [vmem:[#allocation3 + $0x58] sm:$0xff] %vm2812, %v2787
        %2825 = vst.msk [vmem:[#allocation3 + $0x60] sm:$0xff] %vm2812, %v2789
        %2826 = vst.msk [vmem:[#allocation3 + $0x68] sm:$0xff] %vm2812, %v2791
        %2827 = vst.msk [vmem:[#allocation3 + $0x70] sm:$0xff] %vm2812, %v2793
        %2828 = vst.msk [vmem:[#allocation3 + $0x78] sm:$0xff] %vm2812, %v2795
        %v2829 = vld [vmem:[%s1231] sm:$0xe]
        %v2830 = vld [vmem:[%s1231 + $0x4] sm:$0xf]
        %v2831 = vld [vmem:[%s1231 + $0x8] sm:$0x1]
        %v2832 = vld [vmem:[%s1231 + $0xc] sm:$0xe]
        %v2833 = vld [vmem:[%s1231 + $0x10] sm:$0xf]
        %v2834 = vld [vmem:[%s1231 + $0x14] sm:$0x1]
        %v2835 = vld [vmem:[%s1231 + $0x18] sm:$0xe]
        %v2836 = vld [vmem:[%s1231 + $0x1c] sm:$0xf]
        %v2837 = vld [vmem:[%s1231 + $0x20] sm:$0x1]
        %v2838 = vld [vmem:[%s1231 + $0x24] sm:$0xe]
        %v2839 = vld [vmem:[%s1231 + $0x28] sm:$0xf]
        %v2840 = vld [vmem:[%s1231 + $0x2c] sm:$0x1]
        %v2841 = vld [vmem:[%s1231 + $0x30] sm:$0xe]
        %v2842 = vld [vmem:[%s1231 + $0x34] sm:$0xf]
        %v2843 = vld [vmem:[%s1231 + $0x38] sm:$0x1]
        %v2844 = vld [vmem:[%s1231 + $0x3c] sm:$0xe]
        %v2845 = vld [vmem:[%s1231 + $0x40] sm:$0xf]
        %v2846 = vld [vmem:[%s1231 + $0x44] sm:$0x1]
        %v2847 = vld [vmem:[%s1231 + $0x48] sm:$0xe]
        %v2848 = vld [vmem:[%s1231 + $0x4c] sm:$0xf]
        %v2849 = vld [vmem:[%s1231 + $0x50] sm:$0x1]
        %v2850 = vld [vmem:[%s1231 + $0x54] sm:$0xe]
        %v2851 = vld [vmem:[%s1231 + $0x58] sm:$0xf]
        %v2852 = vld [vmem:[%s1231 + $0x5c] sm:$0x1]
        %v2853 = vld [vmem:[%s1231 + $0x60] sm:$0xe]
        %v2854 = vld [vmem:[%s1231 + $0x64] sm:$0xf]
        %v2855 = vld [vmem:[%s1231 + $0x68] sm:$0x1]
        %v2856 = vld [vmem:[%s1231 + $0x6c] sm:$0xe]
        %v2857 = vld [vmem:[%s1231 + $0x70] sm:$0xf]
        %v2858 = vld [vmem:[%s1231 + $0x74] sm:$0x1]
        %v2859 = vld [vmem:[%s1231 + $0x78] sm:$0xe]
        %v2860 = vld [vmem:[%s1231 + $0x7c] sm:$0xf]
        %v2861 = vld [vmem:[%s1231 + $0x80] sm:$0x1]
        %v2862 = vld [vmem:[%s1231 + $0x84] sm:$0xe]
        %v2863 = vld [vmem:[%s1231 + $0x88] sm:$0xf]
        %v2864 = vld [vmem:[%s1231 + $0x8c] sm:$0x1]
        %v2865 = vld [vmem:[%s1231 + $0x90] sm:$0xe]
        %v2866 = vld [vmem:[%s1231 + $0x94] sm:$0xf]
        %v2867 = vld [vmem:[%s1231 + $0x98] sm:$0x1]
        %v2868 = vld [vmem:[%s1231 + $0x9c] sm:$0xe]
        %v2869 = vld [vmem:[%s1231 + $0xa0] sm:$0xf]
        %v2870 = vld [vmem:[%s1231 + $0xa4] sm:$0x1]
        %v2871 = vld [vmem:[%s1231 + $0xa8] sm:$0xe]
        %v2872 = vld [vmem:[%s1231 + $0xac] sm:$0xf]
        %v2873 = vld [vmem:[%s1231 + $0xb0] sm:$0x1]
        %v2874 = vld [vmem:[%s1231 + $0xb4] sm:$0xe]
        %v2875 = vld [vmem:[%s1231 + $0xb8] sm:$0xf]
        %v2876 = vld [vmem:[%s1231 + $0xbc] sm:$0x1]
        %v2925 = vunpack.c.l.b16 %v2829
        %v2926 = vunpack.c.l.b16 %v2830
        %v2927 = vunpack.c.l.b16 %v2831
        %v2928 = vunpack.c.l.b16 %v2832
        %v2929 = vunpack.c.l.b16 %v2833
        %v2930 = vunpack.c.l.b16 %v2834
        %v2931 = vunpack.c.l.b16 %v2835
        %v2932 = vunpack.c.l.b16 %v2836
        %v2933 = vunpack.c.l.b16 %v2837
        %v2934 = vunpack.c.l.b16 %v2838
        %v2935 = vunpack.c.l.b16 %v2839
        %v2936 = vunpack.c.l.b16 %v2840
        %v2937 = vunpack.c.l.b16 %v2841
        %v2938 = vunpack.c.l.b16 %v2842
        %v2939 = vunpack.c.l.b16 %v2843
        %v2940 = vunpack.c.l.b16 %v2844
        %v2941 = vunpack.c.l.b16 %v2845
        %v2942 = vunpack.c.l.b16 %v2846
        %v2943 = vunpack.c.l.b16 %v2847
        %v2944 = vunpack.c.l.b16 %v2848
        %v2945 = vunpack.c.l.b16 %v2849
        %v2946 = vunpack.c.l.b16 %v2850
        %v2947 = vunpack.c.l.b16 %v2851
        %v2948 = vunpack.c.l.b16 %v2852
        %v2949 = vunpack.c.l.b16 %v2853
        %v2950 = vunpack.c.l.b16 %v2854
        %v2951 = vunpack.c.l.b16 %v2855
        %v2952 = vunpack.c.l.b16 %v2856
        %v2953 = vunpack.c.l.b16 %v2857
        %v2954 = vunpack.c.l.b16 %v2858
        %v2955 = vunpack.c.l.b16 %v2859
        %v2956 = vunpack.c.l.b16 %v2860
        %v2957 = vunpack.c.l.b16 %v2861
        %v2958 = vunpack.c.l.b16 %v2862
        %v2959 = vunpack.c.l.b16 %v2863
        %v2960 = vunpack.c.l.b16 %v2864
        %v2961 = vunpack.c.l.b16 %v2865
        %v2962 = vunpack.c.l.b16 %v2866
        %v2963 = vunpack.c.l.b16 %v2867
        %v2964 = vunpack.c.l.b16 %v2868
        %v2965 = vunpack.c.l.b16 %v2869
        %v2966 = vunpack.c.l.b16 %v2870
        %v2967 = vunpack.c.l.b16 %v2871
        %v2968 = vunpack.c.l.b16 %v2872
        %v2969 = vunpack.c.l.b16 %v2873
        %v2970 = vunpack.c.l.b16 %v2874
        %v2971 = vunpack.c.l.b16 %v2875
        %v2972 = vunpack.c.l.b16 %v2876
        %v2973 = vpack.c.b16 %v2926, %v2925
        %v2974 = vpack.c.b16 %v2927, %v2927
        %v2975 = vpack.c.b16 %v2929, %v2928
        %v2976 = vpack.c.b16 %v2930, %v2930
        %v2977 = vpack.c.b16 %v2932, %v2931
        %v2978 = vpack.c.b16 %v2933, %v2933
        %v2979 = vpack.c.b16 %v2935, %v2934
        %v2980 = vpack.c.b16 %v2936, %v2936
        %v2981 = vpack.c.b16 %v2938, %v2937
        %v2982 = vpack.c.b16 %v2939, %v2939
        %v2983 = vpack.c.b16 %v2941, %v2940
        %v2984 = vpack.c.b16 %v2942, %v2942
        %v2985 = vpack.c.b16 %v2944, %v2943
        %v2986 = vpack.c.b16 %v2945, %v2945
        %v2987 = vpack.c.b16 %v2947, %v2946
        %v2988 = vpack.c.b16 %v2948, %v2948
        %v2989 = vpack.c.b16 %v2950, %v2949
        %v2990 = vpack.c.b16 %v2951, %v2951
        %v2991 = vpack.c.b16 %v2953, %v2952
        %v2992 = vpack.c.b16 %v2954, %v2954
        %v2993 = vpack.c.b16 %v2956, %v2955
        %v2994 = vpack.c.b16 %v2957, %v2957
        %v2995 = vpack.c.b16 %v2959, %v2958
        %v2996 = vpack.c.b16 %v2960, %v2960
        %v2997 = vpack.c.b16 %v2962, %v2961
        %v2998 = vpack.c.b16 %v2963, %v2963
        %v2999 = vpack.c.b16 %v2965, %v2964
        %v3000 = vpack.c.b16 %v2966, %v2966
        %v3001 = vpack.c.b16 %v2968, %v2967
        %v3002 = vpack.c.b16 %v2969, %v2969
        %v3003 = vpack.c.b16 %v2971, %v2970
        %v3004 = vpack.c.b16 %v2972, %v2972
        %v3005 = vrot.slane %v2973, 1
        %v3006 = vrot.slane %v2974, 1
        %v3007 = vsel %vm2105, %v3005, %v3006
        %v3008 = vrot.slane %v2975, 1
        %v3009 = vrot.slane %v2976, 1
        %v3010 = vsel %vm2105, %v3008, %v3009
        %v3011 = vrot.slane %v2977, 1
        %v3012 = vrot.slane %v2978, 1
        %v3013 = vsel %vm2105, %v3011, %v3012
        %v3014 = vrot.slane %v2979, 1
        %v3015 = vrot.slane %v2980, 1
        %v3016 = vsel %vm2105, %v3014, %v3015
        %v3017 = vrot.slane %v2981, 1
        %v3018 = vrot.slane %v2982, 1
        %v3019 = vsel %vm2105, %v3017, %v3018
        %v3020 = vrot.slane %v2983, 1
        %v3021 = vrot.slane %v2984, 1
        %v3022 = vsel %vm2105, %v3020, %v3021
        %v3023 = vrot.slane %v2985, 1
        %v3024 = vrot.slane %v2986, 1
        %v3025 = vsel %vm2105, %v3023, %v3024
        %v3026 = vrot.slane %v2987, 1
        %v3027 = vrot.slane %v2988, 1
        %v3028 = vsel %vm2105, %v3026, %v3027
        %v3029 = vrot.slane %v2989, 1
        %v3030 = vrot.slane %v2990, 1
        %v3031 = vsel %vm2105, %v3029, %v3030
        %v3032 = vrot.slane %v2991, 1
        %v3033 = vrot.slane %v2992, 1
        %v3034 = vsel %vm2105, %v3032, %v3033
        %v3035 = vrot.slane %v2993, 1
        %v3036 = vrot.slane %v2994, 1
        %v3037 = vsel %vm2105, %v3035, %v3036
        %v3038 = vrot.slane %v2995, 1
        %v3039 = vrot.slane %v2996, 1
        %v3040 = vsel %vm2105, %v3038, %v3039
        %v3041 = vrot.slane %v2997, 1
        %v3042 = vrot.slane %v2998, 1
        %v3043 = vsel %vm2105, %v3041, %v3042
        %v3044 = vrot.slane %v2999, 1
        %v3045 = vrot.slane %v3000, 1
        %v3046 = vsel %vm2105, %v3044, %v3045
        %v3047 = vrot.slane %v3001, 1
        %v3048 = vrot.slane %v3002, 1
        %v3049 = vsel %vm2105, %v3047, %v3048
        %v3050 = vrot.slane %v3003, 1
        %v3051 = vrot.slane %v3004, 1
        %v3052 = vsel %vm2105, %v3050, %v3051
        %3053 = vrot.lane.b32.xlu0 %v3007, 20
        %v3054 = vpop.permute.xlu0 %3053
        %3055 = vrot.lane.b32.xlu0 %v3010, 20
        %v3056 = vpop.permute.xlu0 %3055
        %3057 = vrot.lane.b32.xlu0 %v3013, 20
        %v3058 = vpop.permute.xlu0 %3057
        %3059 = vrot.lane.b32.xlu0 %v3016, 20
        %v3060 = vpop.permute.xlu0 %3059
        %3061 = vrot.lane.b32.xlu0 %v3019, 20
        %v3062 = vpop.permute.xlu0 %3061
        %3063 = vrot.lane.b32.xlu0 %v3022, 20
        %v3064 = vpop.permute.xlu0 %3063
        %3065 = vrot.lane.b32.xlu0 %v3025, 20
        %v3066 = vpop.permute.xlu0 %3065
        %3067 = vrot.lane.b32.xlu0 %v3028, 20
        %v3068 = vpop.permute.xlu0 %3067
        %3069 = vrot.lane.b32.xlu0 %v3031, 20
        %v3070 = vpop.permute.xlu0 %3069
        %3071 = vrot.lane.b32.xlu0 %v3034, 20
        %v3072 = vpop.permute.xlu0 %3071
        %3073 = vrot.lane.b32.xlu0 %v3037, 20
        %v3074 = vpop.permute.xlu0 %3073
        %3075 = vrot.lane.b32.xlu0 %v3040, 20
        %v3076 = vpop.permute.xlu0 %3075
        %3077 = vrot.lane.b32.xlu0 %v3043, 20
        %v3078 = vpop.permute.xlu0 %3077
        %3079 = vrot.lane.b32.xlu0 %v3046, 20
        %v3080 = vpop.permute.xlu0 %3079
        %3081 = vrot.lane.b32.xlu0 %v3049, 20
        %v3082 = vpop.permute.xlu0 %3081
        %3083 = vrot.lane.b32.xlu0 %v3052, 20
        %v3084 = vpop.permute.xlu0 %3083
        %vm3101 = vcmask 195744
        %3102 = vst.msk [vmem:[#allocation3] sm:$0xff] %vm3101, %v3054
        %3103 = vst.msk [vmem:[#allocation3 + $0x8] sm:$0xff] %vm3101, %v3056
        %3104 = vst.msk [vmem:[#allocation3 + $0x10] sm:$0xff] %vm3101, %v3058
        %3105 = vst.msk [vmem:[#allocation3 + $0x18] sm:$0xff] %vm3101, %v3060
        %3106 = vst.msk [vmem:[#allocation3 + $0x20] sm:$0xff] %vm3101, %v3062
        %3107 = vst.msk [vmem:[#allocation3 + $0x28] sm:$0xff] %vm3101, %v3064
        %3108 = vst.msk [vmem:[#allocation3 + $0x30] sm:$0xff] %vm3101, %v3066
        %3109 = vst.msk [vmem:[#allocation3 + $0x38] sm:$0xff] %vm3101, %v3068
        %3110 = vst.msk [vmem:[#allocation3 + $0x40] sm:$0xff] %vm3101, %v3070
        %3111 = vst.msk [vmem:[#allocation3 + $0x48] sm:$0xff] %vm3101, %v3072
        %3112 = vst.msk [vmem:[#allocation3 + $0x50] sm:$0xff] %vm3101, %v3074
        %3113 = vst.msk [vmem:[#allocation3 + $0x58] sm:$0xff] %vm3101, %v3076
        %3114 = vst.msk [vmem:[#allocation3 + $0x60] sm:$0xff] %vm3101, %v3078
        %3115 = vst.msk [vmem:[#allocation3 + $0x68] sm:$0xff] %vm3101, %v3080
        %3116 = vst.msk [vmem:[#allocation3 + $0x70] sm:$0xff] %vm3101, %v3082
        %3117 = vst.msk [vmem:[#allocation3 + $0x78] sm:$0xff] %vm3101, %v3084
        %s3118 = scalar_lea.vmem [#allocation2], 24
        %v3119 = vld [vmem:[%s3118] sm:$0xf]
        %v3120 = vld [vmem:[%s3118 + $0x4] sm:$0xf]
        %v3121 = vld [vmem:[%s3118 + $0xc] sm:$0xf]
        %v3122 = vld [vmem:[%s3118 + $0x10] sm:$0xf]
        %v3123 = vld [vmem:[%s3118 + $0x18] sm:$0xf]
        %v3124 = vld [vmem:[%s3118 + $0x1c] sm:$0xf]
        %v3125 = vld [vmem:[%s3118 + $0x24] sm:$0xf]
        %v3126 = vld [vmem:[%s3118 + $0x28] sm:$0xf]
        %v3127 = vld [vmem:[%s3118 + $0x30] sm:$0xf]
        %v3128 = vld [vmem:[%s3118 + $0x34] sm:$0xf]
        %v3129 = vld [vmem:[%s3118 + $0x3c] sm:$0xf]
        %v3130 = vld [vmem:[%s3118 + $0x40] sm:$0xf]
        %v3131 = vld [vmem:[%s3118 + $0x48] sm:$0xf]
        %v3132 = vld [vmem:[%s3118 + $0x4c] sm:$0xf]
        %v3133 = vld [vmem:[%s3118 + $0x54] sm:$0xf]
        %v3134 = vld [vmem:[%s3118 + $0x58] sm:$0xf]
        %v3135 = vld [vmem:[%s3118 + $0x60] sm:$0xf]
        %v3136 = vld [vmem:[%s3118 + $0x64] sm:$0xf]
        %v3137 = vld [vmem:[%s3118 + $0x6c] sm:$0xf]
        %v3138 = vld [vmem:[%s3118 + $0x70] sm:$0xf]
        %v3139 = vld [vmem:[%s3118 + $0x78] sm:$0xf]
        %v3140 = vld [vmem:[%s3118 + $0x7c] sm:$0xf]
        %v3141 = vld [vmem:[%s3118 + $0x84] sm:$0xf]
        %v3142 = vld [vmem:[%s3118 + $0x88] sm:$0xf]
        %v3143 = vld [vmem:[%s3118 + $0x90] sm:$0xf]
        %v3144 = vld [vmem:[%s3118 + $0x94] sm:$0xf]
        %v3145 = vld [vmem:[%s3118 + $0x9c] sm:$0xf]
        %v3146 = vld [vmem:[%s3118 + $0xa0] sm:$0xf]
        %v3147 = vld [vmem:[%s3118 + $0xa8] sm:$0xf]
        %v3148 = vld [vmem:[%s3118 + $0xac] sm:$0xf]
        %v3149 = vld [vmem:[%s3118 + $0xb4] sm:$0xf]
        %v3150 = vld [vmem:[%s3118 + $0xb8] sm:$0xf]
        %v3183 = vunpack.c.l.b16 %v3119
        %v3184 = vunpack.c.l.b16 %v3120
        %v3185 = vunpack.c.l.b16 %v3121
        %v3186 = vunpack.c.l.b16 %v3122
        %v3187 = vunpack.c.l.b16 %v3123
        %v3188 = vunpack.c.l.b16 %v3124
        %v3189 = vunpack.c.l.b16 %v3125
        %v3190 = vunpack.c.l.b16 %v3126
        %v3191 = vunpack.c.l.b16 %v3127
        %v3192 = vunpack.c.l.b16 %v3128
        %v3193 = vunpack.c.l.b16 %v3129
        %v3194 = vunpack.c.l.b16 %v3130
        %v3195 = vunpack.c.l.b16 %v3131
        %v3196 = vunpack.c.l.b16 %v3132
        %v3197 = vunpack.c.l.b16 %v3133
        %v3198 = vunpack.c.l.b16 %v3134
        %v3199 = vunpack.c.l.b16 %v3135
        %v3200 = vunpack.c.l.b16 %v3136
        %v3201 = vunpack.c.l.b16 %v3137
        %v3202 = vunpack.c.l.b16 %v3138
        %v3203 = vunpack.c.l.b16 %v3139
        %v3204 = vunpack.c.l.b16 %v3140
        %v3205 = vunpack.c.l.b16 %v3141
        %v3206 = vunpack.c.l.b16 %v3142
        %v3207 = vunpack.c.l.b16 %v3143
        %v3208 = vunpack.c.l.b16 %v3144
        %v3209 = vunpack.c.l.b16 %v3145
        %v3210 = vunpack.c.l.b16 %v3146
        %v3211 = vunpack.c.l.b16 %v3147
        %v3212 = vunpack.c.l.b16 %v3148
        %v3213 = vunpack.c.l.b16 %v3149
        %v3214 = vunpack.c.l.b16 %v3150
        %v3215 = vpack.c.b16 %v3184, %v3183
        %v3216 = vpack.c.b16 %v3186, %v3185
        %v3217 = vpack.c.b16 %v3188, %v3187
        %v3218 = vpack.c.b16 %v3190, %v3189
        %v3219 = vpack.c.b16 %v3192, %v3191
        %v3220 = vpack.c.b16 %v3194, %v3193
        %v3221 = vpack.c.b16 %v3196, %v3195
        %v3222 = vpack.c.b16 %v3198, %v3197
        %v3223 = vpack.c.b16 %v3200, %v3199
        %v3224 = vpack.c.b16 %v3202, %v3201
        %v3225 = vpack.c.b16 %v3204, %v3203
        %v3226 = vpack.c.b16 %v3206, %v3205
        %v3227 = vpack.c.b16 %v3208, %v3207
        %v3228 = vpack.c.b16 %v3210, %v3209
        %v3229 = vpack.c.b16 %v3212, %v3211
        %v3230 = vpack.c.b16 %v3214, %v3213
        %3231 = vrot.lane.b32.xlu0 %v3215, 24
        %v3232 = vpop.permute.xlu0 %3231
        %3233 = vrot.lane.b32.xlu0 %v3216, 24
        %v3234 = vpop.permute.xlu0 %3233
        %3235 = vrot.lane.b32.xlu0 %v3217, 24
        %v3236 = vpop.permute.xlu0 %3235
        %3237 = vrot.lane.b32.xlu0 %v3218, 24
        %v3238 = vpop.permute.xlu0 %3237
        %3239 = vrot.lane.b32.xlu0 %v3219, 24
        %v3240 = vpop.permute.xlu0 %3239
        %3241 = vrot.lane.b32.xlu0 %v3220, 24
        %v3242 = vpop.permute.xlu0 %3241
        %3243 = vrot.lane.b32.xlu0 %v3221, 24
        %v3244 = vpop.permute.xlu0 %3243
        %3245 = vrot.lane.b32.xlu0 %v3222, 24
        %v3246 = vpop.permute.xlu0 %3245
        %3247 = vrot.lane.b32.xlu0 %v3223, 24
        %v3248 = vpop.permute.xlu0 %3247
        %3249 = vrot.lane.b32.xlu0 %v3224, 24
        %v3250 = vpop.permute.xlu0 %3249
        %3251 = vrot.lane.b32.xlu0 %v3225, 24
        %v3252 = vpop.permute.xlu0 %3251
        %3253 = vrot.lane.b32.xlu0 %v3226, 24
        %v3254 = vpop.permute.xlu0 %3253
        %3255 = vrot.lane.b32.xlu0 %v3227, 24
        %v3256 = vpop.permute.xlu0 %3255
        %3257 = vrot.lane.b32.xlu0 %v3228, 24
        %v3258 = vpop.permute.xlu0 %3257
        %3259 = vrot.lane.b32.xlu0 %v3229, 24
        %v3260 = vpop.permute.xlu0 %3259
        %3261 = vrot.lane.b32.xlu0 %v3230, 24
        %v3262 = vpop.permute.xlu0 %3261
        %vm3279 = vcmask 228544
        %3280 = vst.msk [vmem:[#allocation3] sm:$0xff] %vm3279, %v3232
        %3281 = vst.msk [vmem:[#allocation3 + $0x8] sm:$0xff] %vm3279, %v3234
        %3282 = vst.msk [vmem:[#allocation3 + $0x10] sm:$0xff] %vm3279, %v3236
        %3283 = vst.msk [vmem:[#allocation3 + $0x18] sm:$0xff] %vm3279, %v3238
        %3284 = vst.msk [vmem:[#allocation3 + $0x20] sm:$0xff] %vm3279, %v3240
        %3285 = vst.msk [vmem:[#allocation3 + $0x28] sm:$0xff] %vm3279, %v3242
        %3286 = vst.msk [vmem:[#allocation3 + $0x30] sm:$0xff] %vm3279, %v3244
        %3287 = vst.msk [vmem:[#allocation3 + $0x38] sm:$0xff] %vm3279, %v3246
        %3288 = vst.msk [vmem:[#allocation3 + $0x40] sm:$0xff] %vm3279, %v3248
        %3289 = vst.msk [vmem:[#allocation3 + $0x48] sm:$0xff] %vm3279, %v3250
        %3290 = vst.msk [vmem:[#allocation3 + $0x50] sm:$0xff] %vm3279, %v3252
        %3291 = vst.msk [vmem:[#allocation3 + $0x58] sm:$0xff] %vm3279, %v3254
        %3292 = vst.msk [vmem:[#allocation3 + $0x60] sm:$0xff] %vm3279, %v3256
        %3293 = vst.msk [vmem:[#allocation3 + $0x68] sm:$0xff] %vm3279, %v3258
        %3294 = vst.msk [vmem:[#allocation3 + $0x70] sm:$0xff] %vm3279, %v3260
        %3295 = vst.msk [vmem:[#allocation3 + $0x78] sm:$0xff] %vm3279, %v3262
        %v3296 = vld [vmem:[%s3118] sm:$0xf]
        %v3297 = vld [vmem:[%s3118 + $0x4] sm:$0xf]
        %v3298 = vld [vmem:[%s3118 + $0x8] sm:$0x1]
        %v3299 = vld [vmem:[%s3118 + $0xc] sm:$0xf]
        %v3300 = vld [vmem:[%s3118 + $0x10] sm:$0xf]
        %v3301 = vld [vmem:[%s3118 + $0x14] sm:$0x1]
        %v3302 = vld [vmem:[%s3118 + $0x18] sm:$0xf]
        %v3303 = vld [vmem:[%s3118 + $0x1c] sm:$0xf]
        %v3304 = vld [vmem:[%s3118 + $0x20] sm:$0x1]
        %v3305 = vld [vmem:[%s3118 + $0x24] sm:$0xf]
        %v3306 = vld [vmem:[%s3118 + $0x28] sm:$0xf]
        %v3307 = vld [vmem:[%s3118 + $0x2c] sm:$0x1]
        %v3308 = vld [vmem:[%s3118 + $0x30] sm:$0xf]
        %v3309 = vld [vmem:[%s3118 + $0x34] sm:$0xf]
        %v3310 = vld [vmem:[%s3118 + $0x38] sm:$0x1]
        %v3311 = vld [vmem:[%s3118 + $0x3c] sm:$0xf]
        %v3312 = vld [vmem:[%s3118 + $0x40] sm:$0xf]
        %v3313 = vld [vmem:[%s3118 + $0x44] sm:$0x1]
        %v3314 = vld [vmem:[%s3118 + $0x48] sm:$0xf]
        %v3315 = vld [vmem:[%s3118 + $0x4c] sm:$0xf]
        %v3316 = vld [vmem:[%s3118 + $0x50] sm:$0x1]
        %v3317 = vld [vmem:[%s3118 + $0x54] sm:$0xf]
        %v3318 = vld [vmem:[%s3118 + $0x58] sm:$0xf]
        %v3319 = vld [vmem:[%s3118 + $0x5c] sm:$0x1]
        %v3320 = vld [vmem:[%s3118 + $0x60] sm:$0xf]
        %v3321 = vld [vmem:[%s3118 + $0x64] sm:$0xf]
        %v3322 = vld [vmem:[%s3118 + $0x68] sm:$0x1]
        %v3323 = vld [vmem:[%s3118 + $0x6c] sm:$0xf]
        %v3324 = vld [vmem:[%s3118 + $0x70] sm:$0xf]
        %v3325 = vld [vmem:[%s3118 + $0x74] sm:$0x1]
        %v3326 = vld [vmem:[%s3118 + $0x78] sm:$0xf]
        %v3327 = vld [vmem:[%s3118 + $0x7c] sm:$0xf]
        %v3328 = vld [vmem:[%s3118 + $0x80] sm:$0x1]
        %v3329 = vld [vmem:[%s3118 + $0x84] sm:$0xf]
        %v3330 = vld [vmem:[%s3118 + $0x88] sm:$0xf]
        %v3331 = vld [vmem:[%s3118 + $0x8c] sm:$0x1]
        %v3332 = vld [vmem:[%s3118 + $0x90] sm:$0xf]
        %v3333 = vld [vmem:[%s3118 + $0x94] sm:$0xf]
        %v3334 = vld [vmem:[%s3118 + $0x98] sm:$0x1]
        %v3335 = vld [vmem:[%s3118 + $0x9c] sm:$0xf]
        %v3336 = vld [vmem:[%s3118 + $0xa0] sm:$0xf]
        %v3337 = vld [vmem:[%s3118 + $0xa4] sm:$0x1]
        %v3338 = vld [vmem:[%s3118 + $0xa8] sm:$0xf]
        %v3339 = vld [vmem:[%s3118 + $0xac] sm:$0xf]
        %v3340 = vld [vmem:[%s3118 + $0xb0] sm:$0x1]
        %v3341 = vld [vmem:[%s3118 + $0xb4] sm:$0xf]
        %v3342 = vld [vmem:[%s3118 + $0xb8] sm:$0xf]
        %v3343 = vld [vmem:[%s3118 + $0xbc] sm:$0x1]
        %v3392 = vunpack.c.l.b16 %v3296
        %v3393 = vunpack.c.l.b16 %v3297
        %v3394 = vunpack.c.l.b16 %v3298
        %v3395 = vunpack.c.l.b16 %v3299
        %v3396 = vunpack.c.l.b16 %v3300
        %v3397 = vunpack.c.l.b16 %v3301
        %v3398 = vunpack.c.l.b16 %v3302
        %v3399 = vunpack.c.l.b16 %v3303
        %v3400 = vunpack.c.l.b16 %v3304
        %v3401 = vunpack.c.l.b16 %v3305
        %v3402 = vunpack.c.l.b16 %v3306
        %v3403 = vunpack.c.l.b16 %v3307
        %v3404 = vunpack.c.l.b16 %v3308
        %v3405 = vunpack.c.l.b16 %v3309
        %v3406 = vunpack.c.l.b16 %v3310
        %v3407 = vunpack.c.l.b16 %v3311
        %v3408 = vunpack.c.l.b16 %v3312
        %v3409 = vunpack.c.l.b16 %v3313
        %v3410 = vunpack.c.l.b16 %v3314
        %v3411 = vunpack.c.l.b16 %v3315
        %v3412 = vunpack.c.l.b16 %v3316
        %v3413 = vunpack.c.l.b16 %v3317
        %v3414 = vunpack.c.l.b16 %v3318
        %v3415 = vunpack.c.l.b16 %v3319
        %v3416 = vunpack.c.l.b16 %v3320
        %v3417 = vunpack.c.l.b16 %v3321
        %v3418 = vunpack.c.l.b16 %v3322
        %v3419 = vunpack.c.l.b16 %v3323
        %v3420 = vunpack.c.l.b16 %v3324
        %v3421 = vunpack.c.l.b16 %v3325
        %v3422 = vunpack.c.l.b16 %v3326
        %v3423 = vunpack.c.l.b16 %v3327
        %v3424 = vunpack.c.l.b16 %v3328
        %v3425 = vunpack.c.l.b16 %v3329
        %v3426 = vunpack.c.l.b16 %v3330
        %v3427 = vunpack.c.l.b16 %v3331
        %v3428 = vunpack.c.l.b16 %v3332
        %v3429 = vunpack.c.l.b16 %v3333
        %v3430 = vunpack.c.l.b16 %v3334
        %v3431 = vunpack.c.l.b16 %v3335
        %v3432 = vunpack.c.l.b16 %v3336
        %v3433 = vunpack.c.l.b16 %v3337
        %v3434 = vunpack.c.l.b16 %v3338
        %v3435 = vunpack.c.l.b16 %v3339
        %v3436 = vunpack.c.l.b16 %v3340
        %v3437 = vunpack.c.l.b16 %v3341
        %v3438 = vunpack.c.l.b16 %v3342
        %v3439 = vunpack.c.l.b16 %v3343
        %v3440 = vpack.c.b16 %v3393, %v3392
        %v3441 = vpack.c.b16 %v3394, %v3394
        %v3442 = vpack.c.b16 %v3396, %v3395
        %v3443 = vpack.c.b16 %v3397, %v3397
        %v3444 = vpack.c.b16 %v3399, %v3398
        %v3445 = vpack.c.b16 %v3400, %v3400
        %v3446 = vpack.c.b16 %v3402, %v3401
        %v3447 = vpack.c.b16 %v3403, %v3403
        %v3448 = vpack.c.b16 %v3405, %v3404
        %v3449 = vpack.c.b16 %v3406, %v3406
        %v3450 = vpack.c.b16 %v3408, %v3407
        %v3451 = vpack.c.b16 %v3409, %v3409
        %v3452 = vpack.c.b16 %v3411, %v3410
        %v3453 = vpack.c.b16 %v3412, %v3412
        %v3454 = vpack.c.b16 %v3414, %v3413
        %v3455 = vpack.c.b16 %v3415, %v3415
        %v3456 = vpack.c.b16 %v3417, %v3416
        %v3457 = vpack.c.b16 %v3418, %v3418
        %v3458 = vpack.c.b16 %v3420, %v3419
        %v3459 = vpack.c.b16 %v3421, %v3421
        %v3460 = vpack.c.b16 %v3423, %v3422
        %v3461 = vpack.c.b16 %v3424, %v3424
        %v3462 = vpack.c.b16 %v3426, %v3425
        %v3463 = vpack.c.b16 %v3427, %v3427
        %v3464 = vpack.c.b16 %v3429, %v3428
        %v3465 = vpack.c.b16 %v3430, %v3430
        %v3466 = vpack.c.b16 %v3432, %v3431
        %v3467 = vpack.c.b16 %v3433, %v3433
        %v3468 = vpack.c.b16 %v3435, %v3434
        %v3469 = vpack.c.b16 %v3436, %v3436
        %v3470 = vpack.c.b16 %v3438, %v3437
        %v3471 = vpack.c.b16 %v3439, %v3439
        %v3473 = vshrl.u32 %v3440, 16
        %v3475 = vshll.u32 %v3440, 16
        %v3477 = vrot.slane %v3475, 1
        %v3478 = vor.u32 %v3473, %v3477
        %v3480 = vshll.u32 %v3441, 16
        %v3482 = vrot.slane %v3480, 1
        %v3483 = vsel %vm1671, %v3478, %v3482
        %v3485 = vshrl.u32 %v3442, 16
        %v3487 = vshll.u32 %v3442, 16
        %v3489 = vrot.slane %v3487, 1
        %v3490 = vor.u32 %v3485, %v3489
        %v3492 = vshll.u32 %v3443, 16
        %v3494 = vrot.slane %v3492, 1
        %v3495 = vsel %vm1671, %v3490, %v3494
        %v3497 = vshrl.u32 %v3444, 16
        %v3499 = vshll.u32 %v3444, 16
        %v3501 = vrot.slane %v3499, 1
        %v3502 = vor.u32 %v3497, %v3501
        %v3504 = vshll.u32 %v3445, 16
        %v3506 = vrot.slane %v3504, 1
        %v3507 = vsel %vm1671, %v3502, %v3506
        %v3509 = vshrl.u32 %v3446, 16
        %v3511 = vshll.u32 %v3446, 16
        %v3513 = vrot.slane %v3511, 1
        %v3514 = vor.u32 %v3509, %v3513
        %v3516 = vshll.u32 %v3447, 16
        %v3518 = vrot.slane %v3516, 1
        %v3519 = vsel %vm1671, %v3514, %v3518
        %v3521 = vshrl.u32 %v3448, 16
        %v3523 = vshll.u32 %v3448, 16
        %v3525 = vrot.slane %v3523, 1
        %v3526 = vor.u32 %v3521, %v3525
        %v3528 = vshll.u32 %v3449, 16
        %v3530 = vrot.slane %v3528, 1
        %v3531 = vsel %vm1671, %v3526, %v3530
        %v3533 = vshrl.u32 %v3450, 16
        %v3535 = vshll.u32 %v3450, 16
        %v3537 = vrot.slane %v3535, 1
        %v3538 = vor.u32 %v3533, %v3537
        %v3540 = vshll.u32 %v3451, 16
        %v3542 = vrot.slane %v3540, 1
        %v3543 = vsel %vm1671, %v3538, %v3542
        %v3545 = vshrl.u32 %v3452, 16
        %v3547 = vshll.u32 %v3452, 16
        %v3549 = vrot.slane %v3547, 1
        %v3550 = vor.u32 %v3545, %v3549
        %v3552 = vshll.u32 %v3453, 16
        %v3554 = vrot.slane %v3552, 1
        %v3555 = vsel %vm1671, %v3550, %v3554
        %v3557 = vshrl.u32 %v3454, 16
        %v3559 = vshll.u32 %v3454, 16
        %v3561 = vrot.slane %v3559, 1
        %v3562 = vor.u32 %v3557, %v3561
        %v3564 = vshll.u32 %v3455, 16
        %v3566 = vrot.slane %v3564, 1
        %v3567 = vsel %vm1671, %v3562, %v3566
        %v3569 = vshrl.u32 %v3456, 16
        %v3571 = vshll.u32 %v3456, 16
        %v3573 = vrot.slane %v3571, 1
        %v3574 = vor.u32 %v3569, %v3573
        %v3576 = vshll.u32 %v3457, 16
        %v3578 = vrot.slane %v3576, 1
        %v3579 = vsel %vm1671, %v3574, %v3578
        %v3581 = vshrl.u32 %v3458, 16
        %v3583 = vshll.u32 %v3458, 16
        %v3585 = vrot.slane %v3583, 1
        %v3586 = vor.u32 %v3581, %v3585
        %v3588 = vshll.u32 %v3459, 16
        %v3590 = vrot.slane %v3588, 1
        %v3591 = vsel %vm1671, %v3586, %v3590
        %v3593 = vshrl.u32 %v3460, 16
        %v3595 = vshll.u32 %v3460, 16
        %v3597 = vrot.slane %v3595, 1
        %v3598 = vor.u32 %v3593, %v3597
        %v3600 = vshll.u32 %v3461, 16
        %v3602 = vrot.slane %v3600, 1
        %v3603 = vsel %vm1671, %v3598, %v3602
        %v3605 = vshrl.u32 %v3462, 16
        %v3607 = vshll.u32 %v3462, 16
        %v3609 = vrot.slane %v3607, 1
        %v3610 = vor.u32 %v3605, %v3609
        %v3612 = vshll.u32 %v3463, 16
        %v3614 = vrot.slane %v3612, 1
        %v3615 = vsel %vm1671, %v3610, %v3614
        %v3617 = vshrl.u32 %v3464, 16
        %v3619 = vshll.u32 %v3464, 16
        %v3621 = vrot.slane %v3619, 1
        %v3622 = vor.u32 %v3617, %v3621
        %v3624 = vshll.u32 %v3465, 16
        %v3626 = vrot.slane %v3624, 1
        %v3627 = vsel %vm1671, %v3622, %v3626
        %v3629 = vshrl.u32 %v3466, 16
        %v3631 = vshll.u32 %v3466, 16
        %v3633 = vrot.slane %v3631, 1
        %v3634 = vor.u32 %v3629, %v3633
        %v3636 = vshll.u32 %v3467, 16
        %v3638 = vrot.slane %v3636, 1
        %v3639 = vsel %vm1671, %v3634, %v3638
        %v3641 = vshrl.u32 %v3468, 16
        %v3643 = vshll.u32 %v3468, 16
        %v3645 = vrot.slane %v3643, 1
        %v3646 = vor.u32 %v3641, %v3645
        %v3648 = vshll.u32 %v3469, 16
        %v3650 = vrot.slane %v3648, 1
        %v3651 = vsel %vm1671, %v3646, %v3650
        %v3653 = vshrl.u32 %v3470, 16
        %v3655 = vshll.u32 %v3470, 16
        %v3657 = vrot.slane %v3655, 1
        %v3658 = vor.u32 %v3653, %v3657
        %v3660 = vshll.u32 %v3471, 16
        %v3662 = vrot.slane %v3660, 1
        %v3663 = vsel %vm1671, %v3658, %v3662
        %3664 = vrot.lane.b32.xlu0 %v3483, 28
        %v3665 = vpop.permute.xlu0 %3664
        %3666 = vrot.lane.b32.xlu0 %v3495, 28
        %v3667 = vpop.permute.xlu0 %3666
        %3668 = vrot.lane.b32.xlu0 %v3507, 28
        %v3669 = vpop.permute.xlu0 %3668
        %3670 = vrot.lane.b32.xlu0 %v3519, 28
        %v3671 = vpop.permute.xlu0 %3670
        %3672 = vrot.lane.b32.xlu0 %v3531, 28
        %v3673 = vpop.permute.xlu0 %3672
        %3674 = vrot.lane.b32.xlu0 %v3543, 28
        %v3675 = vpop.permute.xlu0 %3674
        %3676 = vrot.lane.b32.xlu0 %v3555, 28
        %v3677 = vpop.permute.xlu0 %3676
        %3678 = vrot.lane.b32.xlu0 %v3567, 28
        %v3679 = vpop.permute.xlu0 %3678
        %3680 = vrot.lane.b32.xlu0 %v3579, 28
        %v3681 = vpop.permute.xlu0 %3680
        %3682 = vrot.lane.b32.xlu0 %v3591, 28
        %v3683 = vpop.permute.xlu0 %3682
        %3684 = vrot.lane.b32.xlu0 %v3603, 28
        %v3685 = vpop.permute.xlu0 %3684
        %3686 = vrot.lane.b32.xlu0 %v3615, 28
        %v3687 = vpop.permute.xlu0 %3686
        %3688 = vrot.lane.b32.xlu0 %v3627, 28
        %v3689 = vpop.permute.xlu0 %3688
        %3690 = vrot.lane.b32.xlu0 %v3639, 28
        %v3691 = vpop.permute.xlu0 %3690
        %3692 = vrot.lane.b32.xlu0 %v3651, 28
        %v3693 = vpop.permute.xlu0 %3692
        %3694 = vrot.lane.b32.xlu0 %v3663, 28
        %v3695 = vpop.permute.xlu0 %3694
        %vm3712 = vcmask 261344
        %3713 = vst.msk [vmem:[#allocation3] sm:$0xff] %vm3712, %v3665
        %3714 = vst.msk [vmem:[#allocation3 + $0x8] sm:$0xff] %vm3712, %v3667
        %3715 = vst.msk [vmem:[#allocation3 + $0x10] sm:$0xff] %vm3712, %v3669
        %3716 = vst.msk [vmem:[#allocation3 + $0x18] sm:$0xff] %vm3712, %v3671
        %3717 = vst.msk [vmem:[#allocation3 + $0x20] sm:$0xff] %vm3712, %v3673
        %3718 = vst.msk [vmem:[#allocation3 + $0x28] sm:$0xff] %vm3712, %v3675
        %3719 = vst.msk [vmem:[#allocation3 + $0x30] sm:$0xff] %vm3712, %v3677
        %3720 = vst.msk [vmem:[#allocation3 + $0x38] sm:$0xff] %vm3712, %v3679
        %3721 = vst.msk [vmem:[#allocation3 + $0x40] sm:$0xff] %vm3712, %v3681
        %3722 = vst.msk [vmem:[#allocation3 + $0x48] sm:$0xff] %vm3712, %v3683
        %3723 = vst.msk [vmem:[#allocation3 + $0x50] sm:$0xff] %vm3712, %v3685
        %3724 = vst.msk [vmem:[#allocation3 + $0x58] sm:$0xff] %vm3712, %v3687
        %3725 = vst.msk [vmem:[#allocation3 + $0x60] sm:$0xff] %vm3712, %v3689
        %3726 = vst.msk [vmem:[#allocation3 + $0x68] sm:$0xff] %vm3712, %v3691
        %3727 = vst.msk [vmem:[#allocation3 + $0x70] sm:$0xff] %vm3712, %v3693
        %3728 = vst.msk [vmem:[#allocation3 + $0x78] sm:$0xff] %vm3712, %v3695
        %v3729 = vld [vmem:[%s3118] sm:$0xe]
        %v3730 = vld [vmem:[%s3118 + $0x4] sm:$0xf]
        %v3731 = vld [vmem:[%s3118 + $0x8] sm:$0x1]
        %v3732 = vld [vmem:[%s3118 + $0xc] sm:$0xe]
        %v3733 = vld [vmem:[%s3118 + $0x10] sm:$0xf]
        %v3734 = vld [vmem:[%s3118 + $0x14] sm:$0x1]
        %v3735 = vld [vmem:[%s3118 + $0x18] sm:$0xe]
        %v3736 = vld [vmem:[%s3118 + $0x1c] sm:$0xf]
        %v3737 = vld [vmem:[%s3118 + $0x20] sm:$0x1]
        %v3738 = vld [vmem:[%s3118 + $0x24] sm:$0xe]
        %v3739 = vld [vmem:[%s3118 + $0x28] sm:$0xf]
        %v3740 = vld [vmem:[%s3118 + $0x2c] sm:$0x1]
        %v3741 = vld [vmem:[%s3118 + $0x30] sm:$0xe]
        %v3742 = vld [vmem:[%s3118 + $0x34] sm:$0xf]
        %v3743 = vld [vmem:[%s3118 + $0x38] sm:$0x1]
        %v3744 = vld [vmem:[%s3118 + $0x3c] sm:$0xe]
        %v3745 = vld [vmem:[%s3118 + $0x40] sm:$0xf]
        %v3746 = vld [vmem:[%s3118 + $0x44] sm:$0x1]
        %v3747 = vld [vmem:[%s3118 + $0x48] sm:$0xe]
        %v3748 = vld [vmem:[%s3118 + $0x4c] sm:$0xf]
        %v3749 = vld [vmem:[%s3118 + $0x50] sm:$0x1]
        %v3750 = vld [vmem:[%s3118 + $0x54] sm:$0xe]
        %v3751 = vld [vmem:[%s3118 + $0x58] sm:$0xf]
        %v3752 = vld [vmem:[%s3118 + $0x5c] sm:$0x1]
        %v3753 = vld [vmem:[%s3118 + $0x60] sm:$0xe]
        %v3754 = vld [vmem:[%s3118 + $0x64] sm:$0xf]
        %v3755 = vld [vmem:[%s3118 + $0x68] sm:$0x1]
        %v3756 = vld [vmem:[%s3118 + $0x6c] sm:$0xe]
        %v3757 = vld [vmem:[%s3118 + $0x70] sm:$0xf]
        %v3758 = vld [vmem:[%s3118 + $0x74] sm:$0x1]
        %v3759 = vld [vmem:[%s3118 + $0x78] sm:$0xe]
        %v3760 = vld [vmem:[%s3118 + $0x7c] sm:$0xf]
        %v3761 = vld [vmem:[%s3118 + $0x80] sm:$0x1]
        %v3762 = vld [vmem:[%s3118 + $0x84] sm:$0xe]
        %v3763 = vld [vmem:[%s3118 + $0x88] sm:$0xf]
        %v3764 = vld [vmem:[%s3118 + $0x8c] sm:$0x1]
        %v3765 = vld [vmem:[%s3118 + $0x90] sm:$0xe]
        %v3766 = vld [vmem:[%s3118 + $0x94] sm:$0xf]
        %v3767 = vld [vmem:[%s3118 + $0x98] sm:$0x1]
        %v3768 = vld [vmem:[%s3118 + $0x9c] sm:$0xe]
        %v3769 = vld [vmem:[%s3118 + $0xa0] sm:$0xf]
        %v3770 = vld [vmem:[%s3118 + $0xa4] sm:$0x1]
        %v3771 = vld [vmem:[%s3118 + $0xa8] sm:$0xe]
        %v3772 = vld [vmem:[%s3118 + $0xac] sm:$0xf]
        %v3773 = vld [vmem:[%s3118 + $0xb0] sm:$0x1]
        %v3774 = vld [vmem:[%s3118 + $0xb4] sm:$0xe]
        %v3775 = vld [vmem:[%s3118 + $0xb8] sm:$0xf]
        %v3776 = vld [vmem:[%s3118 + $0xbc] sm:$0x1]
        %v3825 = vunpack.c.l.b16 %v3729
        %v3826 = vunpack.c.l.b16 %v3730
        %v3827 = vunpack.c.l.b16 %v3731
        %v3828 = vunpack.c.l.b16 %v3732
        %v3829 = vunpack.c.l.b16 %v3733
        %v3830 = vunpack.c.l.b16 %v3734
        %v3831 = vunpack.c.l.b16 %v3735
        %v3832 = vunpack.c.l.b16 %v3736
        %v3833 = vunpack.c.l.b16 %v3737
        %v3834 = vunpack.c.l.b16 %v3738
        %v3835 = vunpack.c.l.b16 %v3739
        %v3836 = vunpack.c.l.b16 %v3740
        %v3837 = vunpack.c.l.b16 %v3741
        %v3838 = vunpack.c.l.b16 %v3742
        %v3839 = vunpack.c.l.b16 %v3743
        %v3840 = vunpack.c.l.b16 %v3744
        %v3841 = vunpack.c.l.b16 %v3745
        %v3842 = vunpack.c.l.b16 %v3746
        %v3843 = vunpack.c.l.b16 %v3747
        %v3844 = vunpack.c.l.b16 %v3748
        %v3845 = vunpack.c.l.b16 %v3749
        %v3846 = vunpack.c.l.b16 %v3750
        %v3847 = vunpack.c.l.b16 %v3751
        %v3848 = vunpack.c.l.b16 %v3752
        %v3849 = vunpack.c.l.b16 %v3753
        %v3850 = vunpack.c.l.b16 %v3754
        %v3851 = vunpack.c.l.b16 %v3755
        %v3852 = vunpack.c.l.b16 %v3756
        %v3853 = vunpack.c.l.b16 %v3757
        %v3854 = vunpack.c.l.b16 %v3758
        %v3855 = vunpack.c.l.b16 %v3759
        %v3856 = vunpack.c.l.b16 %v3760
        %v3857 = vunpack.c.l.b16 %v3761
        %v3858 = vunpack.c.l.b16 %v3762
        %v3859 = vunpack.c.l.b16 %v3763
        %v3860 = vunpack.c.l.b16 %v3764
        %v3861 = vunpack.c.l.b16 %v3765
        %v3862 = vunpack.c.l.b16 %v3766
        %v3863 = vunpack.c.l.b16 %v3767
        %v3864 = vunpack.c.l.b16 %v3768
        %v3865 = vunpack.c.l.b16 %v3769
        %v3866 = vunpack.c.l.b16 %v3770
        %v3867 = vunpack.c.l.b16 %v3771
        %v3868 = vunpack.c.l.b16 %v3772
        %v3869 = vunpack.c.l.b16 %v3773
        %v3870 = vunpack.c.l.b16 %v3774
        %v3871 = vunpack.c.l.b16 %v3775
        %v3872 = vunpack.c.l.b16 %v3776
        %v3873 = vpack.c.b16 %v3826, %v3825
        %v3874 = vpack.c.b16 %v3827, %v3827
        %v3875 = vpack.c.b16 %v3829, %v3828
        %v3876 = vpack.c.b16 %v3830, %v3830
        %v3877 = vpack.c.b16 %v3832, %v3831
        %v3878 = vpack.c.b16 %v3833, %v3833
        %v3879 = vpack.c.b16 %v3835, %v3834
        %v3880 = vpack.c.b16 %v3836, %v3836
        %v3881 = vpack.c.b16 %v3838, %v3837
        %v3882 = vpack.c.b16 %v3839, %v3839
        %v3883 = vpack.c.b16 %v3841, %v3840
        %v3884 = vpack.c.b16 %v3842, %v3842
        %v3885 = vpack.c.b16 %v3844, %v3843
        %v3886 = vpack.c.b16 %v3845, %v3845
        %v3887 = vpack.c.b16 %v3847, %v3846
        %v3888 = vpack.c.b16 %v3848, %v3848
        %v3889 = vpack.c.b16 %v3850, %v3849
        %v3890 = vpack.c.b16 %v3851, %v3851
        %v3891 = vpack.c.b16 %v3853, %v3852
        %v3892 = vpack.c.b16 %v3854, %v3854
        %v3893 = vpack.c.b16 %v3856, %v3855
        %v3894 = vpack.c.b16 %v3857, %v3857
        %v3895 = vpack.c.b16 %v3859, %v3858
        %v3896 = vpack.c.b16 %v3860, %v3860
        %v3897 = vpack.c.b16 %v3862, %v3861
        %v3898 = vpack.c.b16 %v3863, %v3863
        %v3899 = vpack.c.b16 %v3865, %v3864
        %v3900 = vpack.c.b16 %v3866, %v3866
        %v3901 = vpack.c.b16 %v3868, %v3867
        %v3902 = vpack.c.b16 %v3869, %v3869
        %v3903 = vpack.c.b16 %v3871, %v3870
        %v3904 = vpack.c.b16 %v3872, %v3872
        %v3905 = vrot.slane %v3873, 1
        %v3906 = vrot.slane %v3874, 1
        %v3907 = vsel %vm2105, %v3905, %v3906
        %v3908 = vrot.slane %v3875, 1
        %v3909 = vrot.slane %v3876, 1
        %v3910 = vsel %vm2105, %v3908, %v3909
        %v3911 = vrot.slane %v3877, 1
        %v3912 = vrot.slane %v3878, 1
        %v3913 = vsel %vm2105, %v3911, %v3912
        %v3914 = vrot.slane %v3879, 1
        %v3915 = vrot.slane %v3880, 1
        %v3916 = vsel %vm2105, %v3914, %v3915
        %v3917 = vrot.slane %v3881, 1
        %v3918 = vrot.slane %v3882, 1
        %v3919 = vsel %vm2105, %v3917, %v3918
        %v3920 = vrot.slane %v3883, 1
        %v3921 = vrot.slane %v3884, 1
        %v3922 = vsel %vm2105, %v3920, %v3921
        %v3923 = vrot.slane %v3885, 1
        %v3924 = vrot.slane %v3886, 1
        %v3925 = vsel %vm2105, %v3923, %v3924
        %v3926 = vrot.slane %v3887, 1
        %v3927 = vrot.slane %v3888, 1
        %v3928 = vsel %vm2105, %v3926, %v3927
        %v3929 = vrot.slane %v3889, 1
        %v3930 = vrot.slane %v3890, 1
        %v3931 = vsel %vm2105, %v3929, %v3930
        %v3932 = vrot.slane %v3891, 1
        %v3933 = vrot.slane %v3892, 1
        %v3934 = vsel %vm2105, %v3932, %v3933
        %v3935 = vrot.slane %v3893, 1
        %v3936 = vrot.slane %v3894, 1
        %v3937 = vsel %vm2105, %v3935, %v3936
        %v3938 = vrot.slane %v3895, 1
        %v3939 = vrot.slane %v3896, 1
        %v3940 = vsel %vm2105, %v3938, %v3939
        %v3941 = vrot.slane %v3897, 1
        %v3942 = vrot.slane %v3898, 1
        %v3943 = vsel %vm2105, %v3941, %v3942
        %v3944 = vrot.slane %v3899, 1
        %v3945 = vrot.slane %v3900, 1
        %v3946 = vsel %vm2105, %v3944, %v3945
        %v3947 = vrot.slane %v3901, 1
        %v3948 = vrot.slane %v3902, 1
        %v3949 = vsel %vm2105, %v3947, %v3948
        %v3950 = vrot.slane %v3903, 1
        %v3951 = vrot.slane %v3904, 1
        %v3952 = vsel %vm2105, %v3950, %v3951
        %3953 = vrot.lane.b32.xlu0 %v3907, 32
        %v3954 = vpop.permute.xlu0 %3953
        %3955 = vrot.lane.b32.xlu0 %v3910, 32
        %v3956 = vpop.permute.xlu0 %3955
        %3957 = vrot.lane.b32.xlu0 %v3913, 32
        %v3958 = vpop.permute.xlu0 %3957
        %3959 = vrot.lane.b32.xlu0 %v3916, 32
        %v3960 = vpop.permute.xlu0 %3959
        %3961 = vrot.lane.b32.xlu0 %v3919, 32
        %v3962 = vpop.permute.xlu0 %3961
        %3963 = vrot.lane.b32.xlu0 %v3922, 32
        %v3964 = vpop.permute.xlu0 %3963
        %3965 = vrot.lane.b32.xlu0 %v3925, 32
        %v3966 = vpop.permute.xlu0 %3965
        %3967 = vrot.lane.b32.xlu0 %v3928, 32
        %v3968 = vpop.permute.xlu0 %3967
        %3969 = vrot.lane.b32.xlu0 %v3931, 32
        %v3970 = vpop.permute.xlu0 %3969
        %3971 = vrot.lane.b32.xlu0 %v3934, 32
        %v3972 = vpop.permute.xlu0 %3971
        %3973 = vrot.lane.b32.xlu0 %v3937, 32
        %v3974 = vpop.permute.xlu0 %3973
        %3975 = vrot.lane.b32.xlu0 %v3940, 32
        %v3976 = vpop.permute.xlu0 %3975
        %3977 = vrot.lane.b32.xlu0 %v3943, 32
        %v3978 = vpop.permute.xlu0 %3977
        %3979 = vrot.lane.b32.xlu0 %v3946, 32
        %v3980 = vpop.permute.xlu0 %3979
        %3981 = vrot.lane.b32.xlu0 %v3949, 32
        %v3982 = vpop.permute.xlu0 %3981
        %3983 = vrot.lane.b32.xlu0 %v3952, 32
        %v3984 = vpop.permute.xlu0 %3983
        %vm4001 = vcmask 294144
        %4002 = vst.msk [vmem:[#allocation3] sm:$0xff] %vm4001, %v3954
        %4003 = vst.msk [vmem:[#allocation3 + $0x8] sm:$0xff] %vm4001, %v3956
        %4004 = vst.msk [vmem:[#allocation3 + $0x10] sm:$0xff] %vm4001, %v3958
        %4005 = vst.msk [vmem:[#allocation3 + $0x18] sm:$0xff] %vm4001, %v3960
        %4006 = vst.msk [vmem:[#allocation3 + $0x20] sm:$0xff] %vm4001, %v3962
        %4007 = vst.msk [vmem:[#allocation3 + $0x28] sm:$0xff] %vm4001, %v3964
        %4008 = vst.msk [vmem:[#allocation3 + $0x30] sm:$0xff] %vm4001, %v3966
        %4009 = vst.msk [vmem:[#allocation3 + $0x38] sm:$0xff] %vm4001, %v3968
        %4010 = vst.msk [vmem:[#allocation3 + $0x40] sm:$0xff] %vm4001, %v3970
        %4011 = vst.msk [vmem:[#allocation3 + $0x48] sm:$0xff] %vm4001, %v3972
        %4012 = vst.msk [vmem:[#allocation3 + $0x50] sm:$0xff] %vm4001, %v3974
        %4013 = vst.msk [vmem:[#allocation3 + $0x58] sm:$0xff] %vm4001, %v3976
        %4014 = vst.msk [vmem:[#allocation3 + $0x60] sm:$0xff] %vm4001, %v3978
        %4015 = vst.msk [vmem:[#allocation3 + $0x68] sm:$0xff] %vm4001, %v3980
        %4016 = vst.msk [vmem:[#allocation3 + $0x70] sm:$0xff] %vm4001, %v3982
        %4017 = vst.msk [vmem:[#allocation3 + $0x78] sm:$0xff] %vm4001, %v3984
        %v4018 = vld [vmem:[#allocation3] sm:$0xff]
        %v4019 = vld [vmem:[#allocation3 + $0x8] sm:$0xff]
        %v4020 = vld [vmem:[#allocation3 + $0x10] sm:$0xff]
        %v4021 = vld [vmem:[#allocation3 + $0x18] sm:$0xff]
        %v4022 = vld [vmem:[#allocation3 + $0x20] sm:$0xff]
        %v4023 = vld [vmem:[#allocation3 + $0x28] sm:$0xff]
        %v4024 = vld [vmem:[#allocation3 + $0x30] sm:$0xff]
        %v4025 = vld [vmem:[#allocation3 + $0x38] sm:$0xff]
        %v4026 = vld [vmem:[#allocation3 + $0x40] sm:$0xff]
        %v4027 = vld [vmem:[#allocation3 + $0x48] sm:$0xff]
        %v4028 = vld [vmem:[#allocation3 + $0x50] sm:$0xff]
        %v4029 = vld [vmem:[#allocation3 + $0x58] sm:$0xff]
        %v4030 = vld [vmem:[#allocation3 + $0x60] sm:$0xff]
        %v4031 = vld [vmem:[#allocation3 + $0x68] sm:$0xff]
        %v4032 = vld [vmem:[#allocation3 + $0x70] sm:$0xff]
        %v4033 = vld [vmem:[#allocation3 + $0x78] sm:$0xff]
        %v4034 = vld [vmem:[%s2] sm:$0xf]
        %v4035 = vld [vmem:[%s2 + $0x4] sm:$0xf]
        %v4036 = vld [vmem:[%s2 + $0x8] sm:$0xf]
        %v4037 = vld [vmem:[%s2 + $0xc] sm:$0xf]
        %v4038 = vld [vmem:[%s2 + $0x10] sm:$0x3]
        %v4039 = vld [vmem:[%s5] sm:$0x1]
        %v4041 = vlaneseq
        %v4042 = vshrl.u32 %v4041, 7
        %v4043 = vsub.s32 0, %v4042
        %v4044 = vrot.slane %v4039, %v4043
        %v4051 = vunpack.c.l.b16 %v4034
        %v4052 = vunpack.c.l.b16 %v4035
        %v4053 = vunpack.c.l.b16 %v4036
        %v4054 = vunpack.c.l.b16 %v4037
        %v4055 = vunpack.c.l.b16 %v4038
        %v4056 = vpack.c.b16 %v4052, %v4051
        %v4057 = vpack.c.b16 %v4054, %v4053
        %v4058 = vpack.c.b16 %v4055, %v4055
        %vm4061 = vcmask 293888
        %v4063 = vsel %vm4061, %v4018, 0
        %v4066 = vsel %vm4061, %v4019, 0
        %v4069 = vsel %vm4061, %v4020, 0
        %v4072 = vsel %vm4061, %v4021, 0
        %v4075 = vsel %vm4061, %v4022, 0
        %v4078 = vsel %vm4061, %v4023, 0
        %v4081 = vsel %vm4061, %v4024, 0
        %v4084 = vsel %vm4061, %v4025, 0
        %v4087 = vsel %vm4061, %v4026, 0
        %v4090 = vsel %vm4061, %v4027, 0
        %v4093 = vsel %vm4061, %v4028, 0
        %v4096 = vsel %vm4061, %v4029, 0
        %v4099 = vsel %vm4061, %v4030, 0
        %v4102 = vsel %vm4061, %v4031, 0
        %v4105 = vsel %vm4061, %v4032, 0
        %v4108 = vsel %vm4061, %v4033, 0
        %vm4110 = vcmask 1041408
        %v4112 = vsel %vm4110, %v4058, 0
        %4114 = vmatprep.subr.bf16.mxu0 0
        %4115 = vmatpush1.bf16.msra.mxu0 %v4056
        %4116 = vmatprep.subr.bf16.mxu0 0
        %4117 = vmatpush1.bf16.msra.mxu0 %v4057
        %4118 = vmatprep.subr.bf16.mxu0 0
        %4119 = vmatpush1.bf16.msra.mxu0 %v4112
        %4120 = vmatprep.subr.bf16.mxu0 0
        %4121 = vmatpush1.bf16.msra.mxu0 0
        %4122 = vmatprep.subr.bf16.mxu0 0
        %4123 = vmatpush1.bf16.msra.mxu0 0
        %4124 = vmatprep.subr.bf16.mxu0 0
        %4125 = vmatpush1.bf16.msra.mxu0 0
        %4126 = vmatprep.subr.bf16.mxu0 0
        %4127 = vmatpush1.bf16.msra.mxu0 0
        %4128 = vmatprep.subr.bf16.mxu0 0
        %4129 = vmatpush1.bf16.msra.mxu0 0
        %4130 = vmatprep.subr.bf16.mxu0 0
        %4131 = vmatpush1.bf16.msra.mxu0 0
        %4132 = vmatprep.subr.bf16.mxu0 0
        %4133 = vmatpush1.bf16.msra.mxu0 0
        %4134 = vmatprep.subr.bf16.mxu0 0
        %4135 = vmatpush1.bf16.msra.mxu0 0
        %4136 = vmatprep.subr.bf16.mxu0 0
        %4137 = vmatpush1.bf16.msra.mxu0 0
        %4138 = vmatprep.subr.bf16.mxu0 0
        %4139 = vmatpush1.bf16.msra.mxu0 0
        %4140 = vmatprep.subr.bf16.mxu0 0
        %4141 = vmatpush1.bf16.msra.mxu0 0
        %4142 = vmatprep.subr.bf16.mxu0 0
        %4143 = vmatpush1.bf16.msra.mxu0 0
        %4144 = vmatprep.subr.bf16.mxu0 0
        %4145 = vmatpush1.bf16.msra.mxu0 0
        %4146 = vmatprep.mubr.bf16.mxu0 0
        %4147 = vmatmul.mubr.bf16.gmra.mrb[0].mxu0 %v4063
        %v4148 = vpop.f32.mrb[0].mxu0
        %v4149 = vadd.f32 %v4044, %v4148
        %v4150 = vpop.f32.mrb[0].mxu0
        %v4151 = vpop.f32.mrb[0].mxu0
        %v4152 = vadd.f32 %v4044, %v4151
        %v4153 = vpop.f32.mrb[0].mxu0
        %4154 = vmatprep.mubr.bf16.mxu0 0
        %4155 = vmatmul.mubr.bf16.gmra.mrb[0].mxu0 %v4066
        %v4156 = vpop.f32.mrb[0].mxu0
        %v4157 = vadd.f32 %v4044, %v4156
        %v4158 = vpop.f32.mrb[0].mxu0
        %v4159 = vpop.f32.mrb[0].mxu0
        %v4160 = vadd.f32 %v4044, %v4159
        %v4161 = vpop.f32.mrb[0].mxu0
        %4162 = vmatprep.mubr.bf16.mxu0 0
        %4163 = vmatmul.mubr.bf16.gmra.mrb[0].mxu0 %v4069
        %v4164 = vpop.f32.mrb[0].mxu0
        %v4165 = vadd.f32 %v4044, %v4164
        %v4166 = vpop.f32.mrb[0].mxu0
        %v4167 = vpop.f32.mrb[0].mxu0
        %v4168 = vadd.f32 %v4044, %v4167
        %v4169 = vpop.f32.mrb[0].mxu0
        %4170 = vmatprep.mubr.bf16.mxu0 0
        %4171 = vmatmul.mubr.bf16.gmra.mrb[0].mxu0 %v4072
        %v4172 = vpop.f32.mrb[0].mxu0
        %v4173 = vadd.f32 %v4044, %v4172
        %v4174 = vpop.f32.mrb[0].mxu0
        %v4175 = vpop.f32.mrb[0].mxu0
        %v4176 = vadd.f32 %v4044, %v4175
        %v4177 = vpop.f32.mrb[0].mxu0
        %4178 = vmatprep.mubr.bf16.mxu0 0
        %4179 = vmatmul.mubr.bf16.gmra.mrb[0].mxu0 %v4075
        %v4180 = vpop.f32.mrb[0].mxu0
        %v4181 = vadd.f32 %v4044, %v4180
        %v4182 = vpop.f32.mrb[0].mxu0
        %v4183 = vpop.f32.mrb[0].mxu0
        %v4184 = vadd.f32 %v4044, %v4183
        %v4185 = vpop.f32.mrb[0].mxu0
        %4186 = vmatprep.mubr.bf16.mxu0 0
        %4187 = vmatmul.mubr.bf16.gmra.mrb[0].mxu0 %v4078
        %v4188 = vpop.f32.mrb[0].mxu0
        %v4189 = vadd.f32 %v4044, %v4188
        %v4190 = vpop.f32.mrb[0].mxu0
        %v4191 = vpop.f32.mrb[0].mxu0
        %v4192 = vadd.f32 %v4044, %v4191
        %v4193 = vpop.f32.mrb[0].mxu0
        %4194 = vmatprep.mubr.bf16.mxu0 0
        %4195 = vmatmul.mubr.bf16.gmra.mrb[0].mxu0 %v4081
        %v4196 = vpop.f32.mrb[0].mxu0
        %v4197 = vadd.f32 %v4044, %v4196
        %v4198 = vpop.f32.mrb[0].mxu0
        %v4199 = vpop.f32.mrb[0].mxu0
        %v4200 = vadd.f32 %v4044, %v4199
        %v4201 = vpop.f32.mrb[0].mxu0
        %4202 = vmatprep.mubr.bf16.mxu0 0
        %4203 = vmatmul.mubr.bf16.gmra.mrb[0].mxu0 %v4084
        %v4204 = vpop.f32.mrb[0].mxu0
        %v4205 = vadd.f32 %v4044, %v4204
        %v4206 = vpop.f32.mrb[0].mxu0
        %v4207 = vpop.f32.mrb[0].mxu0
        %v4208 = vadd.f32 %v4044, %v4207
        %v4209 = vpop.f32.mrb[0].mxu0
        %4210 = vmatprep.mubr.bf16.mxu0 0
        %4211 = vmatmul.mubr.bf16.gmra.mrb[0].mxu0 %v4087
        %v4212 = vpop.f32.mrb[0].mxu0
        %v4213 = vadd.f32 %v4044, %v4212
        %v4214 = vpop.f32.mrb[0].mxu0
        %v4215 = vpop.f32.mrb[0].mxu0
        %v4216 = vadd.f32 %v4044, %v4215
        %v4217 = vpop.f32.mrb[0].mxu0
        %4218 = vmatprep.mubr.bf16.mxu0 0
        %4219 = vmatmul.mubr.bf16.gmra.mrb[0].mxu0 %v4090
        %v4220 = vpop.f32.mrb[0].mxu0
        %v4221 = vadd.f32 %v4044, %v4220
        %v4222 = vpop.f32.mrb[0].mxu0
        %v4223 = vpop.f32.mrb[0].mxu0
        %v4224 = vadd.f32 %v4044, %v4223
        %v4225 = vpop.f32.mrb[0].mxu0
        %4226 = vmatprep.mubr.bf16.mxu0 0
        %4227 = vmatmul.mubr.bf16.gmra.mrb[0].mxu0 %v4093
        %v4228 = vpop.f32.mrb[0].mxu0
        %v4229 = vadd.f32 %v4044, %v4228
        %v4230 = vpop.f32.mrb[0].mxu0
        %v4231 = vpop.f32.mrb[0].mxu0
        %v4232 = vadd.f32 %v4044, %v4231
        %v4233 = vpop.f32.mrb[0].mxu0
        %4234 = vmatprep.mubr.bf16.mxu0 0
        %4235 = vmatmul.mubr.bf16.gmra.mrb[0].mxu0 %v4096
        %v4236 = vpop.f32.mrb[0].mxu0
        %v4237 = vadd.f32 %v4044, %v4236
        %v4238 = vpop.f32.mrb[0].mxu0
        %v4239 = vpop.f32.mrb[0].mxu0
        %v4240 = vadd.f32 %v4044, %v4239
        %v4241 = vpop.f32.mrb[0].mxu0
        %4242 = vmatprep.mubr.bf16.mxu0 0
        %4243 = vmatmul.mubr.bf16.gmra.mrb[0].mxu0 %v4099
        %v4244 = vpop.f32.mrb[0].mxu0
        %v4245 = vadd.f32 %v4044, %v4244
        %v4246 = vpop.f32.mrb[0].mxu0
        %v4247 = vpop.f32.mrb[0].mxu0
        %v4248 = vadd.f32 %v4044, %v4247
        %v4249 = vpop.f32.mrb[0].mxu0
        %4250 = vmatprep.mubr.bf16.mxu0 0
        %4251 = vmatmul.mubr.bf16.gmra.mrb[0].mxu0 %v4102
        %v4252 = vpop.f32.mrb[0].mxu0
        %v4253 = vadd.f32 %v4044, %v4252
        %v4254 = vpop.f32.mrb[0].mxu0
        %v4255 = vpop.f32.mrb[0].mxu0
        %v4256 = vadd.f32 %v4044, %v4255
        %v4257 = vpop.f32.mrb[0].mxu0
        %4258 = vmatprep.mubr.bf16.mxu0 0
        %4259 = vmatmul.mubr.bf16.gmra.mrb[0].mxu0 %v4105
        %v4260 = vpop.f32.mrb[0].mxu0
        %v4261 = vadd.f32 %v4044, %v4260
        %v4262 = vpop.f32.mrb[0].mxu0
        %v4263 = vpop.f32.mrb[0].mxu0
        %v4264 = vadd.f32 %v4044, %v4263
        %v4265 = vpop.f32.mrb[0].mxu0
        %4266 = vmatprep.mubr.bf16.mxu0 0
        %4267 = vmatmul.mubr.bf16.gmra.mrb[0].mxu0 %v4108
        %v4268 = vpop.f32.mrb[0].mxu0
        %v4269 = vadd.f32 %v4044, %v4268
        %v4270 = vpop.f32.mrb[0].mxu0
        %v4271 = vpop.f32.mrb[0].mxu0
        %v4272 = vadd.f32 %v4044, %v4271
        %v4273 = vpop.f32.mrb[0].mxu0
        %4274 = vdwg.mxu0
        %v4275 = vmax.f32 %v4149, 0.0
        %v4276 = vmax.f32 %v4152, 0.0
        %v4277 = vmax.f32 %v4157, 0.0
        %v4278 = vmax.f32 %v4160, 0.0
        %v4279 = vmax.f32 %v4165, 0.0
        %v4280 = vmax.f32 %v4168, 0.0
        %v4281 = vmax.f32 %v4173, 0.0
        %v4282 = vmax.f32 %v4176, 0.0
        %v4283 = vmax.f32 %v4181, 0.0
        %v4284 = vmax.f32 %v4184, 0.0
        %v4285 = vmax.f32 %v4189, 0.0
        %v4286 = vmax.f32 %v4192, 0.0
        %v4287 = vmax.f32 %v4197, 0.0
        %v4288 = vmax.f32 %v4200, 0.0
        %v4289 = vmax.f32 %v4205, 0.0
        %v4290 = vmax.f32 %v4208, 0.0
        %v4291 = vmax.f32 %v4213, 0.0
        %v4292 = vmax.f32 %v4216, 0.0
        %v4293 = vmax.f32 %v4221, 0.0
        %v4294 = vmax.f32 %v4224, 0.0
        %v4295 = vmax.f32 %v4229, 0.0
        %v4296 = vmax.f32 %v4232, 0.0
        %v4297 = vmax.f32 %v4237, 0.0
        %v4298 = vmax.f32 %v4240, 0.0
        %v4299 = vmax.f32 %v4245, 0.0
        %v4300 = vmax.f32 %v4248, 0.0
        %v4301 = vmax.f32 %v4253, 0.0
        %v4302 = vmax.f32 %v4256, 0.0
        %v4303 = vmax.f32 %v4261, 0.0
        %v4304 = vmax.f32 %v4264, 0.0
        %v4305 = vmax.f32 %v4269, 0.0
        %v4306 = vmax.f32 %v4272, 0.0
        %v4307 = vpack.c.bf16 %v4276, %v4275
        %v4308 = vpack.c.bf16 %v4278, %v4277
        %v4309 = vpack.c.bf16 %v4280, %v4279
        %v4310 = vpack.c.bf16 %v4282, %v4281
        %v4311 = vpack.c.bf16 %v4284, %v4283
        %v4312 = vpack.c.bf16 %v4286, %v4285
        %v4313 = vpack.c.bf16 %v4288, %v4287
        %v4314 = vpack.c.bf16 %v4290, %v4289
        %v4315 = vpack.c.bf16 %v4292, %v4291
        %v4316 = vpack.c.bf16 %v4294, %v4293
        %v4317 = vpack.c.bf16 %v4296, %v4295
        %v4318 = vpack.c.bf16 %v4298, %v4297
        %v4319 = vpack.c.bf16 %v4300, %v4299
        %v4320 = vpack.c.bf16 %v4302, %v4301
        %v4321 = vpack.c.bf16 %v4304, %v4303
        %v4322 = vpack.c.bf16 %v4306, %v4305
        %v4323 = vld [vmem:[%s3] sm:$0x3]
        %v4324 = vld [vmem:[%s6] sm:$0x1]
        %v4326 = vlaneseq
        %v4327 = vshrl.u32 %v4326, 7
        %v4328 = vsub.s32 0, %v4327
        %v4329 = vrot.slane %v4324, %v4328
        %v4332 = vsel %vm1478, %v4307, 0
        %v4335 = vsel %vm1478, %v4308, 0
        %v4338 = vsel %vm1478, %v4309, 0
        %v4341 = vsel %vm1478, %v4310, 0
        %v4344 = vsel %vm1478, %v4311, 0
        %v4347 = vsel %vm1478, %v4312, 0
        %v4350 = vsel %vm1478, %v4313, 0
        %v4353 = vsel %vm1478, %v4314, 0
        %v4356 = vsel %vm1478, %v4315, 0
        %v4359 = vsel %vm1478, %v4316, 0
        %v4362 = vsel %vm1478, %v4317, 0
        %v4365 = vsel %vm1478, %v4318, 0
        %v4368 = vsel %vm1478, %v4319, 0
        %v4371 = vsel %vm1478, %v4320, 0
        %v4374 = vsel %vm1478, %v4321, 0
        %v4377 = vsel %vm1478, %v4322, 0
        %v4380 = vsel %vm4110, %v4323, 0
        %4382 = vmatprep.subr.bf16.mxu0 0
        %4383 = vmatpush1.bf16.msra.mxu0 %v4380
        %4384 = vmatprep.subr.bf16.mxu0 0
        %4385 = vmatpush1.bf16.msra.mxu0 0
        %4386 = vmatprep.subr.bf16.mxu0 0
        %4387 = vmatpush1.bf16.msra.mxu0 0
        %4388 = vmatprep.subr.bf16.mxu0 0
        %4389 = vmatpush1.bf16.msra.mxu0 0
        %4390 = vmatprep.subr.bf16.mxu0 0
        %4391 = vmatpush1.bf16.msra.mxu0 0
        %4392 = vmatprep.subr.bf16.mxu0 0
        %4393 = vmatpush1.bf16.msra.mxu0 0
        %4394 = vmatprep.subr.bf16.mxu0 0
        %4395 = vmatpush1.bf16.msra.mxu0 0
        %4396 = vmatprep.subr.bf16.mxu0 0
        %4397 = vmatpush1.bf16.msra.mxu0 0
        %4398 = vmatprep.subr.bf16.mxu0 0
        %4399 = vmatpush1.bf16.msra.mxu0 0
        %4400 = vmatprep.subr.bf16.mxu0 0
        %4401 = vmatpush1.bf16.msra.mxu0 0
        %4402 = vmatprep.subr.bf16.mxu0 0
        %4403 = vmatpush1.bf16.msra.mxu0 0
        %4404 = vmatprep.subr.bf16.mxu0 0
        %4405 = vmatpush1.bf16.msra.mxu0 0
        %4406 = vmatprep.subr.bf16.mxu0 0
        %4407 = vmatpush1.bf16.msra.mxu0 0
        %4408 = vmatprep.subr.bf16.mxu0 0
        %4409 = vmatpush1.bf16.msra.mxu0 0
        %4410 = vmatprep.subr.bf16.mxu0 0
        %4411 = vmatpush1.bf16.msra.mxu0 0
        %4412 = vmatprep.subr.bf16.mxu0 0
        %4413 = vmatpush1.bf16.msra.mxu0 0
        %4414 = vmatprep.mubr.bf16.mxu0 0
        %4415 = vmatmul.mubr.bf16.gmra.mrb[0].mxu0 %v4332
        %v4416 = vpop.f32.mrb[0].mxu0
        %v4417 = vadd.f32 %v4329, %v4416
        %v4418 = vpop.f32.mrb[0].mxu0
        %v4419 = vpop.f32.mrb[0].mxu0
        %v4420 = vadd.f32 %v4329, %v4419
        %v4421 = vpop.f32.mrb[0].mxu0
        %4422 = vmatprep.mubr.bf16.mxu0 0
        %4423 = vmatmul.mubr.bf16.gmra.mrb[0].mxu0 %v4335
        %v4424 = vpop.f32.mrb[0].mxu0
        %v4425 = vadd.f32 %v4329, %v4424
        %v4426 = vpop.f32.mrb[0].mxu0
        %v4427 = vpop.f32.mrb[0].mxu0
        %v4428 = vadd.f32 %v4329, %v4427
        %v4429 = vpop.f32.mrb[0].mxu0
        %4430 = vmatprep.mubr.bf16.mxu0 0
        %4431 = vmatmul.mubr.bf16.gmra.mrb[0].mxu0 %v4338
        %v4432 = vpop.f32.mrb[0].mxu0
        %v4433 = vadd.f32 %v4329, %v4432
        %v4434 = vpop.f32.mrb[0].mxu0
        %v4435 = vpop.f32.mrb[0].mxu0
        %v4436 = vadd.f32 %v4329, %v4435
        %v4437 = vpop.f32.mrb[0].mxu0
        %4438 = vmatprep.mubr.bf16.mxu0 0
        %4439 = vmatmul.mubr.bf16.gmra.mrb[0].mxu0 %v4341
        %v4440 = vpop.f32.mrb[0].mxu0
        %v4441 = vadd.f32 %v4329, %v4440
        %v4442 = vpop.f32.mrb[0].mxu0
        %v4443 = vpop.f32.mrb[0].mxu0
        %v4444 = vadd.f32 %v4329, %v4443
        %v4445 = vpop.f32.mrb[0].mxu0
        %4446 = vmatprep.mubr.bf16.mxu0 0
        %4447 = vmatmul.mubr.bf16.gmra.mrb[0].mxu0 %v4344
        %v4448 = vpop.f32.mrb[0].mxu0
        %v4449 = vadd.f32 %v4329, %v4448
        %v4450 = vpop.f32.mrb[0].mxu0
        %v4451 = vpop.f32.mrb[0].mxu0
        %v4452 = vadd.f32 %v4329, %v4451
        %v4453 = vpop.f32.mrb[0].mxu0
        %4454 = vmatprep.mubr.bf16.mxu0 0
        %4455 = vmatmul.mubr.bf16.gmra.mrb[0].mxu0 %v4347
        %v4456 = vpop.f32.mrb[0].mxu0
        %v4457 = vadd.f32 %v4329, %v4456
        %v4458 = vpop.f32.mrb[0].mxu0
        %v4459 = vpop.f32.mrb[0].mxu0
        %v4460 = vadd.f32 %v4329, %v4459
        %v4461 = vpop.f32.mrb[0].mxu0
        %4462 = vmatprep.mubr.bf16.mxu0 0
        %4463 = vmatmul.mubr.bf16.gmra.mrb[0].mxu0 %v4350
        %v4464 = vpop.f32.mrb[0].mxu0
        %v4465 = vadd.f32 %v4329, %v4464
        %v4466 = vpop.f32.mrb[0].mxu0
        %v4467 = vpop.f32.mrb[0].mxu0
        %v4468 = vadd.f32 %v4329, %v4467
        %v4469 = vpop.f32.mrb[0].mxu0
        %4470 = vmatprep.mubr.bf16.mxu0 0
        %4471 = vmatmul.mubr.bf16.gmra.mrb[0].mxu0 %v4353
        %v4472 = vpop.f32.mrb[0].mxu0
        %v4473 = vadd.f32 %v4329, %v4472
        %v4474 = vpop.f32.mrb[0].mxu0
        %v4475 = vpop.f32.mrb[0].mxu0
        %v4476 = vadd.f32 %v4329, %v4475
        %v4477 = vpop.f32.mrb[0].mxu0
        %4478 = vmatprep.mubr.bf16.mxu0 0
        %4479 = vmatmul.mubr.bf16.gmra.mrb[0].mxu0 %v4356
        %v4480 = vpop.f32.mrb[0].mxu0
        %v4481 = vadd.f32 %v4329, %v4480
        %v4482 = vpop.f32.mrb[0].mxu0
        %v4483 = vpop.f32.mrb[0].mxu0
        %v4484 = vadd.f32 %v4329, %v4483
        %v4485 = vpop.f32.mrb[0].mxu0
        %4486 = vmatprep.mubr.bf16.mxu0 0
        %4487 = vmatmul.mubr.bf16.gmra.mrb[0].mxu0 %v4359
        %v4488 = vpop.f32.mrb[0].mxu0
        %v4489 = vadd.f32 %v4329, %v4488
        %v4490 = vpop.f32.mrb[0].mxu0
        %v4491 = vpop.f32.mrb[0].mxu0
        %v4492 = vadd.f32 %v4329, %v4491
        %v4493 = vpop.f32.mrb[0].mxu0
        %4494 = vmatprep.mubr.bf16.mxu0 0
        %4495 = vmatmul.mubr.bf16.gmra.mrb[0].mxu0 %v4362
        %v4496 = vpop.f32.mrb[0].mxu0
        %v4497 = vadd.f32 %v4329, %v4496
        %v4498 = vpop.f32.mrb[0].mxu0
        %v4499 = vpop.f32.mrb[0].mxu0
        %v4500 = vadd.f32 %v4329, %v4499
        %v4501 = vpop.f32.mrb[0].mxu0
        %4502 = vmatprep.mubr.bf16.mxu0 0
        %4503 = vmatmul.mubr.bf16.gmra.mrb[0].mxu0 %v4365
        %v4504 = vpop.f32.mrb[0].mxu0
        %v4505 = vadd.f32 %v4329, %v4504
        %v4506 = vpop.f32.mrb[0].mxu0
        %v4507 = vpop.f32.mrb[0].mxu0
        %v4508 = vadd.f32 %v4329, %v4507
        %v4509 = vpop.f32.mrb[0].mxu0
        %4510 = vmatprep.mubr.bf16.mxu0 0
        %4511 = vmatmul.mubr.bf16.gmra.mrb[0].mxu0 %v4368
        %v4512 = vpop.f32.mrb[0].mxu0
        %v4513 = vadd.f32 %v4329, %v4512
        %v4514 = vpop.f32.mrb[0].mxu0
        %v4515 = vpop.f32.mrb[0].mxu0
        %v4516 = vadd.f32 %v4329, %v4515
        %v4517 = vpop.f32.mrb[0].mxu0
        %4518 = vmatprep.mubr.bf16.mxu0 0
        %4519 = vmatmul.mubr.bf16.gmra.mrb[0].mxu0 %v4371
        %v4520 = vpop.f32.mrb[0].mxu0
        %v4521 = vadd.f32 %v4329, %v4520
        %v4522 = vpop.f32.mrb[0].mxu0
        %v4523 = vpop.f32.mrb[0].mxu0
        %v4524 = vadd.f32 %v4329, %v4523
        %v4525 = vpop.f32.mrb[0].mxu0
        %4526 = vmatprep.mubr.bf16.mxu0 0
        %4527 = vmatmul.mubr.bf16.gmra.mrb[0].mxu0 %v4374
        %v4528 = vpop.f32.mrb[0].mxu0
        %v4529 = vadd.f32 %v4329, %v4528
        %v4530 = vpop.f32.mrb[0].mxu0
        %v4531 = vpop.f32.mrb[0].mxu0
        %v4532 = vadd.f32 %v4329, %v4531
        %v4533 = vpop.f32.mrb[0].mxu0
        %4534 = vmatprep.mubr.bf16.mxu0 0
        %4535 = vmatmul.mubr.bf16.gmra.mrb[0].mxu0 %v4377
        %v4536 = vpop.f32.mrb[0].mxu0
        %v4537 = vadd.f32 %v4329, %v4536
        %v4538 = vpop.f32.mrb[0].mxu0
        %v4539 = vpop.f32.mrb[0].mxu0
        %v4540 = vadd.f32 %v4329, %v4539
        %v4541 = vpop.f32.mrb[0].mxu0
        %4542 = vdwg.mxu0
        %v4543 = vunpack.c.l.bf16 %v446
        %v4544 = vunpack.c.l.bf16 %v447
        %v4545 = vunpack.c.l.bf16 %v448
        %v4546 = vunpack.c.l.bf16 %v449
        %v4547 = vunpack.c.l.bf16 %v450
        %v4548 = vunpack.c.l.bf16 %v451
        %v4549 = vunpack.c.l.bf16 %v452
        %v4550 = vunpack.c.l.bf16 %v453
        %v4551 = vunpack.c.l.bf16 %v454
        %v4552 = vunpack.c.l.bf16 %v455
        %v4553 = vunpack.c.l.bf16 %v456
        %v4554 = vunpack.c.l.bf16 %v457
        %v4555 = vunpack.c.l.bf16 %v458
        %v4556 = vunpack.c.l.bf16 %v459
        %v4557 = vunpack.c.l.bf16 %v460
        %v4558 = vunpack.c.l.bf16 %v461
        %v4559 = vunpack.c.l.bf16 %v462
        %v4560 = vunpack.c.l.bf16 %v463
        %v4561 = vunpack.c.l.bf16 %v464
        %v4562 = vunpack.c.l.bf16 %v465
        %v4563 = vunpack.c.l.bf16 %v466
        %v4564 = vunpack.c.l.bf16 %v467
        %v4565 = vunpack.c.l.bf16 %v468
        %v4566 = vunpack.c.l.bf16 %v469
        %v4567 = vunpack.c.l.bf16 %v470
        %v4568 = vunpack.c.l.bf16 %v471
        %v4569 = vunpack.c.l.bf16 %v472
        %v4570 = vunpack.c.l.bf16 %v473
        %v4571 = vunpack.c.l.bf16 %v474
        %v4572 = vunpack.c.l.bf16 %v475
        %v4573 = vunpack.c.l.bf16 %v476
        %v4574 = vunpack.c.l.bf16 %v477
        %v4575 = vadd.f32 %v4417, %v4543
        %v4576 = vadd.f32 %v4420, %v4544
        %v4577 = vadd.f32 %v4425, %v4545
        %v4578 = vadd.f32 %v4428, %v4546
        %v4579 = vadd.f32 %v4433, %v4547
        %v4580 = vadd.f32 %v4436, %v4548
        %v4581 = vadd.f32 %v4441, %v4549
        %v4582 = vadd.f32 %v4444, %v4550
        %v4583 = vadd.f32 %v4449, %v4551
        %v4584 = vadd.f32 %v4452, %v4552
        %v4585 = vadd.f32 %v4457, %v4553
        %v4586 = vadd.f32 %v4460, %v4554
        %v4587 = vadd.f32 %v4465, %v4555
        %v4588 = vadd.f32 %v4468, %v4556
        %v4589 = vadd.f32 %v4473, %v4557
        %v4590 = vadd.f32 %v4476, %v4558
        %v4591 = vadd.f32 %v4481, %v4559
        %v4592 = vadd.f32 %v4484, %v4560
        %v4593 = vadd.f32 %v4489, %v4561
        %v4594 = vadd.f32 %v4492, %v4562
        %v4595 = vadd.f32 %v4497, %v4563
        %v4596 = vadd.f32 %v4500, %v4564
        %v4597 = vadd.f32 %v4505, %v4565
        %v4598 = vadd.f32 %v4508, %v4566
        %v4599 = vadd.f32 %v4513, %v4567
        %v4600 = vadd.f32 %v4516, %v4568
        %v4601 = vadd.f32 %v4521, %v4569
        %v4602 = vadd.f32 %v4524, %v4570
        %v4603 = vadd.f32 %v4529, %v4571
        %v4604 = vadd.f32 %v4532, %v4572
        %v4605 = vadd.f32 %v4537, %v4573
        %v4606 = vadd.f32 %v4540, %v4574
        %v4607 = vmax.f32 %v4575, 0.0
        %v4608 = vmax.f32 %v4576, 0.0
        %v4609 = vmax.f32 %v4577, 0.0
        %v4610 = vmax.f32 %v4578, 0.0
        %v4611 = vmax.f32 %v4579, 0.0
        %v4612 = vmax.f32 %v4580, 0.0
        %v4613 = vmax.f32 %v4581, 0.0
        %v4614 = vmax.f32 %v4582, 0.0
        %v4615 = vmax.f32 %v4583, 0.0
        %v4616 = vmax.f32 %v4584, 0.0
        %v4617 = vmax.f32 %v4585, 0.0
        %v4618 = vmax.f32 %v4586, 0.0
        %v4619 = vmax.f32 %v4587, 0.0
        %v4620 = vmax.f32 %v4588, 0.0
        %v4621 = vmax.f32 %v4589, 0.0
        %v4622 = vmax.f32 %v4590, 0.0
        %v4623 = vmax.f32 %v4591, 0.0
        %v4624 = vmax.f32 %v4592, 0.0
        %v4625 = vmax.f32 %v4593, 0.0
        %v4626 = vmax.f32 %v4594, 0.0
        %v4627 = vmax.f32 %v4595, 0.0
        %v4628 = vmax.f32 %v4596, 0.0
        %v4629 = vmax.f32 %v4597, 0.0
        %v4630 = vmax.f32 %v4598, 0.0
        %v4631 = vmax.f32 %v4599, 0.0
        %v4632 = vmax.f32 %v4600, 0.0
        %v4633 = vmax.f32 %v4601, 0.0
        %v4634 = vmax.f32 %v4602, 0.0
        %v4635 = vmax.f32 %v4603, 0.0
        %v4636 = vmax.f32 %v4604, 0.0
        %v4637 = vmax.f32 %v4605, 0.0
        %v4638 = vmax.f32 %v4606, 0.0
        %v4639 = vpack.c.bf16 %v4608, %v4607
        %v4640 = vpack.c.bf16 %v4610, %v4609
        %v4641 = vpack.c.bf16 %v4612, %v4611
        %v4642 = vpack.c.bf16 %v4614, %v4613
        %v4643 = vpack.c.bf16 %v4616, %v4615
        %v4644 = vpack.c.bf16 %v4618, %v4617
        %v4645 = vpack.c.bf16 %v4620, %v4619
        %v4646 = vpack.c.bf16 %v4622, %v4621
        %v4647 = vpack.c.bf16 %v4624, %v4623
        %v4648 = vpack.c.bf16 %v4626, %v4625
        %v4649 = vpack.c.bf16 %v4628, %v4627
        %v4650 = vpack.c.bf16 %v4630, %v4629
        %v4651 = vpack.c.bf16 %v4632, %v4631
        %v4652 = vpack.c.bf16 %v4634, %v4633
        %v4653 = vpack.c.bf16 %v4636, %v4635
        %v4654 = vpack.c.bf16 %v4638, %v4637
        %v4671 = vunpack.c.l.b16 %v4639
        %v4672 = vunpack.c.h.b16 %v4639
        %v4673 = vunpack.c.l.b16 %v4640
        %v4674 = vunpack.c.h.b16 %v4640
        %v4675 = vunpack.c.l.b16 %v4641
        %v4676 = vunpack.c.h.b16 %v4641
        %v4677 = vunpack.c.l.b16 %v4642
        %v4678 = vunpack.c.h.b16 %v4642
        %v4679 = vunpack.c.l.b16 %v4643
        %v4680 = vunpack.c.h.b16 %v4643
        %v4681 = vunpack.c.l.b16 %v4644
        %v4682 = vunpack.c.h.b16 %v4644
        %v4683 = vunpack.c.l.b16 %v4645
        %v4684 = vunpack.c.h.b16 %v4645
        %v4685 = vunpack.c.l.b16 %v4646
        %v4686 = vunpack.c.h.b16 %v4646
        %v4687 = vunpack.c.l.b16 %v4647
        %v4688 = vunpack.c.h.b16 %v4647
        %v4689 = vunpack.c.l.b16 %v4648
        %v4690 = vunpack.c.h.b16 %v4648
        %v4691 = vunpack.c.l.b16 %v4649
        %v4692 = vunpack.c.h.b16 %v4649
        %v4693 = vunpack.c.l.b16 %v4650
        %v4694 = vunpack.c.h.b16 %v4650
        %v4695 = vunpack.c.l.b16 %v4651
        %v4696 = vunpack.c.h.b16 %v4651
        %v4697 = vunpack.c.l.b16 %v4652
        %v4698 = vunpack.c.h.b16 %v4652
        %v4699 = vunpack.c.l.b16 %v4653
        %v4700 = vunpack.c.h.b16 %v4653
        %v4701 = vunpack.c.l.b16 %v4654
        %v4702 = vunpack.c.h.b16 %v4654
        %v4703 = vpack.c.b16 %v4671, %v4671
        %v4704 = vpack.c.b16 %v4672, %v4672
        %v4705 = vpack.c.b16 %v4673, %v4673
        %v4706 = vpack.c.b16 %v4674, %v4674
        %v4707 = vpack.c.b16 %v4675, %v4675
        %v4708 = vpack.c.b16 %v4676, %v4676
        %v4709 = vpack.c.b16 %v4677, %v4677
        %v4710 = vpack.c.b16 %v4678, %v4678
        %v4711 = vpack.c.b16 %v4679, %v4679
        %v4712 = vpack.c.b16 %v4680, %v4680
        %v4713 = vpack.c.b16 %v4681, %v4681
        %v4714 = vpack.c.b16 %v4682, %v4682
        %v4715 = vpack.c.b16 %v4683, %v4683
        %v4716 = vpack.c.b16 %v4684, %v4684
        %v4717 = vpack.c.b16 %v4685, %v4685
        %v4718 = vpack.c.b16 %v4686, %v4686
        %v4719 = vpack.c.b16 %v4687, %v4687
        %v4720 = vpack.c.b16 %v4688, %v4688
        %v4721 = vpack.c.b16 %v4689, %v4689
        %v4722 = vpack.c.b16 %v4690, %v4690
        %v4723 = vpack.c.b16 %v4691, %v4691
        %v4724 = vpack.c.b16 %v4692, %v4692
        %v4725 = vpack.c.b16 %v4693, %v4693
        %v4726 = vpack.c.b16 %v4694, %v4694
        %v4727 = vpack.c.b16 %v4695, %v4695
        %v4728 = vpack.c.b16 %v4696, %v4696
        %v4729 = vpack.c.b16 %v4697, %v4697
        %v4730 = vpack.c.b16 %v4698, %v4698
        %v4731 = vpack.c.b16 %v4699, %v4699
        %v4732 = vpack.c.b16 %v4700, %v4700
        %v4733 = vpack.c.b16 %v4701, %v4701
        %v4734 = vpack.c.b16 %v4702, %v4702
        %vm4767 = vcmask 125952
        %4768 = vst.msk [vmem:[%s310] sm:$0xf] %vm4767, %v4703
        %4769 = vst.msk [vmem:[%s310 + $0x4] sm:$0xf] %vm4767, %v4704
        %4770 = vst.msk [vmem:[%s310 + $0x8] sm:$0xf] %vm4767, %v4705
        %4771 = vst.msk [vmem:[%s310 + $0xc] sm:$0xf] %vm4767, %v4706
        %4772 = vst.msk [vmem:[%s310 + $0x10] sm:$0xf] %vm4767, %v4707
        %4773 = vst.msk [vmem:[%s310 + $0x14] sm:$0xf] %vm4767, %v4708
        %4774 = vst.msk [vmem:[%s310 + $0x18] sm:$0xf] %vm4767, %v4709
        %4775 = vst.msk [vmem:[%s310 + $0x1c] sm:$0xf] %vm4767, %v4710
        %4776 = vst.msk [vmem:[%s310 + $0x20] sm:$0xf] %vm4767, %v4711
        %4777 = vst.msk [vmem:[%s310 + $0x24] sm:$0xf] %vm4767, %v4712
        %4778 = vst.msk [vmem:[%s310 + $0x28] sm:$0xf] %vm4767, %v4713
        %4779 = vst.msk [vmem:[%s310 + $0x2c] sm:$0xf] %vm4767, %v4714
        %4780 = vst.msk [vmem:[%s310 + $0x30] sm:$0xf] %vm4767, %v4715
        %4781 = vst.msk [vmem:[%s310 + $0x34] sm:$0xf] %vm4767, %v4716
        %4782 = vst.msk [vmem:[%s310 + $0x38] sm:$0xf] %vm4767, %v4717
        %4783 = vst.msk [vmem:[%s310 + $0x3c] sm:$0xf] %vm4767, %v4718
        %4784 = vst.msk [vmem:[%s310 + $0x40] sm:$0xf] %vm4767, %v4719
        %4785 = vst.msk [vmem:[%s310 + $0x44] sm:$0xf] %vm4767, %v4720
        %4786 = vst.msk [vmem:[%s310 + $0x48] sm:$0xf] %vm4767, %v4721
        %4787 = vst.msk [vmem:[%s310 + $0x4c] sm:$0xf] %vm4767, %v4722
        %4788 = vst.msk [vmem:[%s310 + $0x50] sm:$0xf] %vm4767, %v4723
        %4789 = vst.msk [vmem:[%s310 + $0x54] sm:$0xf] %vm4767, %v4724
        %4790 = vst.msk [vmem:[%s310 + $0x58] sm:$0xf] %vm4767, %v4725
        %4791 = vst.msk [vmem:[%s310 + $0x5c] sm:$0xf] %vm4767, %v4726
        %4792 = vst.msk [vmem:[%s310 + $0x60] sm:$0xf] %vm4767, %v4727
        %4793 = vst.msk [vmem:[%s310 + $0x64] sm:$0xf] %vm4767, %v4728
        %4794 = vst.msk [vmem:[%s310 + $0x68] sm:$0xf] %vm4767, %v4729
        %4795 = vst.msk [vmem:[%s310 + $0x6c] sm:$0xf] %vm4767, %v4730
        %4796 = vst.msk [vmem:[%s310 + $0x70] sm:$0xf] %vm4767, %v4731
        %4797 = vst.msk [vmem:[%s310 + $0x74] sm:$0xf] %vm4767, %v4732
        %4798 = vst.msk [vmem:[%s310 + $0x78] sm:$0xf] %vm4767, %v4733
        %4799 = vst.msk [vmem:[%s310 + $0x7c] sm:$0xf] %vm4767, %v4734
        %s4800 = sand.u32 %s198, 1
        %s4801 = scalar_lea.sflag [#allocation6], %s4800
        %s4802 = sand.u32 %s198, 1
        %s4803 = smul.addr %s4802, 128
        %s4804 = scalar_lea.vmem [#allocation7], %s4803
        // Predicated region
        $region57: #{tpu_custom_call.1} parent=47 // pred_check
          %p4805 = pneg %p208
        $region58: #{tpu_custom_call.1} parent=47 // pred_check_branch
          %4807 = sbr.rel (%p4805) target = $region60
        $region59: #{tpu_custom_call.1} parent=47 // pred_region
          %s4808 = smul.u32 16, %s29
          %s4810 = ssub.s32 2048, 2048
          %4811 = vsyncadd %s4801, %s4810
          %s4812 = smul.addr %s4808, 2
          %s4813 = smul.addr %s28, 32
          %s4814 = sadd.s32 %s4812, %s4813
          %s4815 = smul.addr %s4814, 64
          %s4816 = scalar_lea.hbm %s7, %s4815
          %s4817 = sshll.u32 %s4804, 4
          %s4818 = int_to_ptr.vmem [resolvable:$true] %s4817
          %4823 = dma.vmem_to_hbm [thread:$0]  %s4818, 2048, %s4816, %s4801, 64, 64, 4
        $region60: #{tpu_custom_call.1} parent=47 // pred_fallthru
          _
      $region48: #{tpu_custom_call.1} parent=5 // pred_fallthru
        _
      %p4824 = scmp.le.s32.totalorder 2, %s19
      // Predicated region
      $region61: #{tpu_custom_call.1} parent=5 // pred_check
        %p4825 = pneg %p4824
      $region62: #{tpu_custom_call.1} parent=5 // pred_check_branch
        %4827 = sbr.rel (%p4825) target = $region64
      $region63: #{tpu_custom_call.1} parent=5 // pred_region
        %s4828 = ssub.s32 %s19, 2
        // Predicated region
        $region65: #{tpu_custom_call.1} parent=63 // pred_check
          %p4829 = pneg %p214
        $region66: #{tpu_custom_call.1} parent=63 // pred_check_branch
          %4831 = sbr.rel (%p4829) target = $region68
        $region67: #{tpu_custom_call.1} parent=63 // pred_region
          %s4832 = sand.u32 %s199, 1
          %s4833 = scalar_lea.sflag [#allocation6], %s4832
          %s4834 = sand.u32 %s199, 1
          %s4835 = smul.addr %s4834, 128
          %s4836 = scalar_lea.vmem [#allocation7], %s4835
          %4837 = dma.done %s4833, 2048
        $region68: #{tpu_custom_call.1} parent=63 // pred_fallthru
          _
      $region64: #{tpu_custom_call.1} parent=5 // pred_fallthru
        _
    $region6: #{tpu_custom_call.1} parent=1 // loop_footer
      %s23 = sadd.s32 1, %s19
    $region7: #{tpu_custom_call.1} parent=1 // loop_footer_branch
      %18 = sbr.rel target = $region3
    $region8: #{tpu_custom_call.1} parent=1 // loop_exit
      _
    %4838 = vsyncpa [#allocation5], 1
    %s4839 = scalar_lea.sflag [#allocation5], 1
    %4840 = vsyncpa %s4839, 1
    %4841 = vsyncpa [#allocation6], 1
    %s4842 = scalar_lea.sflag [#allocation6], 1
    %4843 = vsyncpa %s4842, 1

</llo_original>
